<compile_context>
chip_gen: v6e
topology: v6e:2x2x1
jax: 0.10.0
libtpu: 0.0.40
codegen_flags: <defaults>
</compile_context>

<pallas_src>
import jax
import jax.numpy as jnp
from jax.experimental import pallas as pl
from jax.experimental.pallas import tpu as pltpu

BN_EPS = 1e-5   # nn.BatchNorm1d default eps


# ------------------------------ fused forward kernel ------------------------------
def crystalxas_kernel(x_ref, adj_ref, pool_ref, prompt_ref, eps_ref,
                      wg0_ref, bg0_ref, wg1_ref, bg1_ref,
                      w1f_ref, w1p_ref, b1_ref, bn1_ref,
                      w2_ref, b2_ref, bn2_ref,
                      w3_ref, b3_ref,
                      out_ref):
    adj = adj_ref[...]                      # [BN, BN] block-diagonal adjacency (rows = dst)
    h = x_ref[...]                          # [BN, F]  flattened node features

    # ---- GIN stack: h = relu(Linear_l((1 + eps_l) * h + sum_{j->i} h_j)) ----
    for l, (w_ref, b_ref) in enumerate(((wg0_ref, bg0_ref), (wg1_ref, bg1_ref))):
        agg = jnp.dot(adj, h, preferred_element_type=jnp.float32)       # MXU sum-aggregation
        h = (1.0 + eps_ref[l]) * h + agg
        h = jnp.maximum(
            jnp.dot(h, w_ref[...], preferred_element_type=jnp.float32) + b_ref[0], 0.0)

    # ---- dgl.sum_nodes: per-graph masked node sum as a pooling matmul ----
    feat = jnp.dot(pool_ref[...], h, preferred_element_type=jnp.float32)   # [B, D2]

    # ---- MLP layer 1: Linear(cat([feat, prompt_nn(prompt)])) ; BN (folded) ; ReLU ----
    # prompt_nn is pre-composed into w1p_ref / b1_ref in the wrapper.
    y = (jnp.dot(feat, w1f_ref[...], preferred_element_type=jnp.float32)
         + jnp.dot(prompt_ref[...], w1p_ref[...], preferred_element_type=jnp.float32)
         + b1_ref[0])
    y = jnp.maximum(y * bn1_ref[0] + bn1_ref[1], 0.0)

    # ---- MLP layer 2: Linear ; BN (folded) ; ReLU ----
    y = jnp.dot(y, w2_ref[...], preferred_element_type=jnp.float32) + b2_ref[0]
    y = jnp.maximum(y * bn2_ref[0] + bn2_ref[1], 0.0)

    # ---- output Linear (padded to 128 lanes -> unmasked, lane-dense stores) ----
    out_ref[...] = jnp.dot(y, w3_ref[...], preferred_element_type=jnp.float32) + b3_ref[0]


# ------------------------------------- wrapper -------------------------------------
def _full(shape):
    n = len(shape)
    return pl.BlockSpec(shape, lambda i, _n=n: (0,) * _n)


def crystal_xas_forward(node_feat, adj_mask, node_mask, prompt, params):
    B, N, F = node_feat.shape
    P = prompt.shape[1]
    D1 = params['w_gnn0'].shape[1]
    D2 = params['w_gnn1'].shape[1]
    H1 = params['w_mlp1'].shape[1]
    H2 = params['w_mlp2'].shape[1]
    Dout = params['w_out'].shape[1]
    Dpad = ((Dout + 127) // 128) * 128
    BN_ = B * N
    f32 = jnp.float32
    hp = jax.lax.Precision.HIGHEST

    # ---- batch packing (plain-JAX layout plumbing) ----
    x_flat = node_feat.reshape(BN_, F).astype(f32)
    eye_b = jnp.eye(B, dtype=f32)
    # block-diagonal adjacency:  A[b*N+i, c*N+j] = adj[b,i,j] * (b == c)
    adj_bd = jnp.einsum('bc,bij->bicj', eye_b, adj_mask.astype(f32)).reshape(BN_, BN_)
    # sum_nodes pooling matrix:  pool[b, c*N+n] = node_mask[b,n] * (b == c)
    pool = (eye_b[:, :, None] * node_mask.astype(f32)[:, None, :]).reshape(B, BN_)

    # ---- constant folding on weights (done once per call, outside the kernel) ----
    # split the first MLP weight into feat / prompt halves (== concat then matmul)
    w1f = params['w_mlp1'][:D2]
    w1p = params['w_mlp1'][D2:]
    # compose prompt_nn into the prompt half (no nonlinearity between them)
    w1p_eff = jnp.dot(params['w_prompt'], w1p, precision=hp)                   # [P, H1]
    b1_eff = params['b_mlp1'] + jnp.dot(params['b_prompt'], w1p, precision=hp)  # [1, H1]

    # fold BatchNorm running stats into per-channel (scale, shift)
    def bn_fold(g, b, m, v):
        s = g * jax.lax.rsqrt(v + BN_EPS)
        return jnp.concatenate([s, b - m * s], axis=0)                          # [2, H]
    bn1 = bn_fold(params['bn1_g'], params['bn1_b'], params['bn1_m'], params['bn1_v'])
    bn2 = bn_fold(params['bn2_g'], params['bn2_b'], params['bn2_m'], params['bn2_v'])

    # lane-dense output head
    w3 = jnp.pad(params['w_out'], ((0, 0), (0, Dpad - Dout)))
    b3 = jnp.pad(params['b_out'], ((0, 0), (0, Dpad - Dout)))

    out = pl.pallas_call(
        crystalxas_kernel,
        out_shape=jax.ShapeDtypeStruct((B, Dpad), jnp.float32),
        grid=(1,),
        in_specs=[
            _full((BN_, F)),          # packed node features
            _full((BN_, BN_)),        # block-diagonal adjacency
            _full((B, BN_)),          # sum_nodes pooling matrix
            _full((B, P)),            # prompt
            pl.BlockSpec(memory_space=pltpu.MemorySpace.SMEM),   # GIN eps per layer
            _full((F, D1)), _full((1, D1)),
            _full((D1, D2)), _full((1, D2)),
            _full((D2, H1)), _full((P, H1)), _full((1, H1)), _full((2, H1)),
            _full((H1, H2)), _full((1, H2)), _full((2, H2)),
            _full((H2, Dpad)), _full((1, Dpad)),
        ],
        out_specs=_full((B, Dpad)),
        compiler_params=pltpu.CompilerParams(
            # Whole (tiny) batch in one fused step. For large batches, tile the batch
            # into blocks of graphs and mark that grid axis "parallel".
            dimension_semantics=("arbitrary",),
            vmem_limit_bytes=32 * 1024 * 1024,
        ),
    )(x_flat, adj_bd, pool, prompt.astype(f32), params['gin_eps'],
      params['w_gnn0'], params['b_gnn0'], params['w_gnn1'], params['b_gnn1'],
      w1f, w1p_eff, b1_eff, bn1,
      params['w_mlp2'], params['b_mlp2'], bn2,
      w3, b3)
    return out[:, :Dout]


# --------------------------------- params / reference ---------------------------------
def init_params(key, F, D1, D2, P, H1, H2, Dout):
    ks = jax.random.split(key, 20)

    def lin(k, fi, fo):
        return jax.random.normal(k, (fi, fo), jnp.float32) / jnp.sqrt(jnp.float32(fi))

    def bias(k, fo):
        return 0.01 * jax.random.normal(k, (1, fo), jnp.float32)

    return {
        # GIN apply_func Linears: dims = [feat_dim] + gnn_hidden_dims = [F, D1, D2]
        'w_gnn0': lin(ks[0], F, D1),  'b_gnn0': bias(ks[1], D1),
        'w_gnn1': lin(ks[2], D1, D2), 'b_gnn1': bias(ks[3], D2),
        'gin_eps': jnp.zeros((2,), jnp.float32),          # init_eps=0, learn_eps=False
        # prompt_nn: Linear(P -> P)
        'w_prompt': lin(ks[4], P, P), 'b_prompt': bias(ks[5], P),
        # XANES MLPBlock(D2 + P -> [H1, H2] -> Dout), mode 'NAD' (BN -> ReLU -> Dropout)
        'w_mlp1': lin(ks[6], D2 + P, H1), 'b_mlp1': bias(ks[7], H1),
        'bn1_g': 1.0 + 0.1 * jax.random.normal(ks[8], (1, H1), jnp.float32),
        'bn1_b': 0.1 * jax.random.normal(ks[9], (1, H1), jnp.float32),
        'bn1_m': 0.1 * jax.random.normal(ks[10], (1, H1), jnp.float32),
        'bn1_v': 1.0 + 0.2 * jax.random.uniform(ks[11], (1, H1), dtype=jnp.float32),
        'w_mlp2': lin(ks[12], H1, H2), 'b_mlp2': bias(ks[13], H2),
        'bn2_g': 1.0 + 0.1 * jax.random.normal(ks[14], (1, H2), jnp.float32),
        'bn2_b': 0.1 * jax.random.normal(ks[15], (1, H2), jnp.float32),
        'bn2_m': 0.1 * jax.random.normal(ks[16], (1, H2), jnp.float32),
        'bn2_v': 1.0 + 0.2 * jax.random.uniform(ks[17], (1, H2), dtype=jnp.float32),
        'w_out': lin(ks[18], H2, Dout), 'b_out': bias(ks[19], Dout),
    }


def reference(node_feat, adj_mask, node_mask, prompt, p):
    hp = jax.lax.Precision.HIGHEST
    h = node_feat                                                     # [B,N,F]
    for l in range(2):
        agg = jnp.einsum('bij,bjd->bid', adj_mask, h, precision=hp)   # sum over in-edges
        h = (1.0 + p['gin_eps'][l]) * h + agg
        h = jnp.maximum(jnp.dot(h, p[f'w_gnn{l}'], precision=hp) + p[f'b_gnn{l}'][0], 0.0)
    feat = jnp.sum(h * node_mask[:, :, None], axis=1)                 # dgl.sum_nodes
    pr = jnp.dot(prompt, p['w_prompt'], precision=hp) + p['b_prompt'][0]
    z = jnp.concatenate([feat, pr], axis=-1)

    def bn(x, g, b, m, v):
        return (x - m) * jax.lax.rsqrt(v + BN_EPS) * g + b

    z = jnp.dot(z, p['w_mlp1'], precision=hp) + p['b_mlp1'][0]
    z = jnp.maximum(bn(z, p['bn1_g'][0], p['bn1_b'][0], p['bn1_m'][0], p['bn1_v'][0]), 0.0)
    z = jnp.dot(z, p['w_mlp2'], precision=hp) + p['b_mlp2'][0]
    z = jnp.maximum(bn(z, p['bn2_g'][0], p['bn2_b'][0], p['bn2_m'][0], p['bn2_v'][0]), 0.0)
    return jnp.dot(z, p['w_out'], precision=hp) + p['b_out'][0]


if __name__ == "__main__":
    # feat_dim=6, prompt_dim=2, gnn_hidden_dims=[128, 512], mlp_hidden_dims=[1024, 512],
    # XANES output width = 100.  B=2 graphs, N=8 node slots per graph.
    B, N, F, P = 2, 8, 6, 2
    D1, D2 = 128, 512
    H1, H2, Dout = 1024, 512, 100

    key = jax.random.PRNGKey(0)
    k1, k2, k3, k4 = jax.random.split(key, 4)

    node_mask = jnp.ones((B, N), jnp.float32).at[1, 6:].set(0.0)      # graph 1 has 6 nodes
    node_feat = jax.random.normal(k1, (B, N, F), jnp.float32) * node_mask[:, :, None]
    adj_mask = (jax.random.uniform(k2, (B, N, N)) < 0.4).astype(jnp.float32)
    adj_mask = adj_mask * (1.0 - jnp.eye(N, dtype=jnp.float32))        # no self loops
    adj_mask = adj_mask * node_mask[:, :, None] * node_mask[:, None, :]  # no padded edges
    prompt = jax.random.normal(k3, (B, P), jnp.float32)

    params = init_params(k4, F, D1, D2, P, H1, H2, Dout)

    out = crystal_xas_forward(node_feat, adj_mask, node_mask, prompt, params)
    out = jax.block_until_ready(out)

    ref = reference(node_feat, adj_mask, node_mask, prompt, params)
    assert out.shape == (B, Dout)
    assert jnp.allclose(out, ref, atol=3e-1, rtol=5e-2)
    print("KERNEL_OK")
</pallas_src>

<mosaic_0001>
module attributes {stable_mosaic.version = 11 : i64} {
  func.func @crystalxas_kernel(%arg0: i32, %arg1: memref<16x6xf32, #tpu.memory_space<vmem>>, %arg2: memref<16x16xf32, #tpu.memory_space<vmem>>, %arg3: memref<2x16xf32, #tpu.memory_space<vmem>>, %arg4: memref<2x2xf32, #tpu.memory_space<vmem>>, %arg5: memref<2xf32, #tpu.memory_space<smem>>, %arg6: memref<6x128xf32, #tpu.memory_space<vmem>>, %arg7: memref<1x128xf32, #tpu.memory_space<vmem>>, %arg8: memref<128x512xf32, #tpu.memory_space<vmem>>, %arg9: memref<1x512xf32, #tpu.memory_space<vmem>>, %arg10: memref<512x1024xf32, #tpu.memory_space<vmem>>, %arg11: memref<2x1024xf32, #tpu.memory_space<vmem>>, %arg12: memref<1x1024xf32, #tpu.memory_space<vmem>>, %arg13: memref<2x1024xf32, #tpu.memory_space<vmem>>, %arg14: memref<1024x512xf32, #tpu.memory_space<vmem>>, %arg15: memref<1x512xf32, #tpu.memory_space<vmem>>, %arg16: memref<2x512xf32, #tpu.memory_space<vmem>>, %arg17: memref<512x128xf32, #tpu.memory_space<vmem>>, %arg18: memref<1x128xf32, #tpu.memory_space<vmem>>, %arg19: memref<2x128xf32, #tpu.memory_space<vmem>>) attributes {dimension_semantics = [#tpu.dimension_semantics<arbitrary>], iteration_bounds = array<i64: 1>, scalar_prefetch = 0 : i64, scratch_operands = 0 : i64, tpu.core_type = #tpu.core_type<tc>, window_params = [{pipeline_mode = #tpu.pipeline_mode<synchronous>, transform_indices = @transform_0, window_bounds = array<i64: 16, 6>}, {pipeline_mode = #tpu.pipeline_mode<synchronous>, transform_indices = @transform_1, window_bounds = array<i64: 16, 16>}, {pipeline_mode = #tpu.pipeline_mode<synchronous>, transform_indices = @transform_2, window_bounds = array<i64: 2, 16>}, {pipeline_mode = #tpu.pipeline_mode<synchronous>, transform_indices = @transform_3, window_bounds = array<i64: 2, 2>}, {transform_indices = @transform_4, window_bounds = array<i64: 2>}, {pipeline_mode = #tpu.pipeline_mode<synchronous>, transform_indices = @transform_5, window_bounds = array<i64: 6, 128>}, {pipeline_mode = #tpu.pipeline_mode<synchronous>, transform_indices = @transform_6, window_bounds = array<i64: 1, 128>}, {pipeline_mode = #tpu.pipeline_mode<synchronous>, transform_indices = @transform_7, window_bounds = array<i64: 128, 512>}, {pipeline_mode = #tpu.pipeline_mode<synchronous>, transform_indices = @transform_8, window_bounds = array<i64: 1, 512>}, {pipeline_mode = #tpu.pipeline_mode<synchronous>, transform_indices = @transform_9, window_bounds = array<i64: 512, 1024>}, {pipeline_mode = #tpu.pipeline_mode<synchronous>, transform_indices = @transform_10, window_bounds = array<i64: 2, 1024>}, {pipeline_mode = #tpu.pipeline_mode<synchronous>, transform_indices = @transform_11, window_bounds = array<i64: 1, 1024>}, {pipeline_mode = #tpu.pipeline_mode<synchronous>, transform_indices = @transform_12, window_bounds = array<i64: 2, 1024>}, {pipeline_mode = #tpu.pipeline_mode<synchronous>, transform_indices = @transform_13, window_bounds = array<i64: 1024, 512>}, {pipeline_mode = #tpu.pipeline_mode<synchronous>, transform_indices = @transform_14, window_bounds = array<i64: 1, 512>}, {pipeline_mode = #tpu.pipeline_mode<synchronous>, transform_indices = @transform_15, window_bounds = array<i64: 2, 512>}, {pipeline_mode = #tpu.pipeline_mode<synchronous>, transform_indices = @transform_16, window_bounds = array<i64: 512, 128>}, {pipeline_mode = #tpu.pipeline_mode<synchronous>, transform_indices = @transform_17, window_bounds = array<i64: 1, 128>}, {pipeline_mode = #tpu.pipeline_mode<synchronous>, transform_indices = @transform_18, window_bounds = array<i64: 2, 128>}]} {
    %c0 = arith.constant 0 : index
    %c0_0 = arith.constant 0 : index
    %0 = vector.load %arg2[%c0, %c0_0] : memref<16x16xf32, #tpu.memory_space<vmem>>, vector<16x16xf32>
    %c0_1 = arith.constant 0 : index
    %c0_2 = arith.constant 0 : index
    %1 = vector.load %arg1[%c0_1, %c0_2] : memref<16x6xf32, #tpu.memory_space<vmem>>, vector<16x6xf32>
    %cst = arith.constant dense<0.000000e+00> : vector<16x6xf32>
    %2 = tpu.matmul %0, %1, %cst {dimension_numbers = #tpu.dot_dimension_numbers<[1], [0], [0], [1], [0, 0, 1, 1], [], []>} : vector<16x16xf32>, vector<16x6xf32>, vector<16x6xf32> -> vector<16x6xf32>
    %c0_3 = arith.constant 0 : index
    %3 = memref.load %arg5[%c0_3] : memref<2xf32, #tpu.memory_space<smem>>
    %cst_4 = arith.constant 1.000000e+00 : f32
    %4 = arith.addf %cst_4, %3 : f32
    %5 = vector.broadcast %4 : f32 to vector<16x6xf32>
    %6 = arith.mulf %5, %1 : vector<16x6xf32>
    %7 = arith.addf %6, %2 : vector<16x6xf32>
    %c0_5 = arith.constant 0 : index
    %c0_6 = arith.constant 0 : index
    %8 = vector.load %arg6[%c0_5, %c0_6] : memref<6x128xf32, #tpu.memory_space<vmem>>, vector<6x128xf32>
    %cst_7 = arith.constant dense<0.000000e+00> : vector<16x128xf32>
    %9 = tpu.matmul %7, %8, %cst_7 {dimension_numbers = #tpu.dot_dimension_numbers<[1], [0], [0], [1], [0, 0, 1, 1], [], []>} : vector<16x6xf32>, vector<6x128xf32>, vector<16x128xf32> -> vector<16x128xf32>
    %c0_8 = arith.constant 0 : index
    %c0_9 = arith.constant 0 : index
    %10 = vector.load %arg7[%c0_8, %c0_9] : memref<1x128xf32, #tpu.memory_space<vmem>>, vector<1x128xf32>
    %11 = vector.shape_cast %10 : vector<1x128xf32> to vector<128xf32>
    %12 = vector.shape_cast %11 : vector<128xf32> to vector<1x128xf32>
    %13 = vector.broadcast %12 : vector<1x128xf32> to vector<16x128xf32>
    %14 = arith.addf %9, %13 : vector<16x128xf32>
    %cst_10 = arith.constant 0.000000e+00 : f32
    %15 = vector.broadcast %cst_10 : f32 to vector<16x128xf32>
    %16 = arith.maximumf %14, %15 : vector<16x128xf32>
    %cst_11 = arith.constant dense<0.000000e+00> : vector<16x128xf32>
    %17 = tpu.matmul %0, %16, %cst_11 {dimension_numbers = #tpu.dot_dimension_numbers<[1], [0], [0], [1], [0, 0, 1, 1], [], []>} : vector<16x16xf32>, vector<16x128xf32>, vector<16x128xf32> -> vector<16x128xf32>
    %c1 = arith.constant 1 : index
    %18 = memref.load %arg5[%c1] : memref<2xf32, #tpu.memory_space<smem>>
    %cst_12 = arith.constant 1.000000e+00 : f32
    %19 = arith.addf %cst_12, %18 : f32
    %20 = vector.broadcast %19 : f32 to vector<16x128xf32>
    %21 = arith.mulf %20, %16 : vector<16x128xf32>
    %22 = arith.addf %21, %17 : vector<16x128xf32>
    %c0_13 = arith.constant 0 : index
    %c0_14 = arith.constant 0 : index
    %23 = vector.load %arg8[%c0_13, %c0_14] : memref<128x512xf32, #tpu.memory_space<vmem>>, vector<128x512xf32>
    %cst_15 = arith.constant dense<0.000000e+00> : vector<16x512xf32>
    %24 = tpu.matmul %22, %23, %cst_15 {dimension_numbers = #tpu.dot_dimension_numbers<[1], [0], [0], [1], [0, 0, 1, 1], [], []>} : vector<16x128xf32>, vector<128x512xf32>, vector<16x512xf32> -> vector<16x512xf32>
    %c0_16 = arith.constant 0 : index
    %c0_17 = arith.constant 0 : index
    %25 = vector.load %arg9[%c0_16, %c0_17] : memref<1x512xf32, #tpu.memory_space<vmem>>, vector<1x512xf32>
    %26 = vector.shape_cast %25 : vector<1x512xf32> to vector<512xf32>
    %27 = vector.shape_cast %26 : vector<512xf32> to vector<1x512xf32>
    %28 = vector.broadcast %27 : vector<1x512xf32> to vector<16x512xf32>
    %29 = arith.addf %24, %28 : vector<16x512xf32>
    %cst_18 = arith.constant 0.000000e+00 : f32
    %30 = vector.broadcast %cst_18 : f32 to vector<16x512xf32>
    %31 = arith.maximumf %29, %30 : vector<16x512xf32>
    %c0_19 = arith.constant 0 : index
    %c0_20 = arith.constant 0 : index
    %32 = vector.load %arg3[%c0_19, %c0_20] : memref<2x16xf32, #tpu.memory_space<vmem>>, vector<2x16xf32>
    %cst_21 = arith.constant dense<0.000000e+00> : vector<2x512xf32>
    %33 = tpu.matmul %32, %31, %cst_21 {dimension_numbers = #tpu.dot_dimension_numbers<[1], [0], [0], [1], [0, 0, 1, 1], [], []>} : vector<2x16xf32>, vector<16x512xf32>, vector<2x512xf32> -> vector<2x512xf32>
    %c0_22 = arith.constant 0 : index
    %c0_23 = arith.constant 0 : index
    %34 = vector.load %arg10[%c0_22, %c0_23] : memref<512x1024xf32, #tpu.memory_space<vmem>>, vector<512x1024xf32>
    %cst_24 = arith.constant dense<0.000000e+00> : vector<2x1024xf32>
    %35 = tpu.matmul %33, %34, %cst_24 {dimension_numbers = #tpu.dot_dimension_numbers<[1], [0], [0], [1], [0, 0, 1, 1], [], []>} : vector<2x512xf32>, vector<512x1024xf32>, vector<2x1024xf32> -> vector<2x1024xf32>
    %c0_25 = arith.constant 0 : index
    %c0_26 = arith.constant 0 : index
    %36 = vector.load %arg4[%c0_25, %c0_26] : memref<2x2xf32, #tpu.memory_space<vmem>>, vector<2x2xf32>
    %c0_27 = arith.constant 0 : index
    %c0_28 = arith.constant 0 : index
    %37 = vector.load %arg11[%c0_27, %c0_28] : memref<2x1024xf32, #tpu.memory_space<vmem>>, vector<2x1024xf32>
    %cst_29 = arith.constant dense<0.000000e+00> : vector<2x1024xf32>
    %38 = tpu.matmul %36, %37, %cst_29 {dimension_numbers = #tpu.dot_dimension_numbers<[1], [0], [0], [1], [0, 0, 1, 1], [], []>} : vector<2x2xf32>, vector<2x1024xf32>, vector<2x1024xf32> -> vector<2x1024xf32>
    %39 = arith.addf %35, %38 : vector<2x1024xf32>
    %c0_30 = arith.constant 0 : index
    %c0_31 = arith.constant 0 : index
    %40 = vector.load %arg12[%c0_30, %c0_31] : memref<1x1024xf32, #tpu.memory_space<vmem>>, vector<1x1024xf32>
    %41 = vector.shape_cast %40 : vector<1x1024xf32> to vector<1024xf32>
    %42 = vector.shape_cast %41 : vector<1024xf32> to vector<1x1024xf32>
    %43 = vector.broadcast %42 : vector<1x1024xf32> to vector<2x1024xf32>
    %44 = arith.addf %39, %43 : vector<2x1024xf32>
    %c0_32 = arith.constant 0 : index
    %c0_33 = arith.constant 0 : index
    %45 = vector.load %arg13[%c0_32, %c0_33] : memref<2x1024xf32, #tpu.memory_space<vmem>>, vector<1x1024xf32>
    %46 = vector.shape_cast %45 : vector<1x1024xf32> to vector<1024xf32>
    %47 = vector.shape_cast %46 : vector<1024xf32> to vector<1x1024xf32>
    %48 = vector.broadcast %47 : vector<1x1024xf32> to vector<2x1024xf32>
    %49 = arith.mulf %44, %48 : vector<2x1024xf32>
    %c1_34 = arith.constant 1 : index
    %c0_35 = arith.constant 0 : index
    %50 = vector.load %arg13[%c1_34, %c0_35] : memref<2x1024xf32, #tpu.memory_space<vmem>>, vector<1x1024xf32>
    %51 = vector.shape_cast %50 : vector<1x1024xf32> to vector<1024xf32>
    %52 = vector.shape_cast %51 : vector<1024xf32> to vector<1x1024xf32>
    %53 = vector.broadcast %52 : vector<1x1024xf32> to vector<2x1024xf32>
    %54 = arith.addf %49, %53 : vector<2x1024xf32>
    %cst_36 = arith.constant 0.000000e+00 : f32
    %55 = vector.broadcast %cst_36 : f32 to vector<2x1024xf32>
    %56 = arith.maximumf %54, %55 : vector<2x1024xf32>
    %c0_37 = arith.constant 0 : index
    %c0_38 = arith.constant 0 : index
    %57 = vector.load %arg14[%c0_37, %c0_38] : memref<1024x512xf32, #tpu.memory_space<vmem>>, vector<1024x512xf32>
    %cst_39 = arith.constant dense<0.000000e+00> : vector<2x512xf32>
    %58 = tpu.matmul %56, %57, %cst_39 {dimension_numbers = #tpu.dot_dimension_numbers<[1], [0], [0], [1], [0, 0, 1, 1], [], []>} : vector<2x1024xf32>, vector<1024x512xf32>, vector<2x512xf32> -> vector<2x512xf32>
    %c0_40 = arith.constant 0 : index
    %c0_41 = arith.constant 0 : index
    %59 = vector.load %arg15[%c0_40, %c0_41] : memref<1x512xf32, #tpu.memory_space<vmem>>, vector<1x512xf32>
    %60 = vector.shape_cast %59 : vector<1x512xf32> to vector<512xf32>
    %61 = vector.shape_cast %60 : vector<512xf32> to vector<1x512xf32>
    %62 = vector.broadcast %61 : vector<1x512xf32> to vector<2x512xf32>
    %63 = arith.addf %58, %62 : vector<2x512xf32>
    %c0_42 = arith.constant 0 : index
    %c0_43 = arith.constant 0 : index
    %64 = vector.load %arg16[%c0_42, %c0_43] : memref<2x512xf32, #tpu.memory_space<vmem>>, vector<1x512xf32>
    %65 = vector.shape_cast %64 : vector<1x512xf32> to vector<512xf32>
    %66 = vector.shape_cast %65 : vector<512xf32> to vector<1x512xf32>
    %67 = vector.broadcast %66 : vector<1x512xf32> to vector<2x512xf32>
    %68 = arith.mulf %63, %67 : vector<2x512xf32>
    %c1_44 = arith.constant 1 : index
    %c0_45 = arith.constant 0 : index
    %69 = vector.load %arg16[%c1_44, %c0_45] : memref<2x512xf32, #tpu.memory_space<vmem>>, vector<1x512xf32>
    %70 = vector.shape_cast %69 : vector<1x512xf32> to vector<512xf32>
    %71 = vector.shape_cast %70 : vector<512xf32> to vector<1x512xf32>
    %72 = vector.broadcast %71 : vector<1x512xf32> to vector<2x512xf32>
    %73 = arith.addf %68, %72 : vector<2x512xf32>
    %cst_46 = arith.constant 0.000000e+00 : f32
    %74 = vector.broadcast %cst_46 : f32 to vector<2x512xf32>
    %75 = arith.maximumf %73, %74 : vector<2x512xf32>
    %c0_47 = arith.constant 0 : index
    %c0_48 = arith.constant 0 : index
    %76 = vector.load %arg17[%c0_47, %c0_48] : memref<512x128xf32, #tpu.memory_space<vmem>>, vector<512x128xf32>
    %cst_49 = arith.constant dense<0.000000e+00> : vector<2x128xf32>
    %77 = tpu.matmul %75, %76, %cst_49 {dimension_numbers = #tpu.dot_dimension_numbers<[1], [0], [0], [1], [0, 0, 1, 1], [], []>} : vector<2x512xf32>, vector<512x128xf32>, vector<2x128xf32> -> vector<2x128xf32>
    %c0_50 = arith.constant 0 : index
    %c0_51 = arith.constant 0 : index
    %78 = vector.load %arg18[%c0_50, %c0_51] : memref<1x128xf32, #tpu.memory_space<vmem>>, vector<1x128xf32>
    %79 = vector.shape_cast %78 : vector<1x128xf32> to vector<128xf32>
    %80 = vector.shape_cast %79 : vector<128xf32> to vector<1x128xf32>
    %81 = vector.broadcast %80 : vector<1x128xf32> to vector<2x128xf32>
    %82 = arith.addf %77, %81 : vector<2x128xf32>
    %c0_52 = arith.constant 0 : index
    %c0_53 = arith.constant 0 : index
    %83 = vector.load %arg19[%c0_52, %c0_53] : memref<2x128xf32, #tpu.memory_space<vmem>>, vector<2x128xf32>
    tpu.vector_store %arg19[%c0_52, %c0_53], %82 {strides = array<i32>} : memref<2x128xf32, #tpu.memory_space<vmem>>, vector<2x128xf32>,
    return
  }
  func.func @transform_0(%arg0: i32) -> (i32, i32) {
    %c0_i32 = arith.constant 0 : i32
    %c0_i32_0 = arith.constant 0 : i32
    %c0_i32_1 = arith.constant 0 : i32
    return %c0_i32, %c0_i32_0 : i32, i32
  }
  func.func @transform_1(%arg0: i32) -> (i32, i32) {
    %c0_i32 = arith.constant 0 : i32
    %c0_i32_0 = arith.constant 0 : i32
    %c0_i32_1 = arith.constant 0 : i32
    return %c0_i32, %c0_i32_0 : i32, i32
  }
  func.func @transform_2(%arg0: i32) -> (i32, i32) {
    %c0_i32 = arith.constant 0 : i32
    %c0_i32_0 = arith.constant 0 : i32
    %c0_i32_1 = arith.constant 0 : i32
    return %c0_i32, %c0_i32_0 : i32, i32
  }
  func.func @transform_3(%arg0: i32) -> (i32, i32) {
    %c0_i32 = arith.constant 0 : i32
    %c0_i32_0 = arith.constant 0 : i32
    %c0_i32_1 = arith.constant 0 : i32
    return %c0_i32, %c0_i32_0 : i32, i32
  }
  func.func @transform_4(%arg0: i32) -> i32 {
    %c0_i32 = arith.constant 0 : i32
    %c0_i32_0 = arith.constant 0 : i32
    return %c0_i32 : i32
  }
  func.func @transform_5(%arg0: i32) -> (i32, i32) {
    %c0_i32 = arith.constant 0 : i32
    %c0_i32_0 = arith.constant 0 : i32
    %c0_i32_1 = arith.constant 0 : i32
    return %c0_i32, %c0_i32_0 : i32, i32
  }
  func.func @transform_6(%arg0: i32) -> (i32, i32) {
    %c0_i32 = arith.constant 0 : i32
    %c0_i32_0 = arith.constant 0 : i32
    %c0_i32_1 = arith.constant 0 : i32
    return %c0_i32, %c0_i32_0 : i32, i32
  }
  func.func @transform_7(%arg0: i32) -> (i32, i32) {
    %c0_i32 = arith.constant 0 : i32
    %c0_i32_0 = arith.constant 0 : i32
    %c0_i32_1 = arith.constant 0 : i32
    return %c0_i32, %c0_i32_0 : i32, i32
  }
  func.func @transform_8(%arg0: i32) -> (i32, i32) {
    %c0_i32 = arith.constant 0 : i32
    %c0_i32_0 = arith.constant 0 : i32
    %c0_i32_1 = arith.constant 0 : i32
    return %c0_i32, %c0_i32_0 : i32, i32
  }
  func.func @transform_9(%arg0: i32) -> (i32, i32) {
    %c0_i32 = arith.constant 0 : i32
    %c0_i32_0 = arith.constant 0 : i32
    %c0_i32_1 = arith.constant 0 : i32
    return %c0_i32, %c0_i32_0 : i32, i32
  }
  func.func @transform_10(%arg0: i32) -> (i32, i32) {
    %c0_i32 = arith.constant 0 : i32
    %c0_i32_0 = arith.constant 0 : i32
    %c0_i32_1 = arith.constant 0 : i32
    return %c0_i32, %c0_i32_0 : i32, i32
  }
  func.func @transform_11(%arg0: i32) -> (i32, i32) {
    %c0_i32 = arith.constant 0 : i32
    %c0_i32_0 = arith.constant 0 : i32
    %c0_i32_1 = arith.constant 0 : i32
    return %c0_i32, %c0_i32_0 : i32, i32
  }
  func.func @transform_12(%arg0: i32) -> (i32, i32) {
    %c0_i32 = arith.constant 0 : i32
    %c0_i32_0 = arith.constant 0 : i32
    %c0_i32_1 = arith.constant 0 : i32
    return %c0_i32, %c0_i32_0 : i32, i32
  }
  func.func @transform_13(%arg0: i32) -> (i32, i32) {
    %c0_i32 = arith.constant 0 : i32
    %c0_i32_0 = arith.constant 0 : i32
    %c0_i32_1 = arith.constant 0 : i32
    return %c0_i32, %c0_i32_0 : i32, i32
  }
  func.func @transform_14(%arg0: i32) -> (i32, i32) {
    %c0_i32 = arith.constant 0 : i32
    %c0_i32_0 = arith.constant 0 : i32
    %c0_i32_1 = arith.constant 0 : i32
    return %c0_i32, %c0_i32_0 : i32, i32
  }
  func.func @transform_15(%arg0: i32) -> (i32, i32) {
    %c0_i32 = arith.constant 0 : i32
    %c0_i32_0 = arith.constant 0 : i32
    %c0_i32_1 = arith.constant 0 : i32
    return %c0_i32, %c0_i32_0 : i32, i32
  }
  func.func @transform_16(%arg0: i32) -> (i32, i32) {
    %c0_i32 = arith.constant 0 : i32
    %c0_i32_0 = arith.constant 0 : i32
    %c0_i32_1 = arith.constant 0 : i32
    return %c0_i32, %c0_i32_0 : i32, i32
  }
  func.func @transform_17(%arg0: i32) -> (i32, i32) {
    %c0_i32 = arith.constant 0 : i32
    %c0_i32_0 = arith.constant 0 : i32
    %c0_i32_1 = arith.constant 0 : i32
    return %c0_i32, %c0_i32_0 : i32, i32
  }
  func.func @transform_18(%arg0: i32) -> (i32, i32) {
    %c0_i32 = arith.constant 0 : i32
    %c0_i32_0 = arith.constant 0 : i32
    %c0_i32_1 = arith.constant 0 : i32
    return %c0_i32, %c0_i32_0 : i32, i32
  }
}

</mosaic_0001>

<llo_original>
// kernel: tpu_custom_call.1
$region0: #{tpu_custom_call.1}
  #allocation0 [shape = 'u32[]', space=smem, size = 0x4, offset = 0x4, fixed_abs, tag = 'smem constant byte address 0x4 - core index']
  #allocation1 [shape = 'u32[144,128]{1,0:T(1,128)}', space=vmem, size = 0x12000, scoped, tag = 'internal scratch']
  %s0 = inlined_call_operand.vmem [shape: f32[16,6], index: 0, kind: input, shape index: {}]
  %s1 = inlined_call_operand.hbm [shape: f32[16,16], index: 1, kind: input, shape index: {}]
  %s2 = inlined_call_operand.hbm [shape: f32[2,16], index: 2, kind: input, shape index: {}]
  %s3 = inlined_call_operand.hbm [shape: f32[2,2], index: 3, kind: input, shape index: {}]
  %s4 = inlined_call_operand.hbm [shape: f32[2], index: 4, kind: input, shape index: {}]
  %s5 = inlined_call_operand.hbm [shape: f32[6,128], index: 5, kind: input, shape index: {}]
  %s6 = inlined_call_operand.hbm [shape: f32[1,128], index: 6, kind: input, shape index: {}]
  %s7 = inlined_call_operand.hbm [shape: f32[128,512], index: 7, kind: input, shape index: {}]
  %s8 = inlined_call_operand.hbm [shape: f32[1,512], index: 8, kind: input, shape index: {}]
  %s9 = inlined_call_operand.hbm [shape: f32[512,1024], index: 9, kind: input, shape index: {}]
  %s10 = inlined_call_operand.hbm [shape: f32[2,1024], index: 10, kind: input, shape index: {}]
  %s11 = inlined_call_operand.hbm [shape: f32[1,1024], index: 11, kind: input, shape index: {}]
  %s12 = inlined_call_operand.hbm [shape: f32[2,1024], index: 12, kind: input, shape index: {}]
  %s13 = inlined_call_operand.hbm [shape: f32[1024,512], index: 13, kind: input, shape index: {}]
  %s14 = inlined_call_operand.hbm [shape: f32[1,512], index: 14, kind: input, shape index: {}]
  %s15 = inlined_call_operand.hbm [shape: f32[2,512], index: 15, kind: input, shape index: {}]
  %s16 = inlined_call_operand.hbm [shape: f32[512,128], index: 16, kind: input, shape index: {}]
  %s17 = inlined_call_operand.hbm [shape: f32[1,128], index: 17, kind: input, shape index: {}]
  %s18 = inlined_call_operand.hbm [shape: f32[2,128], index: 18, kind: output, shape index: {}]
  %s19 = sld [smem:[#allocation0]]
  $region150: #{tpu_custom_call.1} parent=0
    _
  %s21 = ssub.s32 1, %s19
  %s22 = scalar_select 0, %s21, %s19
  $region1: #{tpu_custom_call.1} parent=0
    #allocation2 [shape = 'u8[8192]{0}', space=vmem, size = 0x2000, scoped, tag = 'input window, operand 1, single buffered']
    #allocation3 [shape = 's32[1]{0}', space=sflag, size = 0x4, scoped, tag = 'scoped memory for tpu_custom_call.1']
    #allocation4 [shape = 's32[1]{0}', space=sflag, size = 0x4, scoped, tag = 'scoped memory for tpu_custom_call.1']
    #allocation5 [shape = 's32[1]{0}', space=sflag, size = 0x4, scoped, tag = 'scoped memory for tpu_custom_call.1']
    #allocation6 [shape = 'u8[1024]{0}', space=vmem, size = 0x400, scoped, tag = 'input window, operand 2, single buffered']
    #allocation7 [shape = 's32[1]{0}', space=sflag, size = 0x4, scoped, tag = 'scoped memory for tpu_custom_call.1']
    #allocation8 [shape = 'u8[1024]{0}', space=vmem, size = 0x400, scoped, tag = 'input window, operand 3, single buffered']
    #allocation9 [shape = 'u8[512]{0}', space=smem, size = 0x200, scoped, tag = 'input window, operand 4, single buffered']
    #allocation10 [shape = 'u8[4096]{0}', space=vmem, size = 0x1000, scoped, tag = 'input window, operand 5, single buffered']
    #allocation11 [shape = 's32[1]{0}', space=sflag, size = 0x4, scoped, tag = 'scoped memory for tpu_custom_call.1']
    #allocation12 [shape = 'u8[512]{0}', space=vmem, size = 0x400, scoped, tag = 'input window, operand 6, single buffered']
    #allocation13 [shape = 'u8[262144]{0}', space=vmem, size = 0x40000, scoped, tag = 'input window, operand 7, single buffered']
    #allocation14 [shape = 's32[1]{0}', space=sflag, size = 0x4, scoped, tag = 'scoped memory for tpu_custom_call.1']
    #allocation15 [shape = 'u8[2048]{0}', space=vmem, size = 0x800, scoped, tag = 'input window, operand 8, single buffered']
    #allocation16 [shape = 'u8[2097152]{0}', space=vmem, size = 0x200000, scoped, tag = 'input window, operand 9, single buffered']
    #allocation17 [shape = 's32[1]{0}', space=sflag, size = 0x4, scoped, tag = 'scoped memory for tpu_custom_call.1']
    #allocation18 [shape = 'u8[8192]{0}', space=vmem, size = 0x2000, scoped, tag = 'input window, operand 10, single buffered']
    #allocation19 [shape = 'u8[4096]{0}', space=vmem, size = 0x1000, scoped, tag = 'input window, operand 11, single buffered']
    #allocation20 [shape = 's32[1]{0}', space=sflag, size = 0x4, scoped, tag = 'scoped memory for tpu_custom_call.1']
    #allocation21 [shape = 'u8[8192]{0}', space=vmem, size = 0x2000, scoped, tag = 'input window, operand 12, single buffered']
    #allocation22 [shape = 'u8[2097152]{0}', space=vmem, size = 0x200000, scoped, tag = 'input window, operand 13, single buffered']
    #allocation23 [shape = 's32[1]{0}', space=sflag, size = 0x4, scoped, tag = 'scoped memory for tpu_custom_call.1']
    #allocation24 [shape = 'u8[2048]{0}', space=vmem, size = 0x800, scoped, tag = 'input window, operand 14, single buffered']
    #allocation25 [shape = 'u8[4096]{0}', space=vmem, size = 0x1000, scoped, tag = 'input window, operand 15, single buffered']
    #allocation26 [shape = 's32[1]{0}', space=sflag, size = 0x4, scoped, tag = 'scoped memory for tpu_custom_call.1']
    #allocation27 [shape = 'u8[262144]{0}', space=vmem, size = 0x40000, scoped, tag = 'input window, operand 16, single buffered']
    #allocation28 [shape = 'u8[512]{0}', space=vmem, size = 0x400, scoped, tag = 'input window, operand 17, single buffered']
    #allocation29 [shape = 's32[1]{0}', space=sflag, size = 0x4, scoped, tag = 'scoped memory for tpu_custom_call.1']
    #allocation30 [shape = 'u8[1024]{0}', space=vmem, size = 0x400, scoped, tag = 'output window, operand 0, single buffered']
    %23 = vsyncpa [#allocation3], 0
    %24 = vsyncpa [#allocation7], 0
    %25 = vsyncpa [#allocation5], 0
    %26 = vsyncpa [#allocation11], 0
    %27 = vsyncpa [#allocation14], 0
    %28 = vsyncpa [#allocation17], 0
    %29 = vsyncpa [#allocation20], 0
    %30 = vsyncpa [#allocation23], 0
    %31 = vsyncpa [#allocation26], 0
    %32 = vsyncpa [#allocation29], 0
    %33 = vsyncpa [#allocation4], 0
    // Predicated region
    $region2: #{tpu_custom_call.1} parent=1 // pred_check
      _
    $region3: #{tpu_custom_call.1} parent=1 // pred_check_branch
      %35 = sbr.rel (0) target = $region5
    $region4: #{tpu_custom_call.1} parent=1 // pred_region
      _
    $region5: #{tpu_custom_call.1} parent=1 // pred_fallthru
      _
    // Predicated region
    $region6: #{tpu_custom_call.1} parent=1 // pred_check
      _
    $region7: #{tpu_custom_call.1} parent=1 // pred_check_branch
      %37 = sbr.rel (0) target = $region9
    $region8: #{tpu_custom_call.1} parent=1 // pred_region
      %s39 = ssub.s32 256, 256
      %40 = vsyncadd [#allocation3], %s39
      %s41 = sshll.u32 [#allocation2], 4
      %s42 = int_to_ptr.vmem [resolvable:$true] %s41
      %47 = dma.hbm_to_vmem [thread:$0]  %s1, 256, %s42, [#allocation3], 128, 128, 8
    $region9: #{tpu_custom_call.1} parent=1 // pred_fallthru
      _
    // Predicated region
    $region10: #{tpu_custom_call.1} parent=1 // pred_check
      _
    $region11: #{tpu_custom_call.1} parent=1 // pred_check_branch
      %49 = sbr.rel (0) target = $region13
    $region12: #{tpu_custom_call.1} parent=1 // pred_region
      %s51 = ssub.s32 32, 32
      %52 = vsyncadd [#allocation7], %s51
      %s54 = sshll.u32 [#allocation6], 4
      %s55 = int_to_ptr.vmem [resolvable:$true] %s54
      %57 = dma.hbm_to_vmem [thread:$0]  %s2, 32, %s55, [#allocation7]
    $region13: #{tpu_custom_call.1} parent=1 // pred_fallthru
      _
    // Predicated region
    $region14: #{tpu_custom_call.1} parent=1 // pred_check
      _
    $region15: #{tpu_custom_call.1} parent=1 // pred_check_branch
      %59 = sbr.rel (0) target = $region17
    $region16: #{tpu_custom_call.1} parent=1 // pred_region
      %s61 = ssub.s32 32, 32
      %62 = vsyncadd [#allocation7], %s61
      %s64 = sshll.u32 [#allocation8], 4
      %s65 = int_to_ptr.vmem [resolvable:$true] %s64
      %67 = dma.hbm_to_vmem [thread:$0]  %s3, 32, %s65, [#allocation7]
    $region17: #{tpu_custom_call.1} parent=1 // pred_fallthru
      _
    // Predicated region
    $region18: #{tpu_custom_call.1} parent=1 // pred_check
      _
    $region19: #{tpu_custom_call.1} parent=1 // pred_check_branch
      %69 = sbr.rel (0) target = $region21
    $region20: #{tpu_custom_call.1} parent=1 // pred_region
      %s71 = ssub.s32 16, 16
      %72 = vsyncadd [#allocation5], %s71
      %75 = dma.hbm_to_smem %s4, 16, [#allocation9], [#allocation5]
    $region21: #{tpu_custom_call.1} parent=1 // pred_fallthru
      _
    // Predicated region
    $region22: #{tpu_custom_call.1} parent=1 // pred_check
      _
    $region23: #{tpu_custom_call.1} parent=1 // pred_check_branch
      %77 = sbr.rel (0) target = $region25
    $region24: #{tpu_custom_call.1} parent=1 // pred_region
      %s79 = ssub.s32 128, 128
      %80 = vsyncadd [#allocation11], %s79
      %s82 = sshll.u32 [#allocation10], 4
      %s83 = int_to_ptr.vmem [resolvable:$true] %s82
      %85 = dma.hbm_to_vmem [thread:$0]  %s5, 128, %s83, [#allocation11]
    $region25: #{tpu_custom_call.1} parent=1 // pred_fallthru
      _
    // Predicated region
    $region26: #{tpu_custom_call.1} parent=1 // pred_check
      _
    $region27: #{tpu_custom_call.1} parent=1 // pred_check_branch
      %87 = sbr.rel (0) target = $region29
    $region28: #{tpu_custom_call.1} parent=1 // pred_region
      %s89 = ssub.s32 16, 16
      %90 = vsyncadd [#allocation11], %s89
      %s92 = sshll.u32 [#allocation12], 4
      %s93 = int_to_ptr.vmem [resolvable:$true] %s92
      %95 = dma.hbm_to_vmem [thread:$0]  %s6, 16, %s93, [#allocation11]
    $region29: #{tpu_custom_call.1} parent=1 // pred_fallthru
      _
    // Predicated region
    $region30: #{tpu_custom_call.1} parent=1 // pred_check
      _
    $region31: #{tpu_custom_call.1} parent=1 // pred_check_branch
      %97 = sbr.rel (0) target = $region33
    $region32: #{tpu_custom_call.1} parent=1 // pred_region
      %s99 = ssub.s32 8192, 8192
      %100 = vsyncadd [#allocation14], %s99
      %s101 = sshll.u32 [#allocation13], 4
      %s102 = int_to_ptr.vmem [resolvable:$true] %s101
      %107 = dma.hbm_to_vmem [thread:$0]  %s7, 8192, %s102, [#allocation14], 512, 512, 32
    $region33: #{tpu_custom_call.1} parent=1 // pred_fallthru
      _
    // Predicated region
    $region34: #{tpu_custom_call.1} parent=1 // pred_check
      _
    $region35: #{tpu_custom_call.1} parent=1 // pred_check_branch
      %109 = sbr.rel (0) target = $region37
    $region36: #{tpu_custom_call.1} parent=1 // pred_region
      %s111 = ssub.s32 64, 64
      %112 = vsyncadd [#allocation14], %s111
      %s114 = sshll.u32 [#allocation15], 4
      %s115 = int_to_ptr.vmem [resolvable:$true] %s114
      %117 = dma.hbm_to_vmem [thread:$0]  %s8, 64, %s115, [#allocation14]
    $region37: #{tpu_custom_call.1} parent=1 // pred_fallthru
      _
    // Predicated region
    $region38: #{tpu_custom_call.1} parent=1 // pred_check
      _
    $region39: #{tpu_custom_call.1} parent=1 // pred_check_branch
      %119 = sbr.rel (0) target = $region41
    $region40: #{tpu_custom_call.1} parent=1 // pred_region
      %s121 = ssub.s32 65536, 65536
      %122 = vsyncadd [#allocation17], %s121
      %s123 = sshll.u32 [#allocation16], 4
      %s124 = int_to_ptr.vmem [resolvable:$true] %s123
      %129 = dma.hbm_to_vmem [thread:$0]  %s9, 65536, %s124, [#allocation17], 1024, 1024, 64
    $region41: #{tpu_custom_call.1} parent=1 // pred_fallthru
      _
    // Predicated region
    $region42: #{tpu_custom_call.1} parent=1 // pred_check
      _
    $region43: #{tpu_custom_call.1} parent=1 // pred_check_branch
      %131 = sbr.rel (0) target = $region45
    $region44: #{tpu_custom_call.1} parent=1 // pred_region
      %s133 = ssub.s32 256, 256
      %134 = vsyncadd [#allocation17], %s133
      %s136 = sshll.u32 [#allocation18], 4
      %s137 = int_to_ptr.vmem [resolvable:$true] %s136
      %139 = dma.hbm_to_vmem [thread:$0]  %s10, 256, %s137, [#allocation17]
    $region45: #{tpu_custom_call.1} parent=1 // pred_fallthru
      _
    // Predicated region
    $region46: #{tpu_custom_call.1} parent=1 // pred_check
      _
    $region47: #{tpu_custom_call.1} parent=1 // pred_check_branch
      %141 = sbr.rel (0) target = $region49
    $region48: #{tpu_custom_call.1} parent=1 // pred_region
      %s143 = ssub.s32 128, 128
      %144 = vsyncadd [#allocation20], %s143
      %s146 = sshll.u32 [#allocation19], 4
      %s147 = int_to_ptr.vmem [resolvable:$true] %s146
      %149 = dma.hbm_to_vmem [thread:$0]  %s11, 128, %s147, [#allocation20]
    $region49: #{tpu_custom_call.1} parent=1 // pred_fallthru
      _
    // Predicated region
    $region50: #{tpu_custom_call.1} parent=1 // pred_check
      _
    $region51: #{tpu_custom_call.1} parent=1 // pred_check_branch
      %151 = sbr.rel (0) target = $region53
    $region52: #{tpu_custom_call.1} parent=1 // pred_region
      %s153 = ssub.s32 256, 256
      %154 = vsyncadd [#allocation20], %s153
      %s156 = sshll.u32 [#allocation21], 4
      %s157 = int_to_ptr.vmem [resolvable:$true] %s156
      %159 = dma.hbm_to_vmem [thread:$0]  %s12, 256, %s157, [#allocation20]
    $region53: #{tpu_custom_call.1} parent=1 // pred_fallthru
      _
    // Predicated region
    $region54: #{tpu_custom_call.1} parent=1 // pred_check
      _
    $region55: #{tpu_custom_call.1} parent=1 // pred_check_branch
      %161 = sbr.rel (0) target = $region57
    $region56: #{tpu_custom_call.1} parent=1 // pred_region
      %s163 = ssub.s32 65536, 65536
      %164 = vsyncadd [#allocation23], %s163
      %s165 = sshll.u32 [#allocation22], 4
      %s166 = int_to_ptr.vmem [resolvable:$true] %s165
      %171 = dma.hbm_to_vmem [thread:$0]  %s13, 65536, %s166, [#allocation23], 512, 512, 32
    $region57: #{tpu_custom_call.1} parent=1 // pred_fallthru
      _
    // Predicated region
    $region58: #{tpu_custom_call.1} parent=1 // pred_check
      _
    $region59: #{tpu_custom_call.1} parent=1 // pred_check_branch
      %173 = sbr.rel (0) target = $region61
    $region60: #{tpu_custom_call.1} parent=1 // pred_region
      %s175 = ssub.s32 64, 64
      %176 = vsyncadd [#allocation23], %s175
      %s178 = sshll.u32 [#allocation24], 4
      %s179 = int_to_ptr.vmem [resolvable:$true] %s178
      %181 = dma.hbm_to_vmem [thread:$0]  %s14, 64, %s179, [#allocation23]
    $region61: #{tpu_custom_call.1} parent=1 // pred_fallthru
      _
    // Predicated region
    $region62: #{tpu_custom_call.1} parent=1 // pred_check
      _
    $region63: #{tpu_custom_call.1} parent=1 // pred_check_branch
      %183 = sbr.rel (0) target = $region65
    $region64: #{tpu_custom_call.1} parent=1 // pred_region
      %s185 = ssub.s32 128, 128
      %186 = vsyncadd [#allocation26], %s185
      %s188 = sshll.u32 [#allocation25], 4
      %s189 = int_to_ptr.vmem [resolvable:$true] %s188
      %191 = dma.hbm_to_vmem [thread:$0]  %s15, 128, %s189, [#allocation26]
    $region65: #{tpu_custom_call.1} parent=1 // pred_fallthru
      _
    // Predicated region
    $region66: #{tpu_custom_call.1} parent=1 // pred_check
      _
    $region67: #{tpu_custom_call.1} parent=1 // pred_check_branch
      %193 = sbr.rel (0) target = $region69
    $region68: #{tpu_custom_call.1} parent=1 // pred_region
      %s195 = ssub.s32 8192, 8192
      %196 = vsyncadd [#allocation26], %s195
      %s197 = sshll.u32 [#allocation27], 4
      %s198 = int_to_ptr.vmem [resolvable:$true] %s197
      %203 = dma.hbm_to_vmem [thread:$0]  %s16, 8192, %s198, [#allocation26], 128, 128, 8
    $region69: #{tpu_custom_call.1} parent=1 // pred_fallthru
      _
    // Predicated region
    $region70: #{tpu_custom_call.1} parent=1 // pred_check
      _
    $region71: #{tpu_custom_call.1} parent=1 // pred_check_branch
      %205 = sbr.rel (0) target = $region73
    $region72: #{tpu_custom_call.1} parent=1 // pred_region
      %s207 = ssub.s32 16, 16
      %208 = vsyncadd [#allocation29], %s207
      %s210 = sshll.u32 [#allocation28], 4
      %s211 = int_to_ptr.vmem [resolvable:$true] %s210
      %213 = dma.hbm_to_vmem [thread:$0]  %s17, 16, %s211, [#allocation29]
    $region73: #{tpu_custom_call.1} parent=1 // pred_fallthru
      _
    // Predicated region
    $region74: #{tpu_custom_call.1} parent=1 // pred_check
      _
    $region75: #{tpu_custom_call.1} parent=1 // pred_check_branch
      %215 = sbr.rel (0) target = $region77
    $region76: #{tpu_custom_call.1} parent=1 // pred_region
      %216 = dma.done [#allocation3], 256
    $region77: #{tpu_custom_call.1} parent=1 // pred_fallthru
      _
    // Predicated region
    $region78: #{tpu_custom_call.1} parent=1 // pred_check
      _
    $region79: #{tpu_custom_call.1} parent=1 // pred_check_branch
      %218 = sbr.rel (0) target = $region81
    $region80: #{tpu_custom_call.1} parent=1 // pred_region
      %219 = dma.done [#allocation7], 32
    $region81: #{tpu_custom_call.1} parent=1 // pred_fallthru
      _
    // Predicated region
    $region82: #{tpu_custom_call.1} parent=1 // pred_check
      _
    $region83: #{tpu_custom_call.1} parent=1 // pred_check_branch
      %221 = sbr.rel (0) target = $region85
    $region84: #{tpu_custom_call.1} parent=1 // pred_region
      %222 = dma.done [#allocation7], 32
    $region85: #{tpu_custom_call.1} parent=1 // pred_fallthru
      _
    // Predicated region
    $region86: #{tpu_custom_call.1} parent=1 // pred_check
      _
    $region87: #{tpu_custom_call.1} parent=1 // pred_check_branch
      %224 = sbr.rel (0) target = $region89
    $region88: #{tpu_custom_call.1} parent=1 // pred_region
      %225 = dma.done [#allocation5], 16
    $region89: #{tpu_custom_call.1} parent=1 // pred_fallthru
      _
    // Predicated region
    $region90: #{tpu_custom_call.1} parent=1 // pred_check
      _
    $region91: #{tpu_custom_call.1} parent=1 // pred_check_branch
      %227 = sbr.rel (0) target = $region93
    $region92: #{tpu_custom_call.1} parent=1 // pred_region
      %228 = dma.done [#allocation11], 128
    $region93: #{tpu_custom_call.1} parent=1 // pred_fallthru
      _
    // Predicated region
    $region94: #{tpu_custom_call.1} parent=1 // pred_check
      _
    $region95: #{tpu_custom_call.1} parent=1 // pred_check_branch
      %230 = sbr.rel (0) target = $region97
    $region96: #{tpu_custom_call.1} parent=1 // pred_region
      %231 = dma.done [#allocation11], 16
    $region97: #{tpu_custom_call.1} parent=1 // pred_fallthru
      _
    // Predicated region
    $region98: #{tpu_custom_call.1} parent=1 // pred_check
      _
    $region99: #{tpu_custom_call.1} parent=1 // pred_check_branch
      %233 = sbr.rel (0) target = $region101
    $region100: #{tpu_custom_call.1} parent=1 // pred_region
      %234 = dma.done [#allocation14], 8192
    $region101: #{tpu_custom_call.1} parent=1 // pred_fallthru
      _
    // Predicated region
    $region102: #{tpu_custom_call.1} parent=1 // pred_check
      _
    $region103: #{tpu_custom_call.1} parent=1 // pred_check_branch
      %236 = sbr.rel (0) target = $region105
    $region104: #{tpu_custom_call.1} parent=1 // pred_region
      %237 = dma.done [#allocation14], 64
    $region105: #{tpu_custom_call.1} parent=1 // pred_fallthru
      _
    // Predicated region
    $region106: #{tpu_custom_call.1} parent=1 // pred_check
      _
    $region107: #{tpu_custom_call.1} parent=1 // pred_check_branch
      %239 = sbr.rel (0) target = $region109
    $region108: #{tpu_custom_call.1} parent=1 // pred_region
      %240 = dma.done [#allocation17], 65536
    $region109: #{tpu_custom_call.1} parent=1 // pred_fallthru
      _
    // Predicated region
    $region110: #{tpu_custom_call.1} parent=1 // pred_check
      _
    $region111: #{tpu_custom_call.1} parent=1 // pred_check_branch
      %242 = sbr.rel (0) target = $region113
    $region112: #{tpu_custom_call.1} parent=1 // pred_region
      %243 = dma.done [#allocation17], 256
    $region113: #{tpu_custom_call.1} parent=1 // pred_fallthru
      _
    // Predicated region
    $region114: #{tpu_custom_call.1} parent=1 // pred_check
      _
    $region115: #{tpu_custom_call.1} parent=1 // pred_check_branch
      %245 = sbr.rel (0) target = $region117
    $region116: #{tpu_custom_call.1} parent=1 // pred_region
      %246 = dma.done [#allocation20], 128
    $region117: #{tpu_custom_call.1} parent=1 // pred_fallthru
      _
    // Predicated region
    $region118: #{tpu_custom_call.1} parent=1 // pred_check
      _
    $region119: #{tpu_custom_call.1} parent=1 // pred_check_branch
      %248 = sbr.rel (0) target = $region121
    $region120: #{tpu_custom_call.1} parent=1 // pred_region
      %249 = dma.done [#allocation20], 256
    $region121: #{tpu_custom_call.1} parent=1 // pred_fallthru
      _
    // Predicated region
    $region122: #{tpu_custom_call.1} parent=1 // pred_check
      _
    $region123: #{tpu_custom_call.1} parent=1 // pred_check_branch
      %251 = sbr.rel (0) target = $region125
    $region124: #{tpu_custom_call.1} parent=1 // pred_region
      %252 = dma.done [#allocation23], 65536
    $region125: #{tpu_custom_call.1} parent=1 // pred_fallthru
      _
    // Predicated region
    $region126: #{tpu_custom_call.1} parent=1 // pred_check
      _
    $region127: #{tpu_custom_call.1} parent=1 // pred_check_branch
      %254 = sbr.rel (0) target = $region129
    $region128: #{tpu_custom_call.1} parent=1 // pred_region
      %255 = dma.done [#allocation23], 64
    $region129: #{tpu_custom_call.1} parent=1 // pred_fallthru
      _
    // Predicated region
    $region130: #{tpu_custom_call.1} parent=1 // pred_check
      _
    $region131: #{tpu_custom_call.1} parent=1 // pred_check_branch
      %257 = sbr.rel (0) target = $region133
    $region132: #{tpu_custom_call.1} parent=1 // pred_region
      %258 = dma.done [#allocation26], 128
    $region133: #{tpu_custom_call.1} parent=1 // pred_fallthru
      _
    // Predicated region
    $region134: #{tpu_custom_call.1} parent=1 // pred_check
      _
    $region135: #{tpu_custom_call.1} parent=1 // pred_check_branch
      %260 = sbr.rel (0) target = $region137
    $region136: #{tpu_custom_call.1} parent=1 // pred_region
      %261 = dma.done [#allocation26], 8192
    $region137: #{tpu_custom_call.1} parent=1 // pred_fallthru
      _
    // Predicated region
    $region138: #{tpu_custom_call.1} parent=1 // pred_check
      _
    $region139: #{tpu_custom_call.1} parent=1 // pred_check_branch
      %263 = sbr.rel (0) target = $region141
    $region140: #{tpu_custom_call.1} parent=1 // pred_region
      %264 = dma.done [#allocation29], 16
    $region141: #{tpu_custom_call.1} parent=1 // pred_fallthru
      _
    %265 = sfence
    %v266 = vld [vmem:[#allocation2] sm:$0xff]
    %v267 = vld [vmem:[#allocation2 + $0x8] sm:$0xff]
    %v268 = vld [vmem:[%s0] sm:$0xff]
    %v269 = vld [vmem:[%s0 + $0x8] sm:$0xff]
    %vm270 = vcmask 130048
    %v272 = vsel %vm270, %v266, 0
    %v275 = vsel %vm270, %v267, 0
    %277 = vmatprep.subr.mxu0 0.0
    %278 = vmatpush1.msra.mxu0 0.0
    %279 = vmatprep.subr.mxu0 0.0
    %280 = vmatpush1.msra.mxu0 0.0
    %281 = vmatprep.subr.mxu0 0.0
    %282 = vmatpush1.msra.mxu0 0.0
    %283 = vmatprep.subr.mxu0 0.0
    %284 = vmatpush1.msra.mxu0 0.0
    %285 = vmatprep.subr.mxu0 0.0
    %286 = vmatpush1.msra.mxu0 0.0
    %287 = vmatprep.subr.mxu0 0.0
    %288 = vmatpush1.msra.mxu0 0.0
    %289 = vmatprep.subr.mxu0 0.0
    %290 = vmatpush1.msra.mxu0 0.0
    %291 = vmatprep.subr.mxu0 0.0
    %292 = vmatpush1.msra.mxu0 0.0
    %293 = vmatprep.subr.mxu0 0.0
    %294 = vmatpush1.msra.mxu0 0.0
    %295 = vmatprep.subr.mxu0 0.0
    %296 = vmatpush1.msra.mxu0 0.0
    %297 = vmatprep.subr.mxu0 0.0
    %298 = vmatpush1.msra.mxu0 0.0
    %299 = vmatprep.subr.mxu0 0.0
    %300 = vmatpush1.msra.mxu0 0.0
    %301 = vmatprep.subr.mxu0 0.0
    %302 = vmatpush1.msra.mxu0 0.0
    %303 = vmatprep.subr.mxu0 0.0
    %304 = vmatpush1.msra.mxu0 0.0
    %305 = vmatprep.subr.mxu0 0.0
    %306 = vmatpush1.msra.mxu0 %v269
    %307 = vmatprep.subr.mxu0 0.0
    %308 = vmatpush1.msra.mxu0 %v268
    %309 = vmatprep.subr.mxu0 0.0
    %310 = vmatpush2.msra.mxu0 0.0
    %311 = vmatprep.subr.mxu0 0.0
    %312 = vmatpush2.msra.mxu0 0.0
    %313 = vmatprep.subr.mxu0 0.0
    %314 = vmatpush2.msra.mxu0 0.0
    %315 = vmatprep.subr.mxu0 0.0
    %316 = vmatpush2.msra.mxu0 0.0
    %317 = vmatprep.subr.mxu0 0.0
    %318 = vmatpush2.msra.mxu0 0.0
    %319 = vmatprep.subr.mxu0 0.0
    %320 = vmatpush2.msra.mxu0 0.0
    %321 = vmatprep.subr.mxu0 0.0
    %322 = vmatpush2.msra.mxu0 0.0
    %323 = vmatprep.subr.mxu0 0.0
    %324 = vmatpush2.msra.mxu0 0.0
    %325 = vmatprep.subr.mxu0 0.0
    %326 = vmatpush2.msra.mxu0 0.0
    %327 = vmatprep.subr.mxu0 0.0
    %328 = vmatpush2.msra.mxu0 0.0
    %329 = vmatprep.subr.mxu0 0.0
    %330 = vmatpush2.msra.mxu0 0.0
    %331 = vmatprep.subr.mxu0 0.0
    %332 = vmatpush2.msra.mxu0 0.0
    %333 = vmatprep.subr.mxu0 0.0
    %334 = vmatpush2.msra.mxu0 0.0
    %335 = vmatprep.subr.mxu0 0.0
    %336 = vmatpush2.msra.mxu0 0.0
    %337 = vmatprep.subr.mxu0 0.0
    %338 = vmatpush2.msra.mxu0 0.0
    %339 = vmatprep.subr.mxu0 0.0
    %340 = vmatpush2.msra.mxu0 0.0
    %341 = vmatprep.mubr.f32.mxu0 0.0
    %342 = vmatmul.mubr.f32.gmra.mxu0 %v272
    %v343 = vpop.f32.mrf.mxu0
    %v344 = vadd.f32 0.0, %v343
    %v345 = vpop.f32.mrf.mxu0
    %346 = vmatprep.mubr.f32.mxu0 0.0
    %347 = vmatmul.mubr.f32.gmra.mxu0 %v275
    %v348 = vpop.f32.mrf.mxu0
    %v349 = vadd.f32 0.0, %v348
    %v350 = vpop.f32.mrf.mxu0
    %351 = vdwg.mxu0
    %s352 = sld [smem:[#allocation9]]
    %s353 = sadd.f32 %s352, 1.0
    %v354 = vstv %s353
    %v355 = vmul.f32 %v354, %v268
    %v356 = vmul.f32 %v354, %v269
    %v357 = vadd.f32 %v355, %v344
    %v358 = vadd.f32 %v356, %v349
    %v359 = vld [vmem:[#allocation10] sm:$0x3f]
    %v360 = vld [vmem:[#allocation12] sm:$0x1]
    %v362 = vlaneseq
    %v363 = vshrl.u32 %v362, 7
    %v364 = vsub.s32 0, %v363
    %v365 = vrot.slane %v360, %v364
    %vm367 = vcmask 48128
    %v369 = vsel %vm367, %v357, 0
    %v372 = vsel %vm367, %v358, 0
    %vm374 = vcmask 1045504
    %v376 = vsel %vm374, %v359, 0
    %378 = vmatprep.subr.mxu0 0.0
    %379 = vmatpush1.msra.mxu0 0.0
    %380 = vmatprep.subr.mxu0 0.0
    %381 = vmatpush1.msra.mxu0 0.0
    %382 = vmatprep.subr.mxu0 0.0
    %383 = vmatpush1.msra.mxu0 0.0
    %384 = vmatprep.subr.mxu0 0.0
    %385 = vmatpush1.msra.mxu0 0.0
    %386 = vmatprep.subr.mxu0 0.0
    %387 = vmatpush1.msra.mxu0 0.0
    %388 = vmatprep.subr.mxu0 0.0
    %389 = vmatpush1.msra.mxu0 0.0
    %390 = vmatprep.subr.mxu0 0.0
    %391 = vmatpush1.msra.mxu0 0.0
    %392 = vmatprep.subr.mxu0 0.0
    %393 = vmatpush1.msra.mxu0 0.0
    %394 = vmatprep.subr.mxu0 0.0
    %395 = vmatpush1.msra.mxu0 0.0
    %396 = vmatprep.subr.mxu0 0.0
    %397 = vmatpush1.msra.mxu0 0.0
    %398 = vmatprep.subr.mxu0 0.0
    %399 = vmatpush1.msra.mxu0 0.0
    %400 = vmatprep.subr.mxu0 0.0
    %401 = vmatpush1.msra.mxu0 0.0
    %402 = vmatprep.subr.mxu0 0.0
    %403 = vmatpush1.msra.mxu0 0.0
    %404 = vmatprep.subr.mxu0 0.0
    %405 = vmatpush1.msra.mxu0 0.0
    %406 = vmatprep.subr.mxu0 0.0
    %407 = vmatpush1.msra.mxu0 0.0
    %408 = vmatprep.subr.mxu0 0.0
    %409 = vmatpush1.msra.mxu0 %v376
    %410 = vmatprep.subr.mxu0 0.0
    %411 = vmatpush2.msra.mxu0 0.0
    %412 = vmatprep.subr.mxu0 0.0
    %413 = vmatpush2.msra.mxu0 0.0
    %414 = vmatprep.subr.mxu0 0.0
    %415 = vmatpush2.msra.mxu0 0.0
    %416 = vmatprep.subr.mxu0 0.0
    %417 = vmatpush2.msra.mxu0 0.0
    %418 = vmatprep.subr.mxu0 0.0
    %419 = vmatpush2.msra.mxu0 0.0
    %420 = vmatprep.subr.mxu0 0.0
    %421 = vmatpush2.msra.mxu0 0.0
    %422 = vmatprep.subr.mxu0 0.0
    %423 = vmatpush2.msra.mxu0 0.0
    %424 = vmatprep.subr.mxu0 0.0
    %425 = vmatpush2.msra.mxu0 0.0
    %426 = vmatprep.subr.mxu0 0.0
    %427 = vmatpush2.msra.mxu0 0.0
    %428 = vmatprep.subr.mxu0 0.0
    %429 = vmatpush2.msra.mxu0 0.0
    %430 = vmatprep.subr.mxu0 0.0
    %431 = vmatpush2.msra.mxu0 0.0
    %432 = vmatprep.subr.mxu0 0.0
    %433 = vmatpush2.msra.mxu0 0.0
    %434 = vmatprep.subr.mxu0 0.0
    %435 = vmatpush2.msra.mxu0 0.0
    %436 = vmatprep.subr.mxu0 0.0
    %437 = vmatpush2.msra.mxu0 0.0
    %438 = vmatprep.subr.mxu0 0.0
    %439 = vmatpush2.msra.mxu0 0.0
    %440 = vmatprep.subr.mxu0 0.0
    %441 = vmatpush2.msra.mxu0 0.0
    %442 = vmatprep.mubr.f32.mxu0 0.0
    %443 = vmatmul.mubr.f32.gmra.mxu0 %v369
    %v444 = vpop.f32.mrf.mxu0
    %v445 = vadd.f32 %v365, %v444
    %v446 = vpop.f32.mrf.mxu0
    %447 = vmatprep.mubr.f32.mxu0 0.0
    %448 = vmatmul.mubr.f32.gmra.mxu0 %v372
    %v449 = vpop.f32.mrf.mxu0
    %v450 = vadd.f32 %v365, %v449
    %v451 = vpop.f32.mrf.mxu0
    %452 = vdwg.mxu0
    %v453 = vmax.f32 %v445, 0.0
    %v454 = vmax.f32 %v450, 0.0
    %455 = vmatprep.subr.mxu0 0.0
    %456 = vmatpush1.msra.mxu0 0.0
    %457 = vmatprep.subr.mxu0 0.0
    %458 = vmatpush1.msra.mxu0 0.0
    %459 = vmatprep.subr.mxu0 0.0
    %460 = vmatpush1.msra.mxu0 0.0
    %461 = vmatprep.subr.mxu0 0.0
    %462 = vmatpush1.msra.mxu0 0.0
    %463 = vmatprep.subr.mxu0 0.0
    %464 = vmatpush1.msra.mxu0 0.0
    %465 = vmatprep.subr.mxu0 0.0
    %466 = vmatpush1.msra.mxu0 0.0
    %467 = vmatprep.subr.mxu0 0.0
    %468 = vmatpush1.msra.mxu0 0.0
    %469 = vmatprep.subr.mxu0 0.0
    %470 = vmatpush1.msra.mxu0 0.0
    %471 = vmatprep.subr.mxu0 0.0
    %472 = vmatpush1.msra.mxu0 0.0
    %473 = vmatprep.subr.mxu0 0.0
    %474 = vmatpush1.msra.mxu0 0.0
    %475 = vmatprep.subr.mxu0 0.0
    %476 = vmatpush1.msra.mxu0 0.0
    %477 = vmatprep.subr.mxu0 0.0
    %478 = vmatpush1.msra.mxu0 0.0
    %479 = vmatprep.subr.mxu0 0.0
    %480 = vmatpush1.msra.mxu0 0.0
    %481 = vmatprep.subr.mxu0 0.0
    %482 = vmatpush1.msra.mxu0 0.0
    %483 = vmatprep.subr.mxu0 0.0
    %484 = vmatpush1.msra.mxu0 %v454
    %485 = vmatprep.subr.mxu0 0.0
    %486 = vmatpush1.msra.mxu0 %v453
    %487 = vmatprep.subr.mxu0 0.0
    %488 = vmatpush2.msra.mxu0 0.0
    %489 = vmatprep.subr.mxu0 0.0
    %490 = vmatpush2.msra.mxu0 0.0
    %491 = vmatprep.subr.mxu0 0.0
    %492 = vmatpush2.msra.mxu0 0.0
    %493 = vmatprep.subr.mxu0 0.0
    %494 = vmatpush2.msra.mxu0 0.0
    %495 = vmatprep.subr.mxu0 0.0
    %496 = vmatpush2.msra.mxu0 0.0
    %497 = vmatprep.subr.mxu0 0.0
    %498 = vmatpush2.msra.mxu0 0.0
    %499 = vmatprep.subr.mxu0 0.0
    %500 = vmatpush2.msra.mxu0 0.0
    %501 = vmatprep.subr.mxu0 0.0
    %502 = vmatpush2.msra.mxu0 0.0
    %503 = vmatprep.subr.mxu0 0.0
    %504 = vmatpush2.msra.mxu0 0.0
    %505 = vmatprep.subr.mxu0 0.0
    %506 = vmatpush2.msra.mxu0 0.0
    %507 = vmatprep.subr.mxu0 0.0
    %508 = vmatpush2.msra.mxu0 0.0
    %509 = vmatprep.subr.mxu0 0.0
    %510 = vmatpush2.msra.mxu0 0.0
    %511 = vmatprep.subr.mxu0 0.0
    %512 = vmatpush2.msra.mxu0 0.0
    %513 = vmatprep.subr.mxu0 0.0
    %514 = vmatpush2.msra.mxu0 0.0
    %515 = vmatprep.subr.mxu0 0.0
    %516 = vmatpush2.msra.mxu0 0.0
    %517 = vmatprep.subr.mxu0 0.0
    %518 = vmatpush2.msra.mxu0 0.0
    %519 = vmatprep.mubr.f32.mxu0 0.0
    %520 = vmatmul.mubr.f32.gmra.mxu0 %v272
    %v521 = vpop.f32.mrf.mxu0
    %v522 = vadd.f32 0.0, %v521
    %v523 = vpop.f32.mrf.mxu0
    %524 = vmatprep.mubr.f32.mxu0 0.0
    %525 = vmatmul.mubr.f32.gmra.mxu0 %v275
    %v526 = vpop.f32.mrf.mxu0
    %v527 = vadd.f32 0.0, %v526
    %v528 = vpop.f32.mrf.mxu0
    %529 = vdwg.mxu0
    %s530 = sld [smem:[#allocation9 + $0x1]]
    %s531 = sadd.f32 %s530, 1.0
    %v532 = vstv %s531
    %v533 = vmul.f32 %v532, %v453
    %v534 = vmul.f32 %v532, %v454
    %v535 = vadd.f32 %v533, %v522
    %v536 = vadd.f32 %v534, %v527
    %v537 = vld [vmem:[#allocation13] sm:$0xff]
    %v538 = vld [vmem:[#allocation13 + $0x8] sm:$0xff]
    %v539 = vld [vmem:[#allocation13 + $0x10] sm:$0xff]
    %v540 = vld [vmem:[#allocation13 + $0x18] sm:$0xff]
    %v541 = vld [vmem:[#allocation13 + $0x20] sm:$0xff]
    %v542 = vld [vmem:[#allocation13 + $0x28] sm:$0xff]
    %v543 = vld [vmem:[#allocation13 + $0x30] sm:$0xff]
    %v544 = vld [vmem:[#allocation13 + $0x38] sm:$0xff]
    %v545 = vld [vmem:[#allocation13 + $0x40] sm:$0xff]
    %v546 = vld [vmem:[#allocation13 + $0x48] sm:$0xff]
    %v547 = vld [vmem:[#allocation13 + $0x50] sm:$0xff]
    %v548 = vld [vmem:[#allocation13 + $0x58] sm:$0xff]
    %v549 = vld [vmem:[#allocation13 + $0x60] sm:$0xff]
    %v550 = vld [vmem:[#allocation13 + $0x68] sm:$0xff]
    %v551 = vld [vmem:[#allocation13 + $0x70] sm:$0xff]
    %v552 = vld [vmem:[#allocation13 + $0x78] sm:$0xff]
    %v553 = vld [vmem:[#allocation13 + $0x80] sm:$0xff]
    %v554 = vld [vmem:[#allocation13 + $0x88] sm:$0xff]
    %v555 = vld [vmem:[#allocation13 + $0x90] sm:$0xff]
    %v556 = vld [vmem:[#allocation13 + $0x98] sm:$0xff]
    %v557 = vld [vmem:[#allocation13 + $0xa0] sm:$0xff]
    %v558 = vld [vmem:[#allocation13 + $0xa8] sm:$0xff]
    %v559 = vld [vmem:[#allocation13 + $0xb0] sm:$0xff]
    %v560 = vld [vmem:[#allocation13 + $0xb8] sm:$0xff]
    %v561 = vld [vmem:[#allocation13 + $0xc0] sm:$0xff]
    %v562 = vld [vmem:[#allocation13 + $0xc8] sm:$0xff]
    %v563 = vld [vmem:[#allocation13 + $0xd0] sm:$0xff]
    %v564 = vld [vmem:[#allocation13 + $0xd8] sm:$0xff]
    %v565 = vld [vmem:[#allocation13 + $0xe0] sm:$0xff]
    %v566 = vld [vmem:[#allocation13 + $0xe8] sm:$0xff]
    %v567 = vld [vmem:[#allocation13 + $0xf0] sm:$0xff]
    %v568 = vld [vmem:[#allocation13 + $0xf8] sm:$0xff]
    %v569 = vld [vmem:[#allocation13 + $0x100] sm:$0xff]
    %v570 = vld [vmem:[#allocation13 + $0x108] sm:$0xff]
    %v571 = vld [vmem:[#allocation13 + $0x110] sm:$0xff]
    %v572 = vld [vmem:[#allocation13 + $0x118] sm:$0xff]
    %v573 = vld [vmem:[#allocation13 + $0x120] sm:$0xff]
    %v574 = vld [vmem:[#allocation13 + $0x128] sm:$0xff]
    %v575 = vld [vmem:[#allocation13 + $0x130] sm:$0xff]
    %v576 = vld [vmem:[#allocation13 + $0x138] sm:$0xff]
    %v577 = vld [vmem:[#allocation13 + $0x140] sm:$0xff]
    %v578 = vld [vmem:[#allocation13 + $0x148] sm:$0xff]
    %v579 = vld [vmem:[#allocation13 + $0x150] sm:$0xff]
    %v580 = vld [vmem:[#allocation13 + $0x158] sm:$0xff]
    %v581 = vld [vmem:[#allocation13 + $0x160] sm:$0xff]
    %v582 = vld [vmem:[#allocation13 + $0x168] sm:$0xff]
    %v583 = vld [vmem:[#allocation13 + $0x170] sm:$0xff]
    %v584 = vld [vmem:[#allocation13 + $0x178] sm:$0xff]
    %v585 = vld [vmem:[#allocation13 + $0x180] sm:$0xff]
    %v586 = vld [vmem:[#allocation13 + $0x188] sm:$0xff]
    %v587 = vld [vmem:[#allocation13 + $0x190] sm:$0xff]
    %v588 = vld [vmem:[#allocation13 + $0x198] sm:$0xff]
    %v589 = vld [vmem:[#allocation13 + $0x1a0] sm:$0xff]
    %v590 = vld [vmem:[#allocation13 + $0x1a8] sm:$0xff]
    %v591 = vld [vmem:[#allocation13 + $0x1b0] sm:$0xff]
    %v592 = vld [vmem:[#allocation13 + $0x1b8] sm:$0xff]
    %v593 = vld [vmem:[#allocation13 + $0x1c0] sm:$0xff]
    %v594 = vld [vmem:[#allocation13 + $0x1c8] sm:$0xff]
    %v595 = vld [vmem:[#allocation13 + $0x1d0] sm:$0xff]
    %v596 = vld [vmem:[#allocation13 + $0x1d8] sm:$0xff]
    %v597 = vld [vmem:[#allocation13 + $0x1e0] sm:$0xff]
    %v598 = vld [vmem:[#allocation13 + $0x1e8] sm:$0xff]
    %v599 = vld [vmem:[#allocation13 + $0x1f0] sm:$0xff]
    %v600 = vld [vmem:[#allocation13 + $0x1f8] sm:$0xff]
    %v601 = vld [vmem:[#allocation15] sm:$0xf]
    %v603 = vlaneseq
    %v604 = vshrl.u32 %v603, 7
    %v605 = vsub.s32 0, %v604
    %v606 = vrot.slane %v601, %v605
    %v607 = vlaneseq
    %v608 = vshrl.u32 %v607, 7
    %v609 = vsub.s32 1, %v608
    %v610 = vrot.slane %v601, %v609
    %v611 = vlaneseq
    %v612 = vshrl.u32 %v611, 7
    %v613 = vsub.s32 2, %v612
    %v614 = vrot.slane %v601, %v613
    %v615 = vlaneseq
    %v616 = vshrl.u32 %v615, 7
    %v617 = vsub.s32 3, %v616
    %v618 = vrot.slane %v601, %v617
    %623 = vmatprep.subr.mxu0 %v598
    %624 = vmatpush1.msra.mxu0 %v597
    %625 = vmatprep.subr.mxu0 %v594
    %626 = vmatpush1.msra.mxu0 %v593
    %627 = vmatprep.subr.mxu0 %v590
    %628 = vmatpush1.msra.mxu0 %v589
    %629 = vmatprep.subr.mxu0 %v586
    %630 = vmatpush1.msra.mxu0 %v585
    %631 = vmatprep.subr.mxu0 %v582
    %632 = vmatpush1.msra.mxu0 %v581
    %633 = vmatprep.subr.mxu0 %v578
    %634 = vmatpush1.msra.mxu0 %v577
    %635 = vmatprep.subr.mxu0 %v574
    %636 = vmatpush1.msra.mxu0 %v573
    %637 = vmatprep.subr.mxu0 %v570
    %638 = vmatpush1.msra.mxu0 %v569
    %639 = vmatprep.subr.mxu0 %v566
    %640 = vmatpush1.msra.mxu0 %v565
    %641 = vmatprep.subr.mxu0 %v562
    %642 = vmatpush1.msra.mxu0 %v561
    %643 = vmatprep.subr.mxu0 %v558
    %644 = vmatpush1.msra.mxu0 %v557
    %645 = vmatprep.subr.mxu0 %v554
    %646 = vmatpush1.msra.mxu0 %v553
    %647 = vmatprep.subr.mxu0 %v550
    %648 = vmatpush1.msra.mxu0 %v549
    %649 = vmatprep.subr.mxu0 %v546
    %650 = vmatpush1.msra.mxu0 %v545
    %651 = vmatprep.subr.mxu0 %v542
    %652 = vmatpush1.msra.mxu0 %v541
    %653 = vmatprep.subr.mxu0 %v538
    %654 = vmatpush1.msra.mxu0 %v537
    %655 = vmatprep.subr.mxu0 0.0
    %656 = vmatpush2.msra.mxu0 0.0
    %657 = vmatprep.subr.mxu0 0.0
    %658 = vmatpush2.msra.mxu0 0.0
    %659 = vmatprep.subr.mxu0 0.0
    %660 = vmatpush2.msra.mxu0 0.0
    %661 = vmatprep.subr.mxu0 0.0
    %662 = vmatpush2.msra.mxu0 0.0
    %663 = vmatprep.subr.mxu0 0.0
    %664 = vmatpush2.msra.mxu0 0.0
    %665 = vmatprep.subr.mxu0 0.0
    %666 = vmatpush2.msra.mxu0 0.0
    %667 = vmatprep.subr.mxu0 0.0
    %668 = vmatpush2.msra.mxu0 0.0
    %669 = vmatprep.subr.mxu0 0.0
    %670 = vmatpush2.msra.mxu0 0.0
    %671 = vmatprep.subr.mxu0 0.0
    %672 = vmatpush2.msra.mxu0 0.0
    %673 = vmatprep.subr.mxu0 0.0
    %674 = vmatpush2.msra.mxu0 0.0
    %675 = vmatprep.subr.mxu0 0.0
    %676 = vmatpush2.msra.mxu0 0.0
    %677 = vmatprep.subr.mxu0 0.0
    %678 = vmatpush2.msra.mxu0 0.0
    %679 = vmatprep.subr.mxu0 0.0
    %680 = vmatpush2.msra.mxu0 0.0
    %681 = vmatprep.subr.mxu0 0.0
    %682 = vmatpush2.msra.mxu0 0.0
    %683 = vmatprep.subr.mxu0 0.0
    %684 = vmatpush2.msra.mxu0 0.0
    %685 = vmatprep.subr.mxu0 0.0
    %686 = vmatpush2.msra.mxu0 0.0
    %687 = vmatprep.mubr.f32.mxu0 0.0
    %688 = vmatmul.mubr.f32.gmra.mxu0 %v535
    %v689 = vpop.f32.mrf.mxu0
    %v690 = vadd.f32 %v606, %v689
    %v691 = vpop.f32.mrf.mxu0
    %v692 = vadd.f32 %v610, %v691
    %693 = vmatprep.mubr.f32.mxu0 0.0
    %694 = vmatmul.mubr.f32.gmra.mxu0 %v536
    %v695 = vpop.f32.mrf.mxu0
    %v696 = vadd.f32 %v606, %v695
    %v697 = vpop.f32.mrf.mxu0
    %v698 = vadd.f32 %v610, %v697
    %699 = vdwg.mxu0
    %700 = vmatprep.subr.mxu0 %v600
    %701 = vmatpush1.msra.mxu0 %v599
    %702 = vmatprep.subr.mxu0 %v596
    %703 = vmatpush1.msra.mxu0 %v595
    %704 = vmatprep.subr.mxu0 %v592
    %705 = vmatpush1.msra.mxu0 %v591
    %706 = vmatprep.subr.mxu0 %v588
    %707 = vmatpush1.msra.mxu0 %v587
    %708 = vmatprep.subr.mxu0 %v584
    %709 = vmatpush1.msra.mxu0 %v583
    %710 = vmatprep.subr.mxu0 %v580
    %711 = vmatpush1.msra.mxu0 %v579
    %712 = vmatprep.subr.mxu0 %v576
    %713 = vmatpush1.msra.mxu0 %v575
    %714 = vmatprep.subr.mxu0 %v572
    %715 = vmatpush1.msra.mxu0 %v571
    %716 = vmatprep.subr.mxu0 %v568
    %717 = vmatpush1.msra.mxu0 %v567
    %718 = vmatprep.subr.mxu0 %v564
    %719 = vmatpush1.msra.mxu0 %v563
    %720 = vmatprep.subr.mxu0 %v560
    %721 = vmatpush1.msra.mxu0 %v559
    %722 = vmatprep.subr.mxu0 %v556
    %723 = vmatpush1.msra.mxu0 %v555
    %724 = vmatprep.subr.mxu0 %v552
    %725 = vmatpush1.msra.mxu0 %v551
    %726 = vmatprep.subr.mxu0 %v548
    %727 = vmatpush1.msra.mxu0 %v547
    %728 = vmatprep.subr.mxu0 %v544
    %729 = vmatpush1.msra.mxu0 %v543
    %730 = vmatprep.subr.mxu0 %v540
    %731 = vmatpush1.msra.mxu0 %v539
    %732 = vmatprep.subr.mxu0 0.0
    %733 = vmatpush2.msra.mxu0 0.0
    %734 = vmatprep.subr.mxu0 0.0
    %735 = vmatpush2.msra.mxu0 0.0
    %736 = vmatprep.subr.mxu0 0.0
    %737 = vmatpush2.msra.mxu0 0.0
    %738 = vmatprep.subr.mxu0 0.0
    %739 = vmatpush2.msra.mxu0 0.0
    %740 = vmatprep.subr.mxu0 0.0
    %741 = vmatpush2.msra.mxu0 0.0
    %742 = vmatprep.subr.mxu0 0.0
    %743 = vmatpush2.msra.mxu0 0.0
    %744 = vmatprep.subr.mxu0 0.0
    %745 = vmatpush2.msra.mxu0 0.0
    %746 = vmatprep.subr.mxu0 0.0
    %747 = vmatpush2.msra.mxu0 0.0
    %748 = vmatprep.subr.mxu0 0.0
    %749 = vmatpush2.msra.mxu0 0.0
    %750 = vmatprep.subr.mxu0 0.0
    %751 = vmatpush2.msra.mxu0 0.0
    %752 = vmatprep.subr.mxu0 0.0
    %753 = vmatpush2.msra.mxu0 0.0
    %754 = vmatprep.subr.mxu0 0.0
    %755 = vmatpush2.msra.mxu0 0.0
    %756 = vmatprep.subr.mxu0 0.0
    %757 = vmatpush2.msra.mxu0 0.0
    %758 = vmatprep.subr.mxu0 0.0
    %759 = vmatpush2.msra.mxu0 0.0
    %760 = vmatprep.subr.mxu0 0.0
    %761 = vmatpush2.msra.mxu0 0.0
    %762 = vmatprep.subr.mxu0 0.0
    %763 = vmatpush2.msra.mxu0 0.0
    %764 = vmatprep.mubr.f32.mxu0 0.0
    %765 = vmatmul.mubr.f32.gmra.mxu0 %v535
    %v766 = vpop.f32.mrf.mxu0
    %v767 = vadd.f32 %v614, %v766
    %v768 = vpop.f32.mrf.mxu0
    %v769 = vadd.f32 %v618, %v768
    %770 = vmatprep.mubr.f32.mxu0 0.0
    %771 = vmatmul.mubr.f32.gmra.mxu0 %v536
    %v772 = vpop.f32.mrf.mxu0
    %v773 = vadd.f32 %v614, %v772
    %v774 = vpop.f32.mrf.mxu0
    %v775 = vadd.f32 %v618, %v774
    %776 = vdwg.mxu0
    %v777 = vmax.f32 %v690, 0.0
    %v778 = vmax.f32 %v692, 0.0
    %v779 = vmax.f32 %v767, 0.0
    %v780 = vmax.f32 %v769, 0.0
    %v781 = vmax.f32 %v696, 0.0
    %v782 = vmax.f32 %v698, 0.0
    %v783 = vmax.f32 %v773, 0.0
    %v784 = vmax.f32 %v775, 0.0
    %v785 = vld [vmem:[#allocation6] sm:$0x3]
    %v787 = vsel %vm270, %v785, 0
    %789 = vmatprep.subr.mxu0 0.0
    %790 = vmatpush1.msra.mxu0 0.0
    %791 = vmatprep.subr.mxu0 0.0
    %792 = vmatpush1.msra.mxu0 0.0
    %793 = vmatprep.subr.mxu0 0.0
    %794 = vmatpush1.msra.mxu0 0.0
    %795 = vmatprep.subr.mxu0 0.0
    %796 = vmatpush1.msra.mxu0 0.0
    %797 = vmatprep.subr.mxu0 0.0
    %798 = vmatpush1.msra.mxu0 0.0
    %799 = vmatprep.subr.mxu0 0.0
    %800 = vmatpush1.msra.mxu0 0.0
    %801 = vmatprep.subr.mxu0 0.0
    %802 = vmatpush1.msra.mxu0 0.0
    %803 = vmatprep.subr.mxu0 0.0
    %804 = vmatpush1.msra.mxu0 0.0
    %805 = vmatprep.subr.mxu0 0.0
    %806 = vmatpush1.msra.mxu0 0.0
    %807 = vmatprep.subr.mxu0 0.0
    %808 = vmatpush1.msra.mxu0 0.0
    %809 = vmatprep.subr.mxu0 0.0
    %810 = vmatpush1.msra.mxu0 0.0
    %811 = vmatprep.subr.mxu0 0.0
    %812 = vmatpush1.msra.mxu0 0.0
    %813 = vmatprep.subr.mxu0 0.0
    %814 = vmatpush1.msra.mxu0 0.0
    %815 = vmatprep.subr.mxu0 0.0
    %816 = vmatpush1.msra.mxu0 0.0
    %817 = vmatprep.subr.mxu0 %v782
    %818 = vmatpush1.msra.mxu0 %v781
    %819 = vmatprep.subr.mxu0 %v778
    %820 = vmatpush1.msra.mxu0 %v777
    %821 = vmatprep.subr.mxu0 0.0
    %822 = vmatpush2.msra.mxu0 0.0
    %823 = vmatprep.subr.mxu0 0.0
    %824 = vmatpush2.msra.mxu0 0.0
    %825 = vmatprep.subr.mxu0 0.0
    %826 = vmatpush2.msra.mxu0 0.0
    %827 = vmatprep.subr.mxu0 0.0
    %828 = vmatpush2.msra.mxu0 0.0
    %829 = vmatprep.subr.mxu0 0.0
    %830 = vmatpush2.msra.mxu0 0.0
    %831 = vmatprep.subr.mxu0 0.0
    %832 = vmatpush2.msra.mxu0 0.0
    %833 = vmatprep.subr.mxu0 0.0
    %834 = vmatpush2.msra.mxu0 0.0
    %835 = vmatprep.subr.mxu0 0.0
    %836 = vmatpush2.msra.mxu0 0.0
    %837 = vmatprep.subr.mxu0 0.0
    %838 = vmatpush2.msra.mxu0 0.0
    %839 = vmatprep.subr.mxu0 0.0
    %840 = vmatpush2.msra.mxu0 0.0
    %841 = vmatprep.subr.mxu0 0.0
    %842 = vmatpush2.msra.mxu0 0.0
    %843 = vmatprep.subr.mxu0 0.0
    %844 = vmatpush2.msra.mxu0 0.0
    %845 = vmatprep.subr.mxu0 0.0
    %846 = vmatpush2.msra.mxu0 0.0
    %847 = vmatprep.subr.mxu0 0.0
    %848 = vmatpush2.msra.mxu0 0.0
    %849 = vmatprep.subr.mxu0 0.0
    %850 = vmatpush2.msra.mxu0 0.0
    %851 = vmatprep.subr.mxu0 0.0
    %852 = vmatpush2.msra.mxu0 0.0
    %853 = vmatprep.mubr.f32.mxu0 0.0
    %854 = vmatmul.mubr.f32.gmra.mxu0 %v787
    %v855 = vpop.f32.mrf.mxu0
    %v856 = vadd.f32 0.0, %v855
    %v857 = vpop.f32.mrf.mxu0
    %v858 = vadd.f32 0.0, %v857
    %859 = vdwg.mxu0
    %860 = vmatprep.subr.mxu0 0.0
    %861 = vmatpush1.msra.mxu0 0.0
    %862 = vmatprep.subr.mxu0 0.0
    %863 = vmatpush1.msra.mxu0 0.0
    %864 = vmatprep.subr.mxu0 0.0
    %865 = vmatpush1.msra.mxu0 0.0
    %866 = vmatprep.subr.mxu0 0.0
    %867 = vmatpush1.msra.mxu0 0.0
    %868 = vmatprep.subr.mxu0 0.0
    %869 = vmatpush1.msra.mxu0 0.0
    %870 = vmatprep.subr.mxu0 0.0
    %871 = vmatpush1.msra.mxu0 0.0
    %872 = vmatprep.subr.mxu0 0.0
    %873 = vmatpush1.msra.mxu0 0.0
    %874 = vmatprep.subr.mxu0 0.0
    %875 = vmatpush1.msra.mxu0 0.0
    %876 = vmatprep.subr.mxu0 0.0
    %877 = vmatpush1.msra.mxu0 0.0
    %878 = vmatprep.subr.mxu0 0.0
    %879 = vmatpush1.msra.mxu0 0.0
    %880 = vmatprep.subr.mxu0 0.0
    %881 = vmatpush1.msra.mxu0 0.0
    %882 = vmatprep.subr.mxu0 0.0
    %883 = vmatpush1.msra.mxu0 0.0
    %884 = vmatprep.subr.mxu0 0.0
    %885 = vmatpush1.msra.mxu0 0.0
    %886 = vmatprep.subr.mxu0 0.0
    %887 = vmatpush1.msra.mxu0 0.0
    %888 = vmatprep.subr.mxu0 %v784
    %889 = vmatpush1.msra.mxu0 %v783
    %890 = vmatprep.subr.mxu0 %v780
    %891 = vmatpush1.msra.mxu0 %v779
    %892 = vmatprep.subr.mxu0 0.0
    %893 = vmatpush2.msra.mxu0 0.0
    %894 = vmatprep.subr.mxu0 0.0
    %895 = vmatpush2.msra.mxu0 0.0
    %896 = vmatprep.subr.mxu0 0.0
    %897 = vmatpush2.msra.mxu0 0.0
    %898 = vmatprep.subr.mxu0 0.0
    %899 = vmatpush2.msra.mxu0 0.0
    %900 = vmatprep.subr.mxu0 0.0
    %901 = vmatpush2.msra.mxu0 0.0
    %902 = vmatprep.subr.mxu0 0.0
    %903 = vmatpush2.msra.mxu0 0.0
    %904 = vmatprep.subr.mxu0 0.0
    %905 = vmatpush2.msra.mxu0 0.0
    %906 = vmatprep.subr.mxu0 0.0
    %907 = vmatpush2.msra.mxu0 0.0
    %908 = vmatprep.subr.mxu0 0.0
    %909 = vmatpush2.msra.mxu0 0.0
    %910 = vmatprep.subr.mxu0 0.0
    %911 = vmatpush2.msra.mxu0 0.0
    %912 = vmatprep.subr.mxu0 0.0
    %913 = vmatpush2.msra.mxu0 0.0
    %914 = vmatprep.subr.mxu0 0.0
    %915 = vmatpush2.msra.mxu0 0.0
    %916 = vmatprep.subr.mxu0 0.0
    %917 = vmatpush2.msra.mxu0 0.0
    %918 = vmatprep.subr.mxu0 0.0
    %919 = vmatpush2.msra.mxu0 0.0
    %920 = vmatprep.subr.mxu0 0.0
    %921 = vmatpush2.msra.mxu0 0.0
    %922 = vmatprep.subr.mxu0 0.0
    %923 = vmatpush2.msra.mxu0 0.0
    %924 = vmatprep.mubr.f32.mxu0 0.0
    %925 = vmatmul.mubr.f32.gmra.mxu0 %v787
    %v926 = vpop.f32.mrf.mxu0
    %v927 = vadd.f32 0.0, %v926
    %v928 = vpop.f32.mrf.mxu0
    %v929 = vadd.f32 0.0, %v928
    %930 = vdwg.mxu0
    %v931 = vld [vmem:[#allocation16] sm:$0xff]
    %v932 = vld [vmem:[#allocation16 + $0x8] sm:$0xff]
    %v933 = vld [vmem:[#allocation16 + $0x10] sm:$0xff]
    %v934 = vld [vmem:[#allocation16 + $0x18] sm:$0xff]
    %v935 = vld [vmem:[#allocation16 + $0x20] sm:$0xff]
    %v936 = vld [vmem:[#allocation16 + $0x28] sm:$0xff]
    %v937 = vld [vmem:[#allocation16 + $0x30] sm:$0xff]
    %v938 = vld [vmem:[#allocation16 + $0x38] sm:$0xff]
    %v939 = vld [vmem:[#allocation16 + $0x40] sm:$0xff]
    %v940 = vld [vmem:[#allocation16 + $0x48] sm:$0xff]
    %v941 = vld [vmem:[#allocation16 + $0x50] sm:$0xff]
    %v942 = vld [vmem:[#allocation16 + $0x58] sm:$0xff]
    %v943 = vld [vmem:[#allocation16 + $0x60] sm:$0xff]
    %v944 = vld [vmem:[#allocation16 + $0x68] sm:$0xff]
    %v945 = vld [vmem:[#allocation16 + $0x70] sm:$0xff]
    %v946 = vld [vmem:[#allocation16 + $0x78] sm:$0xff]
    %v947 = vld [vmem:[#allocation16 + $0x80] sm:$0xff]
    %v948 = vld [vmem:[#allocation16 + $0x88] sm:$0xff]
    %v949 = vld [vmem:[#allocation16 + $0x90] sm:$0xff]
    %v950 = vld [vmem:[#allocation16 + $0x98] sm:$0xff]
    %v951 = vld [vmem:[#allocation16 + $0xa0] sm:$0xff]
    %v952 = vld [vmem:[#allocation16 + $0xa8] sm:$0xff]
    %v953 = vld [vmem:[#allocation16 + $0xb0] sm:$0xff]
    %v954 = vld [vmem:[#allocation16 + $0xb8] sm:$0xff]
    %v955 = vld [vmem:[#allocation16 + $0xc0] sm:$0xff]
    %v956 = vld [vmem:[#allocation16 + $0xc8] sm:$0xff]
    %v957 = vld [vmem:[#allocation16 + $0xd0] sm:$0xff]
    %v958 = vld [vmem:[#allocation16 + $0xd8] sm:$0xff]
    %v959 = vld [vmem:[#allocation16 + $0xe0] sm:$0xff]
    %v960 = vld [vmem:[#allocation16 + $0xe8] sm:$0xff]
    %v961 = vld [vmem:[#allocation16 + $0xf0] sm:$0xff]
    %v962 = vld [vmem:[#allocation16 + $0xf8] sm:$0xff]
    %v963 = vld [vmem:[#allocation16 + $0x100] sm:$0xff]
    %v964 = vld [vmem:[#allocation16 + $0x108] sm:$0xff]
    %v965 = vld [vmem:[#allocation16 + $0x110] sm:$0xff]
    %v966 = vld [vmem:[#allocation16 + $0x118] sm:$0xff]
    %v967 = vld [vmem:[#allocation16 + $0x120] sm:$0xff]
    %v968 = vld [vmem:[#allocation16 + $0x128] sm:$0xff]
    %v969 = vld [vmem:[#allocation16 + $0x130] sm:$0xff]
    %v970 = vld [vmem:[#allocation16 + $0x138] sm:$0xff]
    %v971 = vld [vmem:[#allocation16 + $0x140] sm:$0xff]
    %v972 = vld [vmem:[#allocation16 + $0x148] sm:$0xff]
    %v973 = vld [vmem:[#allocation16 + $0x150] sm:$0xff]
    %v974 = vld [vmem:[#allocation16 + $0x158] sm:$0xff]
    %v975 = vld [vmem:[#allocation16 + $0x160] sm:$0xff]
    %v976 = vld [vmem:[#allocation16 + $0x168] sm:$0xff]
    %v977 = vld [vmem:[#allocation16 + $0x170] sm:$0xff]
    %v978 = vld [vmem:[#allocation16 + $0x178] sm:$0xff]
    %v979 = vld [vmem:[#allocation16 + $0x180] sm:$0xff]
    %v980 = vld [vmem:[#allocation16 + $0x188] sm:$0xff]
    %v981 = vld [vmem:[#allocation16 + $0x190] sm:$0xff]
    %v982 = vld [vmem:[#allocation16 + $0x198] sm:$0xff]
    %v983 = vld [vmem:[#allocation16 + $0x1a0] sm:$0xff]
    %v984 = vld [vmem:[#allocation16 + $0x1a8] sm:$0xff]
    %v985 = vld [vmem:[#allocation16 + $0x1b0] sm:$0xff]
    %v986 = vld [vmem:[#allocation16 + $0x1b8] sm:$0xff]
    %v987 = vld [vmem:[#allocation16 + $0x1c0] sm:$0xff]
    %v988 = vld [vmem:[#allocation16 + $0x1c8] sm:$0xff]
    %v989 = vld [vmem:[#allocation16 + $0x1d0] sm:$0xff]
    %v990 = vld [vmem:[#allocation16 + $0x1d8] sm:$0xff]
    %v991 = vld [vmem:[#allocation16 + $0x1e0] sm:$0xff]
    %v992 = vld [vmem:[#allocation16 + $0x1e8] sm:$0xff]
    %v993 = vld [vmem:[#allocation16 + $0x1f0] sm:$0xff]
    %v994 = vld [vmem:[#allocation16 + $0x1f8] sm:$0xff]
    %v995 = vld [vmem:[#allocation16 + $0x200] sm:$0xff]
    %v996 = vld [vmem:[#allocation16 + $0x208] sm:$0xff]
    %v997 = vld [vmem:[#allocation16 + $0x210] sm:$0xff]
    %v998 = vld [vmem:[#allocation16 + $0x218] sm:$0xff]
    %v999 = vld [vmem:[#allocation16 + $0x220] sm:$0xff]
    %v1000 = vld [vmem:[#allocation16 + $0x228] sm:$0xff]
    %v1001 = vld [vmem:[#allocation16 + $0x230] sm:$0xff]
    %v1002 = vld [vmem:[#allocation16 + $0x238] sm:$0xff]
    %v1003 = vld [vmem:[#allocation16 + $0x240] sm:$0xff]
    %v1004 = vld [vmem:[#allocation16 + $0x248] sm:$0xff]
    %v1005 = vld [vmem:[#allocation16 + $0x250] sm:$0xff]
    %v1006 = vld [vmem:[#allocation16 + $0x258] sm:$0xff]
    %v1007 = vld [vmem:[#allocation16 + $0x260] sm:$0xff]
    %v1008 = vld [vmem:[#allocation16 + $0x268] sm:$0xff]
    %v1009 = vld [vmem:[#allocation16 + $0x270] sm:$0xff]
    %v1010 = vld [vmem:[#allocation16 + $0x278] sm:$0xff]
    %v1011 = vld [vmem:[#allocation16 + $0x280] sm:$0xff]
    %v1012 = vld [vmem:[#allocation16 + $0x288] sm:$0xff]
    %v1013 = vld [vmem:[#allocation16 + $0x290] sm:$0xff]
    %v1014 = vld [vmem:[#allocation16 + $0x298] sm:$0xff]
    %v1015 = vld [vmem:[#allocation16 + $0x2a0] sm:$0xff]
    %v1016 = vld [vmem:[#allocation16 + $0x2a8] sm:$0xff]
    %v1017 = vld [vmem:[#allocation16 + $0x2b0] sm:$0xff]
    %v1018 = vld [vmem:[#allocation16 + $0x2b8] sm:$0xff]
    %v1019 = vld [vmem:[#allocation16 + $0x2c0] sm:$0xff]
    %v1020 = vld [vmem:[#allocation16 + $0x2c8] sm:$0xff]
    %v1021 = vld [vmem:[#allocation16 + $0x2d0] sm:$0xff]
    %v1022 = vld [vmem:[#allocation16 + $0x2d8] sm:$0xff]
    %v1023 = vld [vmem:[#allocation16 + $0x2e0] sm:$0xff]
    %v1024 = vld [vmem:[#allocation16 + $0x2e8] sm:$0xff]
    %v1025 = vld [vmem:[#allocation16 + $0x2f0] sm:$0xff]
    %v1026 = vld [vmem:[#allocation16 + $0x2f8] sm:$0xff]
    %v1027 = vld [vmem:[#allocation16 + $0x300] sm:$0xff]
    %v1028 = vld [vmem:[#allocation16 + $0x308] sm:$0xff]
    %v1029 = vld [vmem:[#allocation16 + $0x310] sm:$0xff]
    %v1030 = vld [vmem:[#allocation16 + $0x318] sm:$0xff]
    %v1031 = vld [vmem:[#allocation16 + $0x320] sm:$0xff]
    %v1032 = vld [vmem:[#allocation16 + $0x328] sm:$0xff]
    %v1033 = vld [vmem:[#allocation16 + $0x330] sm:$0xff]
    %v1034 = vld [vmem:[#allocation16 + $0x338] sm:$0xff]
    %v1035 = vld [vmem:[#allocation16 + $0x340] sm:$0xff]
    %v1036 = vld [vmem:[#allocation16 + $0x348] sm:$0xff]
    %v1037 = vld [vmem:[#allocation16 + $0x350] sm:$0xff]
    %v1038 = vld [vmem:[#allocation16 + $0x358] sm:$0xff]
    %v1039 = vld [vmem:[#allocation16 + $0x360] sm:$0xff]
    %v1040 = vld [vmem:[#allocation16 + $0x368] sm:$0xff]
    %v1041 = vld [vmem:[#allocation16 + $0x370] sm:$0xff]
    %v1042 = vld [vmem:[#allocation16 + $0x378] sm:$0xff]
    %v1043 = vld [vmem:[#allocation16 + $0x380] sm:$0xff]
    %v1044 = vld [vmem:[#allocation16 + $0x388] sm:$0xff]
    %v1045 = vld [vmem:[#allocation16 + $0x390] sm:$0xff]
    %v1046 = vld [vmem:[#allocation16 + $0x398] sm:$0xff]
    %v1047 = vld [vmem:[#allocation16 + $0x3a0] sm:$0xff]
    %v1048 = vld [vmem:[#allocation16 + $0x3a8] sm:$0xff]
    %v1049 = vld [vmem:[#allocation16 + $0x3b0] sm:$0xff]
    %v1050 = vld [vmem:[#allocation16 + $0x3b8] sm:$0xff]
    %v1051 = vld [vmem:[#allocation16 + $0x3c0] sm:$0xff]
    %v1052 = vld [vmem:[#allocation16 + $0x3c8] sm:$0xff]
    %v1053 = vld [vmem:[#allocation16 + $0x3d0] sm:$0xff]
    %v1054 = vld [vmem:[#allocation16 + $0x3d8] sm:$0xff]
    %v1055 = vld [vmem:[#allocation16 + $0x3e0] sm:$0xff]
    %v1056 = vld [vmem:[#allocation16 + $0x3e8] sm:$0xff]
    %v1057 = vld [vmem:[#allocation16 + $0x3f0] sm:$0xff]
    %v1058 = vld [vmem:[#allocation16 + $0x3f8] sm:$0xff]
    %v1059 = vld [vmem:[#allocation16 + $0x400] sm:$0xff]
    %v1060 = vld [vmem:[#allocation16 + $0x408] sm:$0xff]
    %v1061 = vld [vmem:[#allocation16 + $0x410] sm:$0xff]
    %v1062 = vld [vmem:[#allocation16 + $0x418] sm:$0xff]
    %v1063 = vld [vmem:[#allocation16 + $0x420] sm:$0xff]
    %v1064 = vld [vmem:[#allocation16 + $0x428] sm:$0xff]
    %v1065 = vld [vmem:[#allocation16 + $0x430] sm:$0xff]
    %v1066 = vld [vmem:[#allocation16 + $0x438] sm:$0xff]
    %v1067 = vld [vmem:[#allocation16 + $0x440] sm:$0xff]
    %v1068 = vld [vmem:[#allocation16 + $0x448] sm:$0xff]
    %v1069 = vld [vmem:[#allocation16 + $0x450] sm:$0xff]
    %v1070 = vld [vmem:[#allocation16 + $0x458] sm:$0xff]
    %v1071 = vld [vmem:[#allocation16 + $0x460] sm:$0xff]
    %v1072 = vld [vmem:[#allocation16 + $0x468] sm:$0xff]
    %v1073 = vld [vmem:[#allocation16 + $0x470] sm:$0xff]
    %v1074 = vld [vmem:[#allocation16 + $0x478] sm:$0xff]
    %v1075 = vld [vmem:[#allocation16 + $0x480] sm:$0xff]
    %v1076 = vld [vmem:[#allocation16 + $0x488] sm:$0xff]
    %v1077 = vld [vmem:[#allocation16 + $0x490] sm:$0xff]
    %v1078 = vld [vmem:[#allocation16 + $0x498] sm:$0xff]
    %v1079 = vld [vmem:[#allocation16 + $0x4a0] sm:$0xff]
    %v1080 = vld [vmem:[#allocation16 + $0x4a8] sm:$0xff]
    %v1081 = vld [vmem:[#allocation16 + $0x4b0] sm:$0xff]
    %v1082 = vld [vmem:[#allocation16 + $0x4b8] sm:$0xff]
    %v1083 = vld [vmem:[#allocation16 + $0x4c0] sm:$0xff]
    %v1084 = vld [vmem:[#allocation16 + $0x4c8] sm:$0xff]
    %v1085 = vld [vmem:[#allocation16 + $0x4d0] sm:$0xff]
    %v1086 = vld [vmem:[#allocation16 + $0x4d8] sm:$0xff]
    %v1087 = vld [vmem:[#allocation16 + $0x4e0] sm:$0xff]
    %v1088 = vld [vmem:[#allocation16 + $0x4e8] sm:$0xff]
    %v1089 = vld [vmem:[#allocation16 + $0x4f0] sm:$0xff]
    %v1090 = vld [vmem:[#allocation16 + $0x4f8] sm:$0xff]
    %v1091 = vld [vmem:[#allocation16 + $0x500] sm:$0xff]
    %v1092 = vld [vmem:[#allocation16 + $0x508] sm:$0xff]
    %v1093 = vld [vmem:[#allocation16 + $0x510] sm:$0xff]
    %v1094 = vld [vmem:[#allocation16 + $0x518] sm:$0xff]
    %v1095 = vld [vmem:[#allocation16 + $0x520] sm:$0xff]
    %v1096 = vld [vmem:[#allocation16 + $0x528] sm:$0xff]
    %v1097 = vld [vmem:[#allocation16 + $0x530] sm:$0xff]
    %v1098 = vld [vmem:[#allocation16 + $0x538] sm:$0xff]
    %v1099 = vld [vmem:[#allocation16 + $0x540] sm:$0xff]
    %v1100 = vld [vmem:[#allocation16 + $0x548] sm:$0xff]
    %v1101 = vld [vmem:[#allocation16 + $0x550] sm:$0xff]
    %v1102 = vld [vmem:[#allocation16 + $0x558] sm:$0xff]
    %v1103 = vld [vmem:[#allocation16 + $0x560] sm:$0xff]
    %v1104 = vld [vmem:[#allocation16 + $0x568] sm:$0xff]
    %v1105 = vld [vmem:[#allocation16 + $0x570] sm:$0xff]
    %v1106 = vld [vmem:[#allocation16 + $0x578] sm:$0xff]
    %v1107 = vld [vmem:[#allocation16 + $0x580] sm:$0xff]
    %v1108 = vld [vmem:[#allocation16 + $0x588] sm:$0xff]
    %v1109 = vld [vmem:[#allocation16 + $0x590] sm:$0xff]
    %v1110 = vld [vmem:[#allocation16 + $0x598] sm:$0xff]
    %v1111 = vld [vmem:[#allocation16 + $0x5a0] sm:$0xff]
    %v1112 = vld [vmem:[#allocation16 + $0x5a8] sm:$0xff]
    %v1113 = vld [vmem:[#allocation16 + $0x5b0] sm:$0xff]
    %v1114 = vld [vmem:[#allocation16 + $0x5b8] sm:$0xff]
    %v1115 = vld [vmem:[#allocation16 + $0x5c0] sm:$0xff]
    %v1116 = vld [vmem:[#allocation16 + $0x5c8] sm:$0xff]
    %v1117 = vld [vmem:[#allocation16 + $0x5d0] sm:$0xff]
    %v1118 = vld [vmem:[#allocation16 + $0x5d8] sm:$0xff]
    %v1119 = vld [vmem:[#allocation16 + $0x5e0] sm:$0xff]
    %v1120 = vld [vmem:[#allocation16 + $0x5e8] sm:$0xff]
    %v1121 = vld [vmem:[#allocation16 + $0x5f0] sm:$0xff]
    %v1122 = vld [vmem:[#allocation16 + $0x5f8] sm:$0xff]
    %v1123 = vld [vmem:[#allocation16 + $0x600] sm:$0xff]
    %v1124 = vld [vmem:[#allocation16 + $0x608] sm:$0xff]
    %v1125 = vld [vmem:[#allocation16 + $0x610] sm:$0xff]
    %v1126 = vld [vmem:[#allocation16 + $0x618] sm:$0xff]
    %v1127 = vld [vmem:[#allocation16 + $0x620] sm:$0xff]
    %v1128 = vld [vmem:[#allocation16 + $0x628] sm:$0xff]
    %v1129 = vld [vmem:[#allocation16 + $0x630] sm:$0xff]
    %v1130 = vld [vmem:[#allocation16 + $0x638] sm:$0xff]
    %v1131 = vld [vmem:[#allocation16 + $0x640] sm:$0xff]
    %v1132 = vld [vmem:[#allocation16 + $0x648] sm:$0xff]
    %v1133 = vld [vmem:[#allocation16 + $0x650] sm:$0xff]
    %v1134 = vld [vmem:[#allocation16 + $0x658] sm:$0xff]
    %v1135 = vld [vmem:[#allocation16 + $0x660] sm:$0xff]
    %v1136 = vld [vmem:[#allocation16 + $0x668] sm:$0xff]
    %v1137 = vld [vmem:[#allocation16 + $0x670] sm:$0xff]
    %v1138 = vld [vmem:[#allocation16 + $0x678] sm:$0xff]
    %v1139 = vld [vmem:[#allocation16 + $0x680] sm:$0xff]
    %v1140 = vld [vmem:[#allocation16 + $0x688] sm:$0xff]
    %v1141 = vld [vmem:[#allocation16 + $0x690] sm:$0xff]
    %v1142 = vld [vmem:[#allocation16 + $0x698] sm:$0xff]
    %v1143 = vld [vmem:[#allocation16 + $0x6a0] sm:$0xff]
    %v1144 = vld [vmem:[#allocation16 + $0x6a8] sm:$0xff]
    %v1145 = vld [vmem:[#allocation16 + $0x6b0] sm:$0xff]
    %v1146 = vld [vmem:[#allocation16 + $0x6b8] sm:$0xff]
    %v1147 = vld [vmem:[#allocation16 + $0x6c0] sm:$0xff]
    %v1148 = vld [vmem:[#allocation16 + $0x6c8] sm:$0xff]
    %v1149 = vld [vmem:[#allocation16 + $0x6d0] sm:$0xff]
    %v1150 = vld [vmem:[#allocation16 + $0x6d8] sm:$0xff]
    %v1151 = vld [vmem:[#allocation16 + $0x6e0] sm:$0xff]
    %v1152 = vld [vmem:[#allocation16 + $0x6e8] sm:$0xff]
    %v1153 = vld [vmem:[#allocation16 + $0x6f0] sm:$0xff]
    %v1154 = vld [vmem:[#allocation16 + $0x6f8] sm:$0xff]
    %v1155 = vld [vmem:[#allocation16 + $0x700] sm:$0xff]
    %v1156 = vld [vmem:[#allocation16 + $0x708] sm:$0xff]
    %v1157 = vld [vmem:[#allocation16 + $0x710] sm:$0xff]
    %v1158 = vld [vmem:[#allocation16 + $0x718] sm:$0xff]
    %v1159 = vld [vmem:[#allocation16 + $0x720] sm:$0xff]
    %v1160 = vld [vmem:[#allocation16 + $0x728] sm:$0xff]
    %v1161 = vld [vmem:[#allocation16 + $0x730] sm:$0xff]
    %v1162 = vld [vmem:[#allocation16 + $0x738] sm:$0xff]
    %v1163 = vld [vmem:[#allocation16 + $0x740] sm:$0xff]
    %v1164 = vld [vmem:[#allocation16 + $0x748] sm:$0xff]
    %v1165 = vld [vmem:[#allocation16 + $0x750] sm:$0xff]
    %v1166 = vld [vmem:[#allocation16 + $0x758] sm:$0xff]
    %v1167 = vld [vmem:[#allocation16 + $0x760] sm:$0xff]
    %v1168 = vld [vmem:[#allocation16 + $0x768] sm:$0xff]
    %v1169 = vld [vmem:[#allocation16 + $0x770] sm:$0xff]
    %v1170 = vld [vmem:[#allocation16 + $0x778] sm:$0xff]
    %v1171 = vld [vmem:[#allocation16 + $0x780] sm:$0xff]
    %v1172 = vld [vmem:[#allocation16 + $0x788] sm:$0xff]
    %v1173 = vld [vmem:[#allocation16 + $0x790] sm:$0xff]
    %v1174 = vld [vmem:[#allocation16 + $0x798] sm:$0xff]
    %v1175 = vld [vmem:[#allocation16 + $0x7a0] sm:$0xff]
    %v1176 = vld [vmem:[#allocation16 + $0x7a8] sm:$0xff]
    %v1177 = vld [vmem:[#allocation16 + $0x7b0] sm:$0xff]
    %v1178 = vld [vmem:[#allocation16 + $0x7b8] sm:$0xff]
    %v1179 = vld [vmem:[#allocation16 + $0x7c0] sm:$0xff]
    %v1180 = vld [vmem:[#allocation16 + $0x7c8] sm:$0xff]
    %v1181 = vld [vmem:[#allocation16 + $0x7d0] sm:$0xff]
    %v1182 = vld [vmem:[#allocation16 + $0x7d8] sm:$0xff]
    %v1183 = vld [vmem:[#allocation16 + $0x7e0] sm:$0xff]
    %v1184 = vld [vmem:[#allocation16 + $0x7e8] sm:$0xff]
    %v1185 = vld [vmem:[#allocation16 + $0x7f0] sm:$0xff]
    %v1186 = vld [vmem:[#allocation16 + $0x7f8] sm:$0xff]
    %v1187 = vld [vmem:[#allocation16 + $0x800] sm:$0xff]
    %v1188 = vld [vmem:[#allocation16 + $0x808] sm:$0xff]
    %v1189 = vld [vmem:[#allocation16 + $0x810] sm:$0xff]
    %v1190 = vld [vmem:[#allocation16 + $0x818] sm:$0xff]
    %v1191 = vld [vmem:[#allocation16 + $0x820] sm:$0xff]
    %v1192 = vld [vmem:[#allocation16 + $0x828] sm:$0xff]
    %v1193 = vld [vmem:[#allocation16 + $0x830] sm:$0xff]
    %v1194 = vld [vmem:[#allocation16 + $0x838] sm:$0xff]
    %v1195 = vld [vmem:[#allocation16 + $0x840] sm:$0xff]
    %v1196 = vld [vmem:[#allocation16 + $0x848] sm:$0xff]
    %v1197 = vld [vmem:[#allocation16 + $0x850] sm:$0xff]
    %v1198 = vld [vmem:[#allocation16 + $0x858] sm:$0xff]
    %v1199 = vld [vmem:[#allocation16 + $0x860] sm:$0xff]
    %v1200 = vld [vmem:[#allocation16 + $0x868] sm:$0xff]
    %v1201 = vld [vmem:[#allocation16 + $0x870] sm:$0xff]
    %v1202 = vld [vmem:[#allocation16 + $0x878] sm:$0xff]
    %v1203 = vld [vmem:[#allocation16 + $0x880] sm:$0xff]
    %v1204 = vld [vmem:[#allocation16 + $0x888] sm:$0xff]
    %v1205 = vld [vmem:[#allocation16 + $0x890] sm:$0xff]
    %v1206 = vld [vmem:[#allocation16 + $0x898] sm:$0xff]
    %v1207 = vld [vmem:[#allocation16 + $0x8a0] sm:$0xff]
    %v1208 = vld [vmem:[#allocation16 + $0x8a8] sm:$0xff]
    %v1209 = vld [vmem:[#allocation16 + $0x8b0] sm:$0xff]
    %v1210 = vld [vmem:[#allocation16 + $0x8b8] sm:$0xff]
    %v1211 = vld [vmem:[#allocation16 + $0x8c0] sm:$0xff]
    %v1212 = vld [vmem:[#allocation16 + $0x8c8] sm:$0xff]
    %v1213 = vld [vmem:[#allocation16 + $0x8d0] sm:$0xff]
    %v1214 = vld [vmem:[#allocation16 + $0x8d8] sm:$0xff]
    %v1215 = vld [vmem:[#allocation16 + $0x8e0] sm:$0xff]
    %v1216 = vld [vmem:[#allocation16 + $0x8e8] sm:$0xff]
    %v1217 = vld [vmem:[#allocation16 + $0x8f0] sm:$0xff]
    %v1218 = vld [vmem:[#allocation16 + $0x8f8] sm:$0xff]
    %v1219 = vld [vmem:[#allocation16 + $0x900] sm:$0xff]
    %v1220 = vld [vmem:[#allocation16 + $0x908] sm:$0xff]
    %v1221 = vld [vmem:[#allocation16 + $0x910] sm:$0xff]
    %v1222 = vld [vmem:[#allocation16 + $0x918] sm:$0xff]
    %v1223 = vld [vmem:[#allocation16 + $0x920] sm:$0xff]
    %v1224 = vld [vmem:[#allocation16 + $0x928] sm:$0xff]
    %v1225 = vld [vmem:[#allocation16 + $0x930] sm:$0xff]
    %v1226 = vld [vmem:[#allocation16 + $0x938] sm:$0xff]
    %v1227 = vld [vmem:[#allocation16 + $0x940] sm:$0xff]
    %v1228 = vld [vmem:[#allocation16 + $0x948] sm:$0xff]
    %v1229 = vld [vmem:[#allocation16 + $0x950] sm:$0xff]
    %v1230 = vld [vmem:[#allocation16 + $0x958] sm:$0xff]
    %v1231 = vld [vmem:[#allocation16 + $0x960] sm:$0xff]
    %v1232 = vld [vmem:[#allocation16 + $0x968] sm:$0xff]
    %v1233 = vld [vmem:[#allocation16 + $0x970] sm:$0xff]
    %v1234 = vld [vmem:[#allocation16 + $0x978] sm:$0xff]
    %v1235 = vld [vmem:[#allocation16 + $0x980] sm:$0xff]
    %v1236 = vld [vmem:[#allocation16 + $0x988] sm:$0xff]
    %v1237 = vld [vmem:[#allocation16 + $0x990] sm:$0xff]
    %v1238 = vld [vmem:[#allocation16 + $0x998] sm:$0xff]
    %v1239 = vld [vmem:[#allocation16 + $0x9a0] sm:$0xff]
    %v1240 = vld [vmem:[#allocation16 + $0x9a8] sm:$0xff]
    %v1241 = vld [vmem:[#allocation16 + $0x9b0] sm:$0xff]
    %v1242 = vld [vmem:[#allocation16 + $0x9b8] sm:$0xff]
    %v1243 = vld [vmem:[#allocation16 + $0x9c0] sm:$0xff]
    %v1244 = vld [vmem:[#allocation16 + $0x9c8] sm:$0xff]
    %v1245 = vld [vmem:[#allocation16 + $0x9d0] sm:$0xff]
    %v1246 = vld [vmem:[#allocation16 + $0x9d8] sm:$0xff]
    %v1247 = vld [vmem:[#allocation16 + $0x9e0] sm:$0xff]
    %v1248 = vld [vmem:[#allocation16 + $0x9e8] sm:$0xff]
    %v1249 = vld [vmem:[#allocation16 + $0x9f0] sm:$0xff]
    %v1250 = vld [vmem:[#allocation16 + $0x9f8] sm:$0xff]
    %v1251 = vld [vmem:[#allocation16 + $0xa00] sm:$0xff]
    %v1252 = vld [vmem:[#allocation16 + $0xa08] sm:$0xff]
    %v1253 = vld [vmem:[#allocation16 + $0xa10] sm:$0xff]
    %v1254 = vld [vmem:[#allocation16 + $0xa18] sm:$0xff]
    %v1255 = vld [vmem:[#allocation16 + $0xa20] sm:$0xff]
    %v1256 = vld [vmem:[#allocation16 + $0xa28] sm:$0xff]
    %v1257 = vld [vmem:[#allocation16 + $0xa30] sm:$0xff]
    %v1258 = vld [vmem:[#allocation16 + $0xa38] sm:$0xff]
    %v1259 = vld [vmem:[#allocation16 + $0xa40] sm:$0xff]
    %v1260 = vld [vmem:[#allocation16 + $0xa48] sm:$0xff]
    %v1261 = vld [vmem:[#allocation16 + $0xa50] sm:$0xff]
    %v1262 = vld [vmem:[#allocation16 + $0xa58] sm:$0xff]
    %v1263 = vld [vmem:[#allocation16 + $0xa60] sm:$0xff]
    %v1264 = vld [vmem:[#allocation16 + $0xa68] sm:$0xff]
    %v1265 = vld [vmem:[#allocation16 + $0xa70] sm:$0xff]
    %v1266 = vld [vmem:[#allocation16 + $0xa78] sm:$0xff]
    %v1267 = vld [vmem:[#allocation16 + $0xa80] sm:$0xff]
    %v1268 = vld [vmem:[#allocation16 + $0xa88] sm:$0xff]
    %v1269 = vld [vmem:[#allocation16 + $0xa90] sm:$0xff]
    %v1270 = vld [vmem:[#allocation16 + $0xa98] sm:$0xff]
    %v1271 = vld [vmem:[#allocation16 + $0xaa0] sm:$0xff]
    %v1272 = vld [vmem:[#allocation16 + $0xaa8] sm:$0xff]
    %v1273 = vld [vmem:[#allocation16 + $0xab0] sm:$0xff]
    %v1274 = vld [vmem:[#allocation16 + $0xab8] sm:$0xff]
    %v1275 = vld [vmem:[#allocation16 + $0xac0] sm:$0xff]
    %v1276 = vld [vmem:[#allocation16 + $0xac8] sm:$0xff]
    %v1277 = vld [vmem:[#allocation16 + $0xad0] sm:$0xff]
    %v1278 = vld [vmem:[#allocation16 + $0xad8] sm:$0xff]
    %v1279 = vld [vmem:[#allocation16 + $0xae0] sm:$0xff]
    %v1280 = vld [vmem:[#allocation16 + $0xae8] sm:$0xff]
    %v1281 = vld [vmem:[#allocation16 + $0xaf0] sm:$0xff]
    %v1282 = vld [vmem:[#allocation16 + $0xaf8] sm:$0xff]
    %v1283 = vld [vmem:[#allocation16 + $0xb00] sm:$0xff]
    %v1284 = vld [vmem:[#allocation16 + $0xb08] sm:$0xff]
    %v1285 = vld [vmem:[#allocation16 + $0xb10] sm:$0xff]
    %v1286 = vld [vmem:[#allocation16 + $0xb18] sm:$0xff]
    %v1287 = vld [vmem:[#allocation16 + $0xb20] sm:$0xff]
    %v1288 = vld [vmem:[#allocation16 + $0xb28] sm:$0xff]
    %v1289 = vld [vmem:[#allocation16 + $0xb30] sm:$0xff]
    %v1290 = vld [vmem:[#allocation16 + $0xb38] sm:$0xff]
    %v1291 = vld [vmem:[#allocation16 + $0xb40] sm:$0xff]
    %v1292 = vld [vmem:[#allocation16 + $0xb48] sm:$0xff]
    %v1293 = vld [vmem:[#allocation16 + $0xb50] sm:$0xff]
    %v1294 = vld [vmem:[#allocation16 + $0xb58] sm:$0xff]
    %v1295 = vld [vmem:[#allocation16 + $0xb60] sm:$0xff]
    %v1296 = vld [vmem:[#allocation16 + $0xb68] sm:$0xff]
    %v1297 = vld [vmem:[#allocation16 + $0xb70] sm:$0xff]
    %v1298 = vld [vmem:[#allocation16 + $0xb78] sm:$0xff]
    %v1299 = vld [vmem:[#allocation16 + $0xb80] sm:$0xff]
    %v1300 = vld [vmem:[#allocation16 + $0xb88] sm:$0xff]
    %v1301 = vld [vmem:[#allocation16 + $0xb90] sm:$0xff]
    %v1302 = vld [vmem:[#allocation16 + $0xb98] sm:$0xff]
    %v1303 = vld [vmem:[#allocation16 + $0xba0] sm:$0xff]
    %v1304 = vld [vmem:[#allocation16 + $0xba8] sm:$0xff]
    %v1305 = vld [vmem:[#allocation16 + $0xbb0] sm:$0xff]
    %v1306 = vld [vmem:[#allocation16 + $0xbb8] sm:$0xff]
    %v1307 = vld [vmem:[#allocation16 + $0xbc0] sm:$0xff]
    %v1308 = vld [vmem:[#allocation16 + $0xbc8] sm:$0xff]
    %v1309 = vld [vmem:[#allocation16 + $0xbd0] sm:$0xff]
    %v1310 = vld [vmem:[#allocation16 + $0xbd8] sm:$0xff]
    %v1311 = vld [vmem:[#allocation16 + $0xbe0] sm:$0xff]
    %v1312 = vld [vmem:[#allocation16 + $0xbe8] sm:$0xff]
    %v1313 = vld [vmem:[#allocation16 + $0xbf0] sm:$0xff]
    %v1314 = vld [vmem:[#allocation16 + $0xbf8] sm:$0xff]
    %v1315 = vld [vmem:[#allocation16 + $0xc00] sm:$0xff]
    %v1316 = vld [vmem:[#allocation16 + $0xc08] sm:$0xff]
    %v1317 = vld [vmem:[#allocation16 + $0xc10] sm:$0xff]
    %v1318 = vld [vmem:[#allocation16 + $0xc18] sm:$0xff]
    %v1319 = vld [vmem:[#allocation16 + $0xc20] sm:$0xff]
    %v1320 = vld [vmem:[#allocation16 + $0xc28] sm:$0xff]
    %v1321 = vld [vmem:[#allocation16 + $0xc30] sm:$0xff]
    %v1322 = vld [vmem:[#allocation16 + $0xc38] sm:$0xff]
    %v1323 = vld [vmem:[#allocation16 + $0xc40] sm:$0xff]
    %v1324 = vld [vmem:[#allocation16 + $0xc48] sm:$0xff]
    %v1325 = vld [vmem:[#allocation16 + $0xc50] sm:$0xff]
    %v1326 = vld [vmem:[#allocation16 + $0xc58] sm:$0xff]
    %v1327 = vld [vmem:[#allocation16 + $0xc60] sm:$0xff]
    %v1328 = vld [vmem:[#allocation16 + $0xc68] sm:$0xff]
    %v1329 = vld [vmem:[#allocation16 + $0xc70] sm:$0xff]
    %v1330 = vld [vmem:[#allocation16 + $0xc78] sm:$0xff]
    %v1331 = vld [vmem:[#allocation16 + $0xc80] sm:$0xff]
    %v1332 = vld [vmem:[#allocation16 + $0xc88] sm:$0xff]
    %v1333 = vld [vmem:[#allocation16 + $0xc90] sm:$0xff]
    %v1334 = vld [vmem:[#allocation16 + $0xc98] sm:$0xff]
    %v1335 = vld [vmem:[#allocation16 + $0xca0] sm:$0xff]
    %v1336 = vld [vmem:[#allocation16 + $0xca8] sm:$0xff]
    %v1337 = vld [vmem:[#allocation16 + $0xcb0] sm:$0xff]
    %v1338 = vld [vmem:[#allocation16 + $0xcb8] sm:$0xff]
    %v1339 = vld [vmem:[#allocation16 + $0xcc0] sm:$0xff]
    %v1340 = vld [vmem:[#allocation16 + $0xcc8] sm:$0xff]
    %v1341 = vld [vmem:[#allocation16 + $0xcd0] sm:$0xff]
    %v1342 = vld [vmem:[#allocation16 + $0xcd8] sm:$0xff]
    %v1343 = vld [vmem:[#allocation16 + $0xce0] sm:$0xff]
    %v1344 = vld [vmem:[#allocation16 + $0xce8] sm:$0xff]
    %v1345 = vld [vmem:[#allocation16 + $0xcf0] sm:$0xff]
    %v1346 = vld [vmem:[#allocation16 + $0xcf8] sm:$0xff]
    %v1347 = vld [vmem:[#allocation16 + $0xd00] sm:$0xff]
    %v1348 = vld [vmem:[#allocation16 + $0xd08] sm:$0xff]
    %v1349 = vld [vmem:[#allocation16 + $0xd10] sm:$0xff]
    %v1350 = vld [vmem:[#allocation16 + $0xd18] sm:$0xff]
    %v1351 = vld [vmem:[#allocation16 + $0xd20] sm:$0xff]
    %v1352 = vld [vmem:[#allocation16 + $0xd28] sm:$0xff]
    %v1353 = vld [vmem:[#allocation16 + $0xd30] sm:$0xff]
    %v1354 = vld [vmem:[#allocation16 + $0xd38] sm:$0xff]
    %v1355 = vld [vmem:[#allocation16 + $0xd40] sm:$0xff]
    %v1356 = vld [vmem:[#allocation16 + $0xd48] sm:$0xff]
    %v1357 = vld [vmem:[#allocation16 + $0xd50] sm:$0xff]
    %v1358 = vld [vmem:[#allocation16 + $0xd58] sm:$0xff]
    %v1359 = vld [vmem:[#allocation16 + $0xd60] sm:$0xff]
    %v1360 = vld [vmem:[#allocation16 + $0xd68] sm:$0xff]
    %v1361 = vld [vmem:[#allocation16 + $0xd70] sm:$0xff]
    %v1362 = vld [vmem:[#allocation16 + $0xd78] sm:$0xff]
    %v1363 = vld [vmem:[#allocation16 + $0xd80] sm:$0xff]
    %v1364 = vld [vmem:[#allocation16 + $0xd88] sm:$0xff]
    %v1365 = vld [vmem:[#allocation16 + $0xd90] sm:$0xff]
    %v1366 = vld [vmem:[#allocation16 + $0xd98] sm:$0xff]
    %v1367 = vld [vmem:[#allocation16 + $0xda0] sm:$0xff]
    %v1368 = vld [vmem:[#allocation16 + $0xda8] sm:$0xff]
    %v1369 = vld [vmem:[#allocation16 + $0xdb0] sm:$0xff]
    %v1370 = vld [vmem:[#allocation16 + $0xdb8] sm:$0xff]
    %v1371 = vld [vmem:[#allocation16 + $0xdc0] sm:$0xff]
    %v1372 = vld [vmem:[#allocation16 + $0xdc8] sm:$0xff]
    %v1373 = vld [vmem:[#allocation16 + $0xdd0] sm:$0xff]
    %v1374 = vld [vmem:[#allocation16 + $0xdd8] sm:$0xff]
    %v1375 = vld [vmem:[#allocation16 + $0xde0] sm:$0xff]
    %v1376 = vld [vmem:[#allocation16 + $0xde8] sm:$0xff]
    %v1377 = vld [vmem:[#allocation16 + $0xdf0] sm:$0xff]
    %v1378 = vld [vmem:[#allocation16 + $0xdf8] sm:$0xff]
    %v1379 = vld [vmem:[#allocation16 + $0xe00] sm:$0xff]
    %v1380 = vld [vmem:[#allocation16 + $0xe08] sm:$0xff]
    %v1381 = vld [vmem:[#allocation16 + $0xe10] sm:$0xff]
    %v1382 = vld [vmem:[#allocation16 + $0xe18] sm:$0xff]
    %v1383 = vld [vmem:[#allocation16 + $0xe20] sm:$0xff]
    %v1384 = vld [vmem:[#allocation16 + $0xe28] sm:$0xff]
    %v1385 = vld [vmem:[#allocation16 + $0xe30] sm:$0xff]
    %v1386 = vld [vmem:[#allocation16 + $0xe38] sm:$0xff]
    %v1387 = vld [vmem:[#allocation16 + $0xe40] sm:$0xff]
    %v1388 = vld [vmem:[#allocation16 + $0xe48] sm:$0xff]
    %v1389 = vld [vmem:[#allocation16 + $0xe50] sm:$0xff]
    %v1390 = vld [vmem:[#allocation16 + $0xe58] sm:$0xff]
    %v1391 = vld [vmem:[#allocation16 + $0xe60] sm:$0xff]
    %v1392 = vld [vmem:[#allocation16 + $0xe68] sm:$0xff]
    %v1393 = vld [vmem:[#allocation16 + $0xe70] sm:$0xff]
    %v1394 = vld [vmem:[#allocation16 + $0xe78] sm:$0xff]
    %v1395 = vld [vmem:[#allocation16 + $0xe80] sm:$0xff]
    %v1396 = vld [vmem:[#allocation16 + $0xe88] sm:$0xff]
    %v1397 = vld [vmem:[#allocation16 + $0xe90] sm:$0xff]
    %v1398 = vld [vmem:[#allocation16 + $0xe98] sm:$0xff]
    %v1399 = vld [vmem:[#allocation16 + $0xea0] sm:$0xff]
    %v1400 = vld [vmem:[#allocation16 + $0xea8] sm:$0xff]
    %v1401 = vld [vmem:[#allocation16 + $0xeb0] sm:$0xff]
    %v1402 = vld [vmem:[#allocation16 + $0xeb8] sm:$0xff]
    %v1403 = vld [vmem:[#allocation16 + $0xec0] sm:$0xff]
    %v1404 = vld [vmem:[#allocation16 + $0xec8] sm:$0xff]
    %v1405 = vld [vmem:[#allocation16 + $0xed0] sm:$0xff]
    %v1406 = vld [vmem:[#allocation16 + $0xed8] sm:$0xff]
    %v1407 = vld [vmem:[#allocation16 + $0xee0] sm:$0xff]
    %v1408 = vld [vmem:[#allocation16 + $0xee8] sm:$0xff]
    %v1409 = vld [vmem:[#allocation16 + $0xef0] sm:$0xff]
    %v1410 = vld [vmem:[#allocation16 + $0xef8] sm:$0xff]
    %v1411 = vld [vmem:[#allocation16 + $0xf00] sm:$0xff]
    %v1412 = vld [vmem:[#allocation16 + $0xf08] sm:$0xff]
    %v1413 = vld [vmem:[#allocation16 + $0xf10] sm:$0xff]
    %v1414 = vld [vmem:[#allocation16 + $0xf18] sm:$0xff]
    %v1415 = vld [vmem:[#allocation16 + $0xf20] sm:$0xff]
    %v1416 = vld [vmem:[#allocation16 + $0xf28] sm:$0xff]
    %v1417 = vld [vmem:[#allocation16 + $0xf30] sm:$0xff]
    %v1418 = vld [vmem:[#allocation16 + $0xf38] sm:$0xff]
    %v1419 = vld [vmem:[#allocation16 + $0xf40] sm:$0xff]
    %v1420 = vld [vmem:[#allocation16 + $0xf48] sm:$0xff]
    %v1421 = vld [vmem:[#allocation16 + $0xf50] sm:$0xff]
    %v1422 = vld [vmem:[#allocation16 + $0xf58] sm:$0xff]
    %v1423 = vld [vmem:[#allocation16 + $0xf60] sm:$0xff]
    %v1424 = vld [vmem:[#allocation16 + $0xf68] sm:$0xff]
    %v1425 = vld [vmem:[#allocation16 + $0xf70] sm:$0xff]
    %v1426 = vld [vmem:[#allocation16 + $0xf78] sm:$0xff]
    %v1427 = vld [vmem:[#allocation16 + $0xf80] sm:$0xff]
    %v1428 = vld [vmem:[#allocation16 + $0xf88] sm:$0xff]
    %v1429 = vld [vmem:[#allocation16 + $0xf90] sm:$0xff]
    %v1430 = vld [vmem:[#allocation16 + $0xf98] sm:$0xff]
    %v1431 = vld [vmem:[#allocation16 + $0xfa0] sm:$0xff]
    %v1432 = vld [vmem:[#allocation16 + $0xfa8] sm:$0xff]
    %v1433 = vld [vmem:[#allocation16 + $0xfb0] sm:$0xff]
    %v1434 = vld [vmem:[#allocation16 + $0xfb8] sm:$0xff]
    %v1435 = vld [vmem:[#allocation16 + $0xfc0] sm:$0xff]
    %v1436 = vld [vmem:[#allocation16 + $0xfc8] sm:$0xff]
    %v1437 = vld [vmem:[#allocation16 + $0xfd0] sm:$0xff]
    %v1438 = vld [vmem:[#allocation16 + $0xfd8] sm:$0xff]
    %v1439 = vld [vmem:[#allocation16 + $0xfe0] sm:$0xff]
    %v1440 = vld [vmem:[#allocation16 + $0xfe8] sm:$0xff]
    %v1441 = vld [vmem:[#allocation16 + $0xff0] sm:$0xff]
    %v1442 = vld [vmem:[#allocation16 + $0xff8] sm:$0xff]
    %v1443 = vld [vmem:[#allocation8] sm:$0x3]
    %v1444 = vld [vmem:[#allocation18] sm:$0xff]
    %v1445 = vld [vmem:[#allocation18 + $0x8] sm:$0xff]
    %v1448 = vcombine.high %v1444, %v1444
    %v1450 = vunpack.c.l.s4 1983009808
    %v1451 = vunpack.c.0.s8 %v1450
    %v1452 = vlaneseq
    %v1453 = vshrl.u32 %v1452, 7
    %v1454 = vsub.s32 %v1451, %v1453
    %v1455 = vrot.slane %v1444, %v1454
    %v1457 = vunpack.c.l.s4 1983009808
    %v1458 = vunpack.c.0.s8 %v1457
    %v1459 = vlaneseq
    %v1460 = vshrl.u32 %v1459, 7
    %v1461 = vsub.s32 %v1458, %v1460
    %v1462 = vrot.slane %v1448, %v1461
    %v1463 = vcombine.high %v1455, %v1455
    %v1464 = vcombine.high %v1462, %v1462
    %v1465 = vcombine.high %v1445, %v1445
    %v1467 = vunpack.c.l.s4 1983009808
    %v1468 = vunpack.c.0.s8 %v1467
    %v1469 = vlaneseq
    %v1470 = vshrl.u32 %v1469, 7
    %v1471 = vsub.s32 %v1468, %v1470
    %v1472 = vrot.slane %v1445, %v1471
    %v1474 = vunpack.c.l.s4 1983009808
    %v1475 = vunpack.c.0.s8 %v1474
    %v1476 = vlaneseq
    %v1477 = vshrl.u32 %v1476, 7
    %v1478 = vsub.s32 %v1475, %v1477
    %v1479 = vrot.slane %v1465, %v1478
    %v1480 = vcombine.high %v1472, %v1472
    %v1481 = vcombine.high %v1479, %v1479
    %vm1482 = vcmask 15360
    %v1484 = vsel %vm1482, %v1443, 0
    %vm1486 = vcmask 1041408
    %v1487 = vsel %vm1486, %v1455, 0
    %v1489 = vsel %vm1486, %v1463, 0
    %v1491 = vsel %vm1486, %v1462, 0
    %v1493 = vsel %vm1486, %v1464, 0
    %v1495 = vsel %vm1486, %v1472, 0
    %v1497 = vsel %vm1486, %v1480, 0
    %v1499 = vsel %vm1486, %v1479, 0
    %v1501 = vsel %vm1486, %v1481, 0
    %1503 = vmatprep.subr.mxu0 0.0
    %1504 = vmatpush1.msra.mxu0 0.0
    %1505 = vmatprep.subr.mxu0 0.0
    %1506 = vmatpush1.msra.mxu0 0.0
    %1507 = vmatprep.subr.mxu0 0.0
    %1508 = vmatpush1.msra.mxu0 0.0
    %1509 = vmatprep.subr.mxu0 0.0
    %1510 = vmatpush1.msra.mxu0 0.0
    %1511 = vmatprep.subr.mxu0 0.0
    %1512 = vmatpush1.msra.mxu0 0.0
    %1513 = vmatprep.subr.mxu0 0.0
    %1514 = vmatpush1.msra.mxu0 0.0
    %1515 = vmatprep.subr.mxu0 0.0
    %1516 = vmatpush1.msra.mxu0 0.0
    %1517 = vmatprep.subr.mxu0 0.0
    %1518 = vmatpush1.msra.mxu0 0.0
    %1519 = vmatprep.subr.mxu0 0.0
    %1520 = vmatpush1.msra.mxu0 0.0
    %1521 = vmatprep.subr.mxu0 0.0
    %1522 = vmatpush1.msra.mxu0 0.0
    %1523 = vmatprep.subr.mxu0 0.0
    %1524 = vmatpush1.msra.mxu0 0.0
    %1525 = vmatprep.subr.mxu0 0.0
    %1526 = vmatpush1.msra.mxu0 0.0
    %1527 = vmatprep.subr.mxu0 0.0
    %1528 = vmatpush1.msra.mxu0 0.0
    %1529 = vmatprep.subr.mxu0 0.0
    %1530 = vmatpush1.msra.mxu0 0.0
    %1531 = vmatprep.subr.mxu0 0.0
    %1532 = vmatpush1.msra.mxu0 0.0
    %1533 = vmatprep.subr.mxu0 %v1489
    %1534 = vmatpush1.msra.mxu0 %v1487
    %1535 = vmatprep.subr.mxu0 0.0
    %1536 = vmatpush2.msra.mxu0 0.0
    %1537 = vmatprep.subr.mxu0 0.0
    %1538 = vmatpush2.msra.mxu0 0.0
    %1539 = vmatprep.subr.mxu0 0.0
    %1540 = vmatpush2.msra.mxu0 0.0
    %1541 = vmatprep.subr.mxu0 0.0
    %1542 = vmatpush2.msra.mxu0 0.0
    %1543 = vmatprep.subr.mxu0 0.0
    %1544 = vmatpush2.msra.mxu0 0.0
    %1545 = vmatprep.subr.mxu0 0.0
    %1546 = vmatpush2.msra.mxu0 0.0
    %1547 = vmatprep.subr.mxu0 0.0
    %1548 = vmatpush2.msra.mxu0 0.0
    %1549 = vmatprep.subr.mxu0 0.0
    %1550 = vmatpush2.msra.mxu0 0.0
    %1551 = vmatprep.subr.mxu0 0.0
    %1552 = vmatpush2.msra.mxu0 0.0
    %1553 = vmatprep.subr.mxu0 0.0
    %1554 = vmatpush2.msra.mxu0 0.0
    %1555 = vmatprep.subr.mxu0 0.0
    %1556 = vmatpush2.msra.mxu0 0.0
    %1557 = vmatprep.subr.mxu0 0.0
    %1558 = vmatpush2.msra.mxu0 0.0
    %1559 = vmatprep.subr.mxu0 0.0
    %1560 = vmatpush2.msra.mxu0 0.0
    %1561 = vmatprep.subr.mxu0 0.0
    %1562 = vmatpush2.msra.mxu0 0.0
    %1563 = vmatprep.subr.mxu0 0.0
    %1564 = vmatpush2.msra.mxu0 0.0
    %1565 = vmatprep.subr.mxu0 0.0
    %1566 = vmatpush2.msra.mxu0 0.0
    %1567 = vmatprep.mubr.f32.mxu0 0.0
    %1568 = vmatmul.mubr.f32.gmra.mxu0 %v1484
    %v1569 = vpop.f32.mrf.mxu0
    %v1570 = vadd.f32 0.0, %v1569
    %v1571 = vpop.f32.mrf.mxu0
    %v1572 = vadd.f32 0.0, %v1571
    %1573 = vdwg.mxu0
    %1574 = vmatprep.subr.mxu0 0.0
    %1575 = vmatpush1.msra.mxu0 0.0
    %1576 = vmatprep.subr.mxu0 0.0
    %1577 = vmatpush1.msra.mxu0 0.0
    %1578 = vmatprep.subr.mxu0 0.0
    %1579 = vmatpush1.msra.mxu0 0.0
    %1580 = vmatprep.subr.mxu0 0.0
    %1581 = vmatpush1.msra.mxu0 0.0
    %1582 = vmatprep.subr.mxu0 0.0
    %1583 = vmatpush1.msra.mxu0 0.0
    %1584 = vmatprep.subr.mxu0 0.0
    %1585 = vmatpush1.msra.mxu0 0.0
    %1586 = vmatprep.subr.mxu0 0.0
    %1587 = vmatpush1.msra.mxu0 0.0
    %1588 = vmatprep.subr.mxu0 0.0
    %1589 = vmatpush1.msra.mxu0 0.0
    %1590 = vmatprep.subr.mxu0 0.0
    %1591 = vmatpush1.msra.mxu0 0.0
    %1592 = vmatprep.subr.mxu0 0.0
    %1593 = vmatpush1.msra.mxu0 0.0
    %1594 = vmatprep.subr.mxu0 0.0
    %1595 = vmatpush1.msra.mxu0 0.0
    %1596 = vmatprep.subr.mxu0 0.0
    %1597 = vmatpush1.msra.mxu0 0.0
    %1598 = vmatprep.subr.mxu0 0.0
    %1599 = vmatpush1.msra.mxu0 0.0
    %1600 = vmatprep.subr.mxu0 0.0
    %1601 = vmatpush1.msra.mxu0 0.0
    %1602 = vmatprep.subr.mxu0 0.0
    %1603 = vmatpush1.msra.mxu0 0.0
    %1604 = vmatprep.subr.mxu0 %v1493
    %1605 = vmatpush1.msra.mxu0 %v1491
    %1606 = vmatprep.subr.mxu0 0.0
    %1607 = vmatpush2.msra.mxu0 0.0
    %1608 = vmatprep.subr.mxu0 0.0
    %1609 = vmatpush2.msra.mxu0 0.0
    %1610 = vmatprep.subr.mxu0 0.0
    %1611 = vmatpush2.msra.mxu0 0.0
    %1612 = vmatprep.subr.mxu0 0.0
    %1613 = vmatpush2.msra.mxu0 0.0
    %1614 = vmatprep.subr.mxu0 0.0
    %1615 = vmatpush2.msra.mxu0 0.0
    %1616 = vmatprep.subr.mxu0 0.0
    %1617 = vmatpush2.msra.mxu0 0.0
    %1618 = vmatprep.subr.mxu0 0.0
    %1619 = vmatpush2.msra.mxu0 0.0
    %1620 = vmatprep.subr.mxu0 0.0
    %1621 = vmatpush2.msra.mxu0 0.0
    %1622 = vmatprep.subr.mxu0 0.0
    %1623 = vmatpush2.msra.mxu0 0.0
    %1624 = vmatprep.subr.mxu0 0.0
    %1625 = vmatpush2.msra.mxu0 0.0
    %1626 = vmatprep.subr.mxu0 0.0
    %1627 = vmatpush2.msra.mxu0 0.0
    %1628 = vmatprep.subr.mxu0 0.0
    %1629 = vmatpush2.msra.mxu0 0.0
    %1630 = vmatprep.subr.mxu0 0.0
    %1631 = vmatpush2.msra.mxu0 0.0
    %1632 = vmatprep.subr.mxu0 0.0
    %1633 = vmatpush2.msra.mxu0 0.0
    %1634 = vmatprep.subr.mxu0 0.0
    %1635 = vmatpush2.msra.mxu0 0.0
    %1636 = vmatprep.subr.mxu0 0.0
    %1637 = vmatpush2.msra.mxu0 0.0
    %1638 = vmatprep.mubr.f32.mxu0 0.0
    %1639 = vmatmul.mubr.f32.gmra.mxu0 %v1484
    %v1640 = vpop.f32.mrf.mxu0
    %v1641 = vadd.f32 0.0, %v1640
    %v1642 = vpop.f32.mrf.mxu0
    %v1643 = vadd.f32 0.0, %v1642
    %1644 = vdwg.mxu0
    %1645 = vmatprep.subr.mxu0 0.0
    %1646 = vmatpush1.msra.mxu0 0.0
    %1647 = vmatprep.subr.mxu0 0.0
    %1648 = vmatpush1.msra.mxu0 0.0
    %1649 = vmatprep.subr.mxu0 0.0
    %1650 = vmatpush1.msra.mxu0 0.0
    %1651 = vmatprep.subr.mxu0 0.0
    %1652 = vmatpush1.msra.mxu0 0.0
    %1653 = vmatprep.subr.mxu0 0.0
    %1654 = vmatpush1.msra.mxu0 0.0
    %1655 = vmatprep.subr.mxu0 0.0
    %1656 = vmatpush1.msra.mxu0 0.0
    %1657 = vmatprep.subr.mxu0 0.0
    %1658 = vmatpush1.msra.mxu0 0.0
    %1659 = vmatprep.subr.mxu0 0.0
    %1660 = vmatpush1.msra.mxu0 0.0
    %1661 = vmatprep.subr.mxu0 0.0
    %1662 = vmatpush1.msra.mxu0 0.0
    %1663 = vmatprep.subr.mxu0 0.0
    %1664 = vmatpush1.msra.mxu0 0.0
    %1665 = vmatprep.subr.mxu0 0.0
    %1666 = vmatpush1.msra.mxu0 0.0
    %1667 = vmatprep.subr.mxu0 0.0
    %1668 = vmatpush1.msra.mxu0 0.0
    %1669 = vmatprep.subr.mxu0 0.0
    %1670 = vmatpush1.msra.mxu0 0.0
    %1671 = vmatprep.subr.mxu0 0.0
    %1672 = vmatpush1.msra.mxu0 0.0
    %1673 = vmatprep.subr.mxu0 0.0
    %1674 = vmatpush1.msra.mxu0 0.0
    %1675 = vmatprep.subr.mxu0 %v1497
    %1676 = vmatpush1.msra.mxu0 %v1495
    %1677 = vmatprep.subr.mxu0 0.0
    %1678 = vmatpush2.msra.mxu0 0.0
    %1679 = vmatprep.subr.mxu0 0.0
    %1680 = vmatpush2.msra.mxu0 0.0
    %1681 = vmatprep.subr.mxu0 0.0
    %1682 = vmatpush2.msra.mxu0 0.0
    %1683 = vmatprep.subr.mxu0 0.0
    %1684 = vmatpush2.msra.mxu0 0.0
    %1685 = vmatprep.subr.mxu0 0.0
    %1686 = vmatpush2.msra.mxu0 0.0
    %1687 = vmatprep.subr.mxu0 0.0
    %1688 = vmatpush2.msra.mxu0 0.0
    %1689 = vmatprep.subr.mxu0 0.0
    %1690 = vmatpush2.msra.mxu0 0.0
    %1691 = vmatprep.subr.mxu0 0.0
    %1692 = vmatpush2.msra.mxu0 0.0
    %1693 = vmatprep.subr.mxu0 0.0
    %1694 = vmatpush2.msra.mxu0 0.0
    %1695 = vmatprep.subr.mxu0 0.0
    %1696 = vmatpush2.msra.mxu0 0.0
    %1697 = vmatprep.subr.mxu0 0.0
    %1698 = vmatpush2.msra.mxu0 0.0
    %1699 = vmatprep.subr.mxu0 0.0
    %1700 = vmatpush2.msra.mxu0 0.0
    %1701 = vmatprep.subr.mxu0 0.0
    %1702 = vmatpush2.msra.mxu0 0.0
    %1703 = vmatprep.subr.mxu0 0.0
    %1704 = vmatpush2.msra.mxu0 0.0
    %1705 = vmatprep.subr.mxu0 0.0
    %1706 = vmatpush2.msra.mxu0 0.0
    %1707 = vmatprep.subr.mxu0 0.0
    %1708 = vmatpush2.msra.mxu0 0.0
    %1709 = vmatprep.mubr.f32.mxu0 0.0
    %1710 = vmatmul.mubr.f32.gmra.mxu0 %v1484
    %v1711 = vpop.f32.mrf.mxu0
    %v1712 = vadd.f32 0.0, %v1711
    %v1713 = vpop.f32.mrf.mxu0
    %v1714 = vadd.f32 0.0, %v1713
    %1715 = vdwg.mxu0
    %1716 = vmatprep.subr.mxu0 0.0
    %1717 = vmatpush1.msra.mxu0 0.0
    %1718 = vmatprep.subr.mxu0 0.0
    %1719 = vmatpush1.msra.mxu0 0.0
    %1720 = vmatprep.subr.mxu0 0.0
    %1721 = vmatpush1.msra.mxu0 0.0
    %1722 = vmatprep.subr.mxu0 0.0
    %1723 = vmatpush1.msra.mxu0 0.0
    %1724 = vmatprep.subr.mxu0 0.0
    %1725 = vmatpush1.msra.mxu0 0.0
    %1726 = vmatprep.subr.mxu0 0.0
    %1727 = vmatpush1.msra.mxu0 0.0
    %1728 = vmatprep.subr.mxu0 0.0
    %1729 = vmatpush1.msra.mxu0 0.0
    %1730 = vmatprep.subr.mxu0 0.0
    %1731 = vmatpush1.msra.mxu0 0.0
    %1732 = vmatprep.subr.mxu0 0.0
    %1733 = vmatpush1.msra.mxu0 0.0
    %1734 = vmatprep.subr.mxu0 0.0
    %1735 = vmatpush1.msra.mxu0 0.0
    %1736 = vmatprep.subr.mxu0 0.0
    %1737 = vmatpush1.msra.mxu0 0.0
    %1738 = vmatprep.subr.mxu0 0.0
    %1739 = vmatpush1.msra.mxu0 0.0
    %1740 = vmatprep.subr.mxu0 0.0
    %1741 = vmatpush1.msra.mxu0 0.0
    %1742 = vmatprep.subr.mxu0 0.0
    %1743 = vmatpush1.msra.mxu0 0.0
    %1744 = vmatprep.subr.mxu0 0.0
    %1745 = vmatpush1.msra.mxu0 0.0
    %1746 = vmatprep.subr.mxu0 %v1501
    %1747 = vmatpush1.msra.mxu0 %v1499
    %1748 = vmatprep.subr.mxu0 0.0
    %1749 = vmatpush2.msra.mxu0 0.0
    %1750 = vmatprep.subr.mxu0 0.0
    %1751 = vmatpush2.msra.mxu0 0.0
    %1752 = vmatprep.subr.mxu0 0.0
    %1753 = vmatpush2.msra.mxu0 0.0
    %1754 = vmatprep.subr.mxu0 0.0
    %1755 = vmatpush2.msra.mxu0 0.0
    %1756 = vmatprep.subr.mxu0 0.0
    %1757 = vmatpush2.msra.mxu0 0.0
    %1758 = vmatprep.subr.mxu0 0.0
    %1759 = vmatpush2.msra.mxu0 0.0
    %1760 = vmatprep.subr.mxu0 0.0
    %1761 = vmatpush2.msra.mxu0 0.0
    %1762 = vmatprep.subr.mxu0 0.0
    %1763 = vmatpush2.msra.mxu0 0.0
    %1764 = vmatprep.subr.mxu0 0.0
    %1765 = vmatpush2.msra.mxu0 0.0
    %1766 = vmatprep.subr.mxu0 0.0
    %1767 = vmatpush2.msra.mxu0 0.0
    %1768 = vmatprep.subr.mxu0 0.0
    %1769 = vmatpush2.msra.mxu0 0.0
    %1770 = vmatprep.subr.mxu0 0.0
    %1771 = vmatpush2.msra.mxu0 0.0
    %1772 = vmatprep.subr.mxu0 0.0
    %1773 = vmatpush2.msra.mxu0 0.0
    %1774 = vmatprep.subr.mxu0 0.0
    %1775 = vmatpush2.msra.mxu0 0.0
    %1776 = vmatprep.subr.mxu0 0.0
    %1777 = vmatpush2.msra.mxu0 0.0
    %1778 = vmatprep.subr.mxu0 0.0
    %1779 = vmatpush2.msra.mxu0 0.0
    %1780 = vmatprep.mubr.f32.mxu0 0.0
    %1781 = vmatmul.mubr.f32.gmra.mxu0 %v1484
    %v1782 = vpop.f32.mrf.mxu0
    %v1783 = vadd.f32 0.0, %v1782
    %v1784 = vpop.f32.mrf.mxu0
    %v1785 = vadd.f32 0.0, %v1784
    %1786 = vdwg.mxu0
    %1787 = vmatprep.subr.mxu0 %v1052
    %1788 = vmatpush1.msra.mxu0 %v1051
    %1789 = vmatprep.subr.mxu0 %v1044
    %1790 = vmatpush1.msra.mxu0 %v1043
    %1791 = vmatprep.subr.mxu0 %v1036
    %1792 = vmatpush1.msra.mxu0 %v1035
    %1793 = vmatprep.subr.mxu0 %v1028
    %1794 = vmatpush1.msra.mxu0 %v1027
    %1795 = vmatprep.subr.mxu0 %v1020
    %1796 = vmatpush1.msra.mxu0 %v1019
    %1797 = vmatprep.subr.mxu0 %v1012
    %1798 = vmatpush1.msra.mxu0 %v1011
    %1799 = vmatprep.subr.mxu0 %v1004
    %1800 = vmatpush1.msra.mxu0 %v1003
    %1801 = vmatprep.subr.mxu0 %v996
    %1802 = vmatpush1.msra.mxu0 %v995
    %1803 = vmatprep.subr.mxu0 %v988
    %1804 = vmatpush1.msra.mxu0 %v987
    %1805 = vmatprep.subr.mxu0 %v980
    %1806 = vmatpush1.msra.mxu0 %v979
    %1807 = vmatprep.subr.mxu0 %v972
    %1808 = vmatpush1.msra.mxu0 %v971
    %1809 = vmatprep.subr.mxu0 %v964
    %1810 = vmatpush1.msra.mxu0 %v963
    %1811 = vmatprep.subr.mxu0 %v956
    %1812 = vmatpush1.msra.mxu0 %v955
    %1813 = vmatprep.subr.mxu0 %v948
    %1814 = vmatpush1.msra.mxu0 %v947
    %1815 = vmatprep.subr.mxu0 %v940
    %1816 = vmatpush1.msra.mxu0 %v939
    %1817 = vmatprep.subr.mxu0 %v932
    %1818 = vmatpush1.msra.mxu0 %v931
    %1819 = vmatprep.subr.mxu0 %v1180
    %1820 = vmatpush2.msra.mxu0 %v1179
    %1821 = vmatprep.subr.mxu0 %v1172
    %1822 = vmatpush2.msra.mxu0 %v1171
    %1823 = vmatprep.subr.mxu0 %v1164
    %1824 = vmatpush2.msra.mxu0 %v1163
    %1825 = vmatprep.subr.mxu0 %v1156
    %1826 = vmatpush2.msra.mxu0 %v1155
    %1827 = vmatprep.subr.mxu0 %v1148
    %1828 = vmatpush2.msra.mxu0 %v1147
    %1829 = vmatprep.subr.mxu0 %v1140
    %1830 = vmatpush2.msra.mxu0 %v1139
    %1831 = vmatprep.subr.mxu0 %v1132
    %1832 = vmatpush2.msra.mxu0 %v1131
    %1833 = vmatprep.subr.mxu0 %v1124
    %1834 = vmatpush2.msra.mxu0 %v1123
    %1835 = vmatprep.subr.mxu0 %v1116
    %1836 = vmatpush2.msra.mxu0 %v1115
    %1837 = vmatprep.subr.mxu0 %v1108
    %1838 = vmatpush2.msra.mxu0 %v1107
    %1839 = vmatprep.subr.mxu0 %v1100
    %1840 = vmatpush2.msra.mxu0 %v1099
    %1841 = vmatprep.subr.mxu0 %v1092
    %1842 = vmatpush2.msra.mxu0 %v1091
    %1843 = vmatprep.subr.mxu0 %v1084
    %1844 = vmatpush2.msra.mxu0 %v1083
    %1845 = vmatprep.subr.mxu0 %v1076
    %1846 = vmatpush2.msra.mxu0 %v1075
    %1847 = vmatprep.subr.mxu0 %v1068
    %1848 = vmatpush2.msra.mxu0 %v1067
    %1849 = vmatprep.subr.mxu0 %v1060
    %1850 = vmatpush2.msra.mxu0 %v1059
    %1851 = vmatprep.mubr.f32.mxu0 %v858
    %1852 = vmatmul.mubr.f32.gmra.mxu0 %v856
    %v1853 = vpop.f32.mrf.mxu0
    %v1854 = vadd.f32 %v1570, %v1853
    %v1855 = vpop.f32.mrf.mxu0
    %v1856 = vadd.f32 %v1572, %v1855
    %1857 = vdwg.mxu0
    %1858 = vmatprep.subr.mxu0 %v1308
    %1859 = vmatpush1.msra.mxu0 %v1307
    %1860 = vmatprep.subr.mxu0 %v1300
    %1861 = vmatpush1.msra.mxu0 %v1299
    %1862 = vmatprep.subr.mxu0 %v1292
    %1863 = vmatpush1.msra.mxu0 %v1291
    %1864 = vmatprep.subr.mxu0 %v1284
    %1865 = vmatpush1.msra.mxu0 %v1283
    %1866 = vmatprep.subr.mxu0 %v1276
    %1867 = vmatpush1.msra.mxu0 %v1275
    %1868 = vmatprep.subr.mxu0 %v1268
    %1869 = vmatpush1.msra.mxu0 %v1267
    %1870 = vmatprep.subr.mxu0 %v1260
    %1871 = vmatpush1.msra.mxu0 %v1259
    %1872 = vmatprep.subr.mxu0 %v1252
    %1873 = vmatpush1.msra.mxu0 %v1251
    %1874 = vmatprep.subr.mxu0 %v1244
    %1875 = vmatpush1.msra.mxu0 %v1243
    %1876 = vmatprep.subr.mxu0 %v1236
    %1877 = vmatpush1.msra.mxu0 %v1235
    %1878 = vmatprep.subr.mxu0 %v1228
    %1879 = vmatpush1.msra.mxu0 %v1227
    %1880 = vmatprep.subr.mxu0 %v1220
    %1881 = vmatpush1.msra.mxu0 %v1219
    %1882 = vmatprep.subr.mxu0 %v1212
    %1883 = vmatpush1.msra.mxu0 %v1211
    %1884 = vmatprep.subr.mxu0 %v1204
    %1885 = vmatpush1.msra.mxu0 %v1203
    %1886 = vmatprep.subr.mxu0 %v1196
    %1887 = vmatpush1.msra.mxu0 %v1195
    %1888 = vmatprep.subr.mxu0 %v1188
    %1889 = vmatpush1.msra.mxu0 %v1187
    %1890 = vmatprep.subr.mxu0 %v1436
    %1891 = vmatpush2.msra.mxu0 %v1435
    %1892 = vmatprep.subr.mxu0 %v1428
    %1893 = vmatpush2.msra.mxu0 %v1427
    %1894 = vmatprep.subr.mxu0 %v1420
    %1895 = vmatpush2.msra.mxu0 %v1419
    %1896 = vmatprep.subr.mxu0 %v1412
    %1897 = vmatpush2.msra.mxu0 %v1411
    %1898 = vmatprep.subr.mxu0 %v1404
    %1899 = vmatpush2.msra.mxu0 %v1403
    %1900 = vmatprep.subr.mxu0 %v1396
    %1901 = vmatpush2.msra.mxu0 %v1395
    %1902 = vmatprep.subr.mxu0 %v1388
    %1903 = vmatpush2.msra.mxu0 %v1387
    %1904 = vmatprep.subr.mxu0 %v1380
    %1905 = vmatpush2.msra.mxu0 %v1379
    %1906 = vmatprep.subr.mxu0 %v1372
    %1907 = vmatpush2.msra.mxu0 %v1371
    %1908 = vmatprep.subr.mxu0 %v1364
    %1909 = vmatpush2.msra.mxu0 %v1363
    %1910 = vmatprep.subr.mxu0 %v1356
    %1911 = vmatpush2.msra.mxu0 %v1355
    %1912 = vmatprep.subr.mxu0 %v1348
    %1913 = vmatpush2.msra.mxu0 %v1347
    %1914 = vmatprep.subr.mxu0 %v1340
    %1915 = vmatpush2.msra.mxu0 %v1339
    %1916 = vmatprep.subr.mxu0 %v1332
    %1917 = vmatpush2.msra.mxu0 %v1331
    %1918 = vmatprep.subr.mxu0 %v1324
    %1919 = vmatpush2.msra.mxu0 %v1323
    %1920 = vmatprep.subr.mxu0 %v1316
    %1921 = vmatpush2.msra.mxu0 %v1315
    %1922 = vmatprep.mubr.f32.mxu0 %v929
    %1923 = vmatmul.mubr.f32.gmra.mxu0 %v927
    %v1924 = vpop.f32.mrf.mxu0
    %v1925 = vadd.f32 %v1854, %v1924
    %v1926 = vpop.f32.mrf.mxu0
    %v1927 = vadd.f32 %v1856, %v1926
    %1928 = vdwg.mxu0
    %1929 = vmatprep.subr.mxu0 %v1054
    %1930 = vmatpush1.msra.mxu0 %v1053
    %1931 = vmatprep.subr.mxu0 %v1046
    %1932 = vmatpush1.msra.mxu0 %v1045
    %1933 = vmatprep.subr.mxu0 %v1038
    %1934 = vmatpush1.msra.mxu0 %v1037
    %1935 = vmatprep.subr.mxu0 %v1030
    %1936 = vmatpush1.msra.mxu0 %v1029
    %1937 = vmatprep.subr.mxu0 %v1022
    %1938 = vmatpush1.msra.mxu0 %v1021
    %1939 = vmatprep.subr.mxu0 %v1014
    %1940 = vmatpush1.msra.mxu0 %v1013
    %1941 = vmatprep.subr.mxu0 %v1006
    %1942 = vmatpush1.msra.mxu0 %v1005
    %1943 = vmatprep.subr.mxu0 %v998
    %1944 = vmatpush1.msra.mxu0 %v997
    %1945 = vmatprep.subr.mxu0 %v990
    %1946 = vmatpush1.msra.mxu0 %v989
    %1947 = vmatprep.subr.mxu0 %v982
    %1948 = vmatpush1.msra.mxu0 %v981
    %1949 = vmatprep.subr.mxu0 %v974
    %1950 = vmatpush1.msra.mxu0 %v973
    %1951 = vmatprep.subr.mxu0 %v966
    %1952 = vmatpush1.msra.mxu0 %v965
    %1953 = vmatprep.subr.mxu0 %v958
    %1954 = vmatpush1.msra.mxu0 %v957
    %1955 = vmatprep.subr.mxu0 %v950
    %1956 = vmatpush1.msra.mxu0 %v949
    %1957 = vmatprep.subr.mxu0 %v942
    %1958 = vmatpush1.msra.mxu0 %v941
    %1959 = vmatprep.subr.mxu0 %v934
    %1960 = vmatpush1.msra.mxu0 %v933
    %1961 = vmatprep.subr.mxu0 %v1182
    %1962 = vmatpush2.msra.mxu0 %v1181
    %1963 = vmatprep.subr.mxu0 %v1174
    %1964 = vmatpush2.msra.mxu0 %v1173
    %1965 = vmatprep.subr.mxu0 %v1166
    %1966 = vmatpush2.msra.mxu0 %v1165
    %1967 = vmatprep.subr.mxu0 %v1158
    %1968 = vmatpush2.msra.mxu0 %v1157
    %1969 = vmatprep.subr.mxu0 %v1150
    %1970 = vmatpush2.msra.mxu0 %v1149
    %1971 = vmatprep.subr.mxu0 %v1142
    %1972 = vmatpush2.msra.mxu0 %v1141
    %1973 = vmatprep.subr.mxu0 %v1134
    %1974 = vmatpush2.msra.mxu0 %v1133
    %1975 = vmatprep.subr.mxu0 %v1126
    %1976 = vmatpush2.msra.mxu0 %v1125
    %1977 = vmatprep.subr.mxu0 %v1118
    %1978 = vmatpush2.msra.mxu0 %v1117
    %1979 = vmatprep.subr.mxu0 %v1110
    %1980 = vmatpush2.msra.mxu0 %v1109
    %1981 = vmatprep.subr.mxu0 %v1102
    %1982 = vmatpush2.msra.mxu0 %v1101
    %1983 = vmatprep.subr.mxu0 %v1094
    %1984 = vmatpush2.msra.mxu0 %v1093
    %1985 = vmatprep.subr.mxu0 %v1086
    %1986 = vmatpush2.msra.mxu0 %v1085
    %1987 = vmatprep.subr.mxu0 %v1078
    %1988 = vmatpush2.msra.mxu0 %v1077
    %1989 = vmatprep.subr.mxu0 %v1070
    %1990 = vmatpush2.msra.mxu0 %v1069
    %1991 = vmatprep.subr.mxu0 %v1062
    %1992 = vmatpush2.msra.mxu0 %v1061
    %1993 = vmatprep.mubr.f32.mxu0 %v858
    %1994 = vmatmul.mubr.f32.gmra.mxu0 %v856
    %v1995 = vpop.f32.mrf.mxu0
    %v1996 = vadd.f32 %v1641, %v1995
    %v1997 = vpop.f32.mrf.mxu0
    %v1998 = vadd.f32 %v1643, %v1997
    %1999 = vdwg.mxu0
    %2000 = vmatprep.subr.mxu0 %v1310
    %2001 = vmatpush1.msra.mxu0 %v1309
    %2002 = vmatprep.subr.mxu0 %v1302
    %2003 = vmatpush1.msra.mxu0 %v1301
    %2004 = vmatprep.subr.mxu0 %v1294
    %2005 = vmatpush1.msra.mxu0 %v1293
    %2006 = vmatprep.subr.mxu0 %v1286
    %2007 = vmatpush1.msra.mxu0 %v1285
    %2008 = vmatprep.subr.mxu0 %v1278
    %2009 = vmatpush1.msra.mxu0 %v1277
    %2010 = vmatprep.subr.mxu0 %v1270
    %2011 = vmatpush1.msra.mxu0 %v1269
    %2012 = vmatprep.subr.mxu0 %v1262
    %2013 = vmatpush1.msra.mxu0 %v1261
    %2014 = vmatprep.subr.mxu0 %v1254
    %2015 = vmatpush1.msra.mxu0 %v1253
    %2016 = vmatprep.subr.mxu0 %v1246
    %2017 = vmatpush1.msra.mxu0 %v1245
    %2018 = vmatprep.subr.mxu0 %v1238
    %2019 = vmatpush1.msra.mxu0 %v1237
    %2020 = vmatprep.subr.mxu0 %v1230
    %2021 = vmatpush1.msra.mxu0 %v1229
    %2022 = vmatprep.subr.mxu0 %v1222
    %2023 = vmatpush1.msra.mxu0 %v1221
    %2024 = vmatprep.subr.mxu0 %v1214
    %2025 = vmatpush1.msra.mxu0 %v1213
    %2026 = vmatprep.subr.mxu0 %v1206
    %2027 = vmatpush1.msra.mxu0 %v1205
    %2028 = vmatprep.subr.mxu0 %v1198
    %2029 = vmatpush1.msra.mxu0 %v1197
    %2030 = vmatprep.subr.mxu0 %v1190
    %2031 = vmatpush1.msra.mxu0 %v1189
    %2032 = vmatprep.subr.mxu0 %v1438
    %2033 = vmatpush2.msra.mxu0 %v1437
    %2034 = vmatprep.subr.mxu0 %v1430
    %2035 = vmatpush2.msra.mxu0 %v1429
    %2036 = vmatprep.subr.mxu0 %v1422
    %2037 = vmatpush2.msra.mxu0 %v1421
    %2038 = vmatprep.subr.mxu0 %v1414
    %2039 = vmatpush2.msra.mxu0 %v1413
    %2040 = vmatprep.subr.mxu0 %v1406
    %2041 = vmatpush2.msra.mxu0 %v1405
    %2042 = vmatprep.subr.mxu0 %v1398
    %2043 = vmatpush2.msra.mxu0 %v1397
    %2044 = vmatprep.subr.mxu0 %v1390
    %2045 = vmatpush2.msra.mxu0 %v1389
    %2046 = vmatprep.subr.mxu0 %v1382
    %2047 = vmatpush2.msra.mxu0 %v1381
    %2048 = vmatprep.subr.mxu0 %v1374
    %2049 = vmatpush2.msra.mxu0 %v1373
    %2050 = vmatprep.subr.mxu0 %v1366
    %2051 = vmatpush2.msra.mxu0 %v1365
    %2052 = vmatprep.subr.mxu0 %v1358
    %2053 = vmatpush2.msra.mxu0 %v1357
    %2054 = vmatprep.subr.mxu0 %v1350
    %2055 = vmatpush2.msra.mxu0 %v1349
    %2056 = vmatprep.subr.mxu0 %v1342
    %2057 = vmatpush2.msra.mxu0 %v1341
    %2058 = vmatprep.subr.mxu0 %v1334
    %2059 = vmatpush2.msra.mxu0 %v1333
    %2060 = vmatprep.subr.mxu0 %v1326
    %2061 = vmatpush2.msra.mxu0 %v1325
    %2062 = vmatprep.subr.mxu0 %v1318
    %2063 = vmatpush2.msra.mxu0 %v1317
    %2064 = vmatprep.mubr.f32.mxu0 %v929
    %2065 = vmatmul.mubr.f32.gmra.mxu0 %v927
    %v2066 = vpop.f32.mrf.mxu0
    %v2067 = vadd.f32 %v1996, %v2066
    %v2068 = vpop.f32.mrf.mxu0
    %v2069 = vadd.f32 %v1998, %v2068
    %2070 = vdwg.mxu0
    %2071 = vmatprep.subr.mxu0 %v1056
    %2072 = vmatpush1.msra.mxu0 %v1055
    %2073 = vmatprep.subr.mxu0 %v1048
    %2074 = vmatpush1.msra.mxu0 %v1047
    %2075 = vmatprep.subr.mxu0 %v1040
    %2076 = vmatpush1.msra.mxu0 %v1039
    %2077 = vmatprep.subr.mxu0 %v1032
    %2078 = vmatpush1.msra.mxu0 %v1031
    %2079 = vmatprep.subr.mxu0 %v1024
    %2080 = vmatpush1.msra.mxu0 %v1023
    %2081 = vmatprep.subr.mxu0 %v1016
    %2082 = vmatpush1.msra.mxu0 %v1015
    %2083 = vmatprep.subr.mxu0 %v1008
    %2084 = vmatpush1.msra.mxu0 %v1007
    %2085 = vmatprep.subr.mxu0 %v1000
    %2086 = vmatpush1.msra.mxu0 %v999
    %2087 = vmatprep.subr.mxu0 %v992
    %2088 = vmatpush1.msra.mxu0 %v991
    %2089 = vmatprep.subr.mxu0 %v984
    %2090 = vmatpush1.msra.mxu0 %v983
    %2091 = vmatprep.subr.mxu0 %v976
    %2092 = vmatpush1.msra.mxu0 %v975
    %2093 = vmatprep.subr.mxu0 %v968
    %2094 = vmatpush1.msra.mxu0 %v967
    %2095 = vmatprep.subr.mxu0 %v960
    %2096 = vmatpush1.msra.mxu0 %v959
    %2097 = vmatprep.subr.mxu0 %v952
    %2098 = vmatpush1.msra.mxu0 %v951
    %2099 = vmatprep.subr.mxu0 %v944
    %2100 = vmatpush1.msra.mxu0 %v943
    %2101 = vmatprep.subr.mxu0 %v936
    %2102 = vmatpush1.msra.mxu0 %v935
    %2103 = vmatprep.subr.mxu0 %v1184
    %2104 = vmatpush2.msra.mxu0 %v1183
    %2105 = vmatprep.subr.mxu0 %v1176
    %2106 = vmatpush2.msra.mxu0 %v1175
    %2107 = vmatprep.subr.mxu0 %v1168
    %2108 = vmatpush2.msra.mxu0 %v1167
    %2109 = vmatprep.subr.mxu0 %v1160
    %2110 = vmatpush2.msra.mxu0 %v1159
    %2111 = vmatprep.subr.mxu0 %v1152
    %2112 = vmatpush2.msra.mxu0 %v1151
    %2113 = vmatprep.subr.mxu0 %v1144
    %2114 = vmatpush2.msra.mxu0 %v1143
    %2115 = vmatprep.subr.mxu0 %v1136
    %2116 = vmatpush2.msra.mxu0 %v1135
    %2117 = vmatprep.subr.mxu0 %v1128
    %2118 = vmatpush2.msra.mxu0 %v1127
    %2119 = vmatprep.subr.mxu0 %v1120
    %2120 = vmatpush2.msra.mxu0 %v1119
    %2121 = vmatprep.subr.mxu0 %v1112
    %2122 = vmatpush2.msra.mxu0 %v1111
    %2123 = vmatprep.subr.mxu0 %v1104
    %2124 = vmatpush2.msra.mxu0 %v1103
    %2125 = vmatprep.subr.mxu0 %v1096
    %2126 = vmatpush2.msra.mxu0 %v1095
    %2127 = vmatprep.subr.mxu0 %v1088
    %2128 = vmatpush2.msra.mxu0 %v1087
    %2129 = vmatprep.subr.mxu0 %v1080
    %2130 = vmatpush2.msra.mxu0 %v1079
    %2131 = vmatprep.subr.mxu0 %v1072
    %2132 = vmatpush2.msra.mxu0 %v1071
    %2133 = vmatprep.subr.mxu0 %v1064
    %2134 = vmatpush2.msra.mxu0 %v1063
    %2135 = vmatprep.mubr.f32.mxu0 %v858
    %2136 = vmatmul.mubr.f32.gmra.mxu0 %v856
    %v2137 = vpop.f32.mrf.mxu0
    %v2138 = vadd.f32 %v1712, %v2137
    %v2139 = vpop.f32.mrf.mxu0
    %v2140 = vadd.f32 %v1714, %v2139
    %2141 = vdwg.mxu0
    %2142 = vmatprep.subr.mxu0 %v1312
    %2143 = vmatpush1.msra.mxu0 %v1311
    %2144 = vmatprep.subr.mxu0 %v1304
    %2145 = vmatpush1.msra.mxu0 %v1303
    %2146 = vmatprep.subr.mxu0 %v1296
    %2147 = vmatpush1.msra.mxu0 %v1295
    %2148 = vmatprep.subr.mxu0 %v1288
    %2149 = vmatpush1.msra.mxu0 %v1287
    %2150 = vmatprep.subr.mxu0 %v1280
    %2151 = vmatpush1.msra.mxu0 %v1279
    %2152 = vmatprep.subr.mxu0 %v1272
    %2153 = vmatpush1.msra.mxu0 %v1271
    %2154 = vmatprep.subr.mxu0 %v1264
    %2155 = vmatpush1.msra.mxu0 %v1263
    %2156 = vmatprep.subr.mxu0 %v1256
    %2157 = vmatpush1.msra.mxu0 %v1255
    %2158 = vmatprep.subr.mxu0 %v1248
    %2159 = vmatpush1.msra.mxu0 %v1247
    %2160 = vmatprep.subr.mxu0 %v1240
    %2161 = vmatpush1.msra.mxu0 %v1239
    %2162 = vmatprep.subr.mxu0 %v1232
    %2163 = vmatpush1.msra.mxu0 %v1231
    %2164 = vmatprep.subr.mxu0 %v1224
    %2165 = vmatpush1.msra.mxu0 %v1223
    %2166 = vmatprep.subr.mxu0 %v1216
    %2167 = vmatpush1.msra.mxu0 %v1215
    %2168 = vmatprep.subr.mxu0 %v1208
    %2169 = vmatpush1.msra.mxu0 %v1207
    %2170 = vmatprep.subr.mxu0 %v1200
    %2171 = vmatpush1.msra.mxu0 %v1199
    %2172 = vmatprep.subr.mxu0 %v1192
    %2173 = vmatpush1.msra.mxu0 %v1191
    %2174 = vmatprep.subr.mxu0 %v1440
    %2175 = vmatpush2.msra.mxu0 %v1439
    %2176 = vmatprep.subr.mxu0 %v1432
    %2177 = vmatpush2.msra.mxu0 %v1431
    %2178 = vmatprep.subr.mxu0 %v1424
    %2179 = vmatpush2.msra.mxu0 %v1423
    %2180 = vmatprep.subr.mxu0 %v1416
    %2181 = vmatpush2.msra.mxu0 %v1415
    %2182 = vmatprep.subr.mxu0 %v1408
    %2183 = vmatpush2.msra.mxu0 %v1407
    %2184 = vmatprep.subr.mxu0 %v1400
    %2185 = vmatpush2.msra.mxu0 %v1399
    %2186 = vmatprep.subr.mxu0 %v1392
    %2187 = vmatpush2.msra.mxu0 %v1391
    %2188 = vmatprep.subr.mxu0 %v1384
    %2189 = vmatpush2.msra.mxu0 %v1383
    %2190 = vmatprep.subr.mxu0 %v1376
    %2191 = vmatpush2.msra.mxu0 %v1375
    %2192 = vmatprep.subr.mxu0 %v1368
    %2193 = vmatpush2.msra.mxu0 %v1367
    %2194 = vmatprep.subr.mxu0 %v1360
    %2195 = vmatpush2.msra.mxu0 %v1359
    %2196 = vmatprep.subr.mxu0 %v1352
    %2197 = vmatpush2.msra.mxu0 %v1351
    %2198 = vmatprep.subr.mxu0 %v1344
    %2199 = vmatpush2.msra.mxu0 %v1343
    %2200 = vmatprep.subr.mxu0 %v1336
    %2201 = vmatpush2.msra.mxu0 %v1335
    %2202 = vmatprep.subr.mxu0 %v1328
    %2203 = vmatpush2.msra.mxu0 %v1327
    %2204 = vmatprep.subr.mxu0 %v1320
    %2205 = vmatpush2.msra.mxu0 %v1319
    %2206 = vmatprep.mubr.f32.mxu0 %v929
    %2207 = vmatmul.mubr.f32.gmra.mxu0 %v927
    %v2208 = vpop.f32.mrf.mxu0
    %v2209 = vadd.f32 %v2138, %v2208
    %v2210 = vpop.f32.mrf.mxu0
    %v2211 = vadd.f32 %v2140, %v2210
    %2212 = vdwg.mxu0
    %2213 = vmatprep.subr.mxu0 %v1058
    %2214 = vmatpush1.msra.mxu0 %v1057
    %2215 = vmatprep.subr.mxu0 %v1050
    %2216 = vmatpush1.msra.mxu0 %v1049
    %2217 = vmatprep.subr.mxu0 %v1042
    %2218 = vmatpush1.msra.mxu0 %v1041
    %2219 = vmatprep.subr.mxu0 %v1034
    %2220 = vmatpush1.msra.mxu0 %v1033
    %2221 = vmatprep.subr.mxu0 %v1026
    %2222 = vmatpush1.msra.mxu0 %v1025
    %2223 = vmatprep.subr.mxu0 %v1018
    %2224 = vmatpush1.msra.mxu0 %v1017
    %2225 = vmatprep.subr.mxu0 %v1010
    %2226 = vmatpush1.msra.mxu0 %v1009
    %2227 = vmatprep.subr.mxu0 %v1002
    %2228 = vmatpush1.msra.mxu0 %v1001
    %2229 = vmatprep.subr.mxu0 %v994
    %2230 = vmatpush1.msra.mxu0 %v993
    %2231 = vmatprep.subr.mxu0 %v986
    %2232 = vmatpush1.msra.mxu0 %v985
    %2233 = vmatprep.subr.mxu0 %v978
    %2234 = vmatpush1.msra.mxu0 %v977
    %2235 = vmatprep.subr.mxu0 %v970
    %2236 = vmatpush1.msra.mxu0 %v969
    %2237 = vmatprep.subr.mxu0 %v962
    %2238 = vmatpush1.msra.mxu0 %v961
    %2239 = vmatprep.subr.mxu0 %v954
    %2240 = vmatpush1.msra.mxu0 %v953
    %2241 = vmatprep.subr.mxu0 %v946
    %2242 = vmatpush1.msra.mxu0 %v945
    %2243 = vmatprep.subr.mxu0 %v938
    %2244 = vmatpush1.msra.mxu0 %v937
    %2245 = vmatprep.subr.mxu0 %v1186
    %2246 = vmatpush2.msra.mxu0 %v1185
    %2247 = vmatprep.subr.mxu0 %v1178
    %2248 = vmatpush2.msra.mxu0 %v1177
    %2249 = vmatprep.subr.mxu0 %v1170
    %2250 = vmatpush2.msra.mxu0 %v1169
    %2251 = vmatprep.subr.mxu0 %v1162
    %2252 = vmatpush2.msra.mxu0 %v1161
    %2253 = vmatprep.subr.mxu0 %v1154
    %2254 = vmatpush2.msra.mxu0 %v1153
    %2255 = vmatprep.subr.mxu0 %v1146
    %2256 = vmatpush2.msra.mxu0 %v1145
    %2257 = vmatprep.subr.mxu0 %v1138
    %2258 = vmatpush2.msra.mxu0 %v1137
    %2259 = vmatprep.subr.mxu0 %v1130
    %2260 = vmatpush2.msra.mxu0 %v1129
    %2261 = vmatprep.subr.mxu0 %v1122
    %2262 = vmatpush2.msra.mxu0 %v1121
    %2263 = vmatprep.subr.mxu0 %v1114
    %2264 = vmatpush2.msra.mxu0 %v1113
    %2265 = vmatprep.subr.mxu0 %v1106
    %2266 = vmatpush2.msra.mxu0 %v1105
    %2267 = vmatprep.subr.mxu0 %v1098
    %2268 = vmatpush2.msra.mxu0 %v1097
    %2269 = vmatprep.subr.mxu0 %v1090
    %2270 = vmatpush2.msra.mxu0 %v1089
    %2271 = vmatprep.subr.mxu0 %v1082
    %2272 = vmatpush2.msra.mxu0 %v1081
    %2273 = vmatprep.subr.mxu0 %v1074
    %2274 = vmatpush2.msra.mxu0 %v1073
    %2275 = vmatprep.subr.mxu0 %v1066
    %2276 = vmatpush2.msra.mxu0 %v1065
    %2277 = vmatprep.mubr.f32.mxu0 %v858
    %2278 = vmatmul.mubr.f32.gmra.mxu0 %v856
    %v2279 = vpop.f32.mrf.mxu0
    %v2280 = vadd.f32 %v1783, %v2279
    %v2281 = vpop.f32.mrf.mxu0
    %v2282 = vadd.f32 %v1785, %v2281
    %2283 = vdwg.mxu0
    %2284 = vmatprep.subr.mxu0 %v1314
    %2285 = vmatpush1.msra.mxu0 %v1313
    %2286 = vmatprep.subr.mxu0 %v1306
    %2287 = vmatpush1.msra.mxu0 %v1305
    %2288 = vmatprep.subr.mxu0 %v1298
    %2289 = vmatpush1.msra.mxu0 %v1297
    %2290 = vmatprep.subr.mxu0 %v1290
    %2291 = vmatpush1.msra.mxu0 %v1289
    %2292 = vmatprep.subr.mxu0 %v1282
    %2293 = vmatpush1.msra.mxu0 %v1281
    %2294 = vmatprep.subr.mxu0 %v1274
    %2295 = vmatpush1.msra.mxu0 %v1273
    %2296 = vmatprep.subr.mxu0 %v1266
    %2297 = vmatpush1.msra.mxu0 %v1265
    %2298 = vmatprep.subr.mxu0 %v1258
    %2299 = vmatpush1.msra.mxu0 %v1257
    %2300 = vmatprep.subr.mxu0 %v1250
    %2301 = vmatpush1.msra.mxu0 %v1249
    %2302 = vmatprep.subr.mxu0 %v1242
    %2303 = vmatpush1.msra.mxu0 %v1241
    %2304 = vmatprep.subr.mxu0 %v1234
    %2305 = vmatpush1.msra.mxu0 %v1233
    %2306 = vmatprep.subr.mxu0 %v1226
    %2307 = vmatpush1.msra.mxu0 %v1225
    %2308 = vmatprep.subr.mxu0 %v1218
    %2309 = vmatpush1.msra.mxu0 %v1217
    %2310 = vmatprep.subr.mxu0 %v1210
    %2311 = vmatpush1.msra.mxu0 %v1209
    %2312 = vmatprep.subr.mxu0 %v1202
    %2313 = vmatpush1.msra.mxu0 %v1201
    %2314 = vmatprep.subr.mxu0 %v1194
    %2315 = vmatpush1.msra.mxu0 %v1193
    %2316 = vmatprep.subr.mxu0 %v1442
    %2317 = vmatpush2.msra.mxu0 %v1441
    %2318 = vmatprep.subr.mxu0 %v1434
    %2319 = vmatpush2.msra.mxu0 %v1433
    %2320 = vmatprep.subr.mxu0 %v1426
    %2321 = vmatpush2.msra.mxu0 %v1425
    %2322 = vmatprep.subr.mxu0 %v1418
    %2323 = vmatpush2.msra.mxu0 %v1417
    %2324 = vmatprep.subr.mxu0 %v1410
    %2325 = vmatpush2.msra.mxu0 %v1409
    %2326 = vmatprep.subr.mxu0 %v1402
    %2327 = vmatpush2.msra.mxu0 %v1401
    %2328 = vmatprep.subr.mxu0 %v1394
    %2329 = vmatpush2.msra.mxu0 %v1393
    %2330 = vmatprep.subr.mxu0 %v1386
    %2331 = vmatpush2.msra.mxu0 %v1385
    %2332 = vmatprep.subr.mxu0 %v1378
    %2333 = vmatpush2.msra.mxu0 %v1377
    %2334 = vmatprep.subr.mxu0 %v1370
    %2335 = vmatpush2.msra.mxu0 %v1369
    %2336 = vmatprep.subr.mxu0 %v1362
    %2337 = vmatpush2.msra.mxu0 %v1361
    %2338 = vmatprep.subr.mxu0 %v1354
    %2339 = vmatpush2.msra.mxu0 %v1353
    %2340 = vmatprep.subr.mxu0 %v1346
    %2341 = vmatpush2.msra.mxu0 %v1345
    %2342 = vmatprep.subr.mxu0 %v1338
    %2343 = vmatpush2.msra.mxu0 %v1337
    %2344 = vmatprep.subr.mxu0 %v1330
    %2345 = vmatpush2.msra.mxu0 %v1329
    %2346 = vmatprep.subr.mxu0 %v1322
    %2347 = vmatpush2.msra.mxu0 %v1321
    %2348 = vmatprep.mubr.f32.mxu0 %v929
    %2349 = vmatmul.mubr.f32.gmra.mxu0 %v927
    %v2350 = vpop.f32.mrf.mxu0
    %v2351 = vadd.f32 %v2280, %v2350
    %v2352 = vpop.f32.mrf.mxu0
    %v2353 = vadd.f32 %v2282, %v2352
    %2354 = vdwg.mxu0
    %v2355 = vld [vmem:[#allocation19] sm:$0xff]
    %v2357 = vlaneseq
    %v2358 = vshrl.u32 %v2357, 7
    %v2359 = vsub.s32 0, %v2358
    %v2360 = vrot.slane %v2355, %v2359
    %v2361 = vlaneseq
    %v2362 = vshrl.u32 %v2361, 7
    %v2363 = vsub.s32 1, %v2362
    %v2364 = vrot.slane %v2355, %v2363
    %v2365 = vlaneseq
    %v2366 = vshrl.u32 %v2365, 7
    %v2367 = vsub.s32 2, %v2366
    %v2368 = vrot.slane %v2355, %v2367
    %v2369 = vlaneseq
    %v2370 = vshrl.u32 %v2369, 7
    %v2371 = vsub.s32 3, %v2370
    %v2372 = vrot.slane %v2355, %v2371
    %v2373 = vlaneseq
    %v2374 = vshrl.u32 %v2373, 7
    %v2375 = vsub.s32 4, %v2374
    %v2376 = vrot.slane %v2355, %v2375
    %v2377 = vlaneseq
    %v2378 = vshrl.u32 %v2377, 7
    %v2379 = vsub.s32 5, %v2378
    %v2380 = vrot.slane %v2355, %v2379
    %v2381 = vlaneseq
    %v2382 = vshrl.u32 %v2381, 7
    %v2383 = vsub.s32 6, %v2382
    %v2384 = vrot.slane %v2355, %v2383
    %v2385 = vlaneseq
    %v2386 = vshrl.u32 %v2385, 7
    %v2387 = vsub.s32 7, %v2386
    %v2388 = vrot.slane %v2355, %v2387
    %v2397 = vadd.f32 %v1925, %v2360
    %v2398 = vadd.f32 %v1927, %v2364
    %v2399 = vadd.f32 %v2067, %v2368
    %v2400 = vadd.f32 %v2069, %v2372
    %v2401 = vadd.f32 %v2209, %v2376
    %v2402 = vadd.f32 %v2211, %v2380
    %v2403 = vadd.f32 %v2351, %v2384
    %v2404 = vadd.f32 %v2353, %v2388
    %v2405 = vld [vmem:[#allocation21] ss:$2 sm:$0xff]
    %v2407 = vlaneseq
    %v2408 = vshrl.u32 %v2407, 7
    %v2409 = vsub.s32 0, %v2408
    %v2410 = vrot.slane %v2405, %v2409
    %v2411 = vlaneseq
    %v2412 = vshrl.u32 %v2411, 7
    %v2413 = vsub.s32 1, %v2412
    %v2414 = vrot.slane %v2405, %v2413
    %v2415 = vlaneseq
    %v2416 = vshrl.u32 %v2415, 7
    %v2417 = vsub.s32 2, %v2416
    %v2418 = vrot.slane %v2405, %v2417
    %v2419 = vlaneseq
    %v2420 = vshrl.u32 %v2419, 7
    %v2421 = vsub.s32 3, %v2420
    %v2422 = vrot.slane %v2405, %v2421
    %v2423 = vlaneseq
    %v2424 = vshrl.u32 %v2423, 7
    %v2425 = vsub.s32 4, %v2424
    %v2426 = vrot.slane %v2405, %v2425
    %v2427 = vlaneseq
    %v2428 = vshrl.u32 %v2427, 7
    %v2429 = vsub.s32 5, %v2428
    %v2430 = vrot.slane %v2405, %v2429
    %v2431 = vlaneseq
    %v2432 = vshrl.u32 %v2431, 7
    %v2433 = vsub.s32 6, %v2432
    %v2434 = vrot.slane %v2405, %v2433
    %v2435 = vlaneseq
    %v2436 = vshrl.u32 %v2435, 7
    %v2437 = vsub.s32 7, %v2436
    %v2438 = vrot.slane %v2405, %v2437
    %v2447 = vmul.f32 %v2397, %v2410
    %v2448 = vmul.f32 %v2398, %v2414
    %v2449 = vmul.f32 %v2399, %v2418
    %v2450 = vmul.f32 %v2400, %v2422
    %v2451 = vmul.f32 %v2401, %v2426
    %v2452 = vmul.f32 %v2402, %v2430
    %v2453 = vmul.f32 %v2403, %v2434
    %v2454 = vmul.f32 %v2404, %v2438
    %s2455 = scalar_lea.vmem [#allocation21], 1
    %v2456 = vld [vmem:[%s2455] ss:$2 sm:$0xff]
    %v2458 = vlaneseq
    %v2459 = vshrl.u32 %v2458, 7
    %v2460 = vsub.s32 0, %v2459
    %v2461 = vrot.slane %v2456, %v2460
    %v2462 = vlaneseq
    %v2463 = vshrl.u32 %v2462, 7
    %v2464 = vsub.s32 1, %v2463
    %v2465 = vrot.slane %v2456, %v2464
    %v2466 = vlaneseq
    %v2467 = vshrl.u32 %v2466, 7
    %v2468 = vsub.s32 2, %v2467
    %v2469 = vrot.slane %v2456, %v2468
    %v2470 = vlaneseq
    %v2471 = vshrl.u32 %v2470, 7
    %v2472 = vsub.s32 3, %v2471
    %v2473 = vrot.slane %v2456, %v2472
    %v2474 = vlaneseq
    %v2475 = vshrl.u32 %v2474, 7
    %v2476 = vsub.s32 4, %v2475
    %v2477 = vrot.slane %v2456, %v2476
    %v2478 = vlaneseq
    %v2479 = vshrl.u32 %v2478, 7
    %v2480 = vsub.s32 5, %v2479
    %v2481 = vrot.slane %v2456, %v2480
    %v2482 = vlaneseq
    %v2483 = vshrl.u32 %v2482, 7
    %v2484 = vsub.s32 6, %v2483
    %v2485 = vrot.slane %v2456, %v2484
    %v2486 = vlaneseq
    %v2487 = vshrl.u32 %v2486, 7
    %v2488 = vsub.s32 7, %v2487
    %v2489 = vrot.slane %v2456, %v2488
    %v2498 = vadd.f32 %v2447, %v2461
    %v2499 = vadd.f32 %v2448, %v2465
    %v2500 = vadd.f32 %v2449, %v2469
    %v2501 = vadd.f32 %v2450, %v2473
    %v2502 = vadd.f32 %v2451, %v2477
    %v2503 = vadd.f32 %v2452, %v2481
    %v2504 = vadd.f32 %v2453, %v2485
    %v2505 = vadd.f32 %v2454, %v2489
    %v2506 = vmax.f32 %v2498, 0.0
    %v2507 = vmax.f32 %v2499, 0.0
    %v2508 = vmax.f32 %v2500, 0.0
    %v2509 = vmax.f32 %v2501, 0.0
    %v2510 = vmax.f32 %v2502, 0.0
    %v2511 = vmax.f32 %v2503, 0.0
    %v2512 = vmax.f32 %v2504, 0.0
    %v2513 = vmax.f32 %v2505, 0.0
    %v2514 = vld [vmem:[#allocation22] sm:$0xff]
    %v2515 = vld [vmem:[#allocation22 + $0x8] sm:$0xff]
    %v2516 = vld [vmem:[#allocation22 + $0x10] sm:$0xff]
    %v2517 = vld [vmem:[#allocation22 + $0x18] sm:$0xff]
    %v2518 = vld [vmem:[#allocation22 + $0x20] sm:$0xff]
    %v2519 = vld [vmem:[#allocation22 + $0x28] sm:$0xff]
    %v2520 = vld [vmem:[#allocation22 + $0x30] sm:$0xff]
    %v2521 = vld [vmem:[#allocation22 + $0x38] sm:$0xff]
    %v2522 = vld [vmem:[#allocation22 + $0x40] sm:$0xff]
    %v2523 = vld [vmem:[#allocation22 + $0x48] sm:$0xff]
    %v2524 = vld [vmem:[#allocation22 + $0x50] sm:$0xff]
    %v2525 = vld [vmem:[#allocation22 + $0x58] sm:$0xff]
    %v2526 = vld [vmem:[#allocation22 + $0x60] sm:$0xff]
    %v2527 = vld [vmem:[#allocation22 + $0x68] sm:$0xff]
    %v2528 = vld [vmem:[#allocation22 + $0x70] sm:$0xff]
    %v2529 = vld [vmem:[#allocation22 + $0x78] sm:$0xff]
    %v2530 = vld [vmem:[#allocation22 + $0x80] sm:$0xff]
    %v2531 = vld [vmem:[#allocation22 + $0x88] sm:$0xff]
    %v2532 = vld [vmem:[#allocation22 + $0x90] sm:$0xff]
    %v2533 = vld [vmem:[#allocation22 + $0x98] sm:$0xff]
    %v2534 = vld [vmem:[#allocation22 + $0xa0] sm:$0xff]
    %v2535 = vld [vmem:[#allocation22 + $0xa8] sm:$0xff]
    %v2536 = vld [vmem:[#allocation22 + $0xb0] sm:$0xff]
    %v2537 = vld [vmem:[#allocation22 + $0xb8] sm:$0xff]
    %v2538 = vld [vmem:[#allocation22 + $0xc0] sm:$0xff]
    %v2539 = vld [vmem:[#allocation22 + $0xc8] sm:$0xff]
    %v2540 = vld [vmem:[#allocation22 + $0xd0] sm:$0xff]
    %v2541 = vld [vmem:[#allocation22 + $0xd8] sm:$0xff]
    %v2542 = vld [vmem:[#allocation22 + $0xe0] sm:$0xff]
    %v2543 = vld [vmem:[#allocation22 + $0xe8] sm:$0xff]
    %v2544 = vld [vmem:[#allocation22 + $0xf0] sm:$0xff]
    %v2545 = vld [vmem:[#allocation22 + $0xf8] sm:$0xff]
    %v2546 = vld [vmem:[#allocation22 + $0x100] sm:$0xff]
    %v2547 = vld [vmem:[#allocation22 + $0x108] sm:$0xff]
    %v2548 = vld [vmem:[#allocation22 + $0x110] sm:$0xff]
    %v2549 = vld [vmem:[#allocation22 + $0x118] sm:$0xff]
    %v2550 = vld [vmem:[#allocation22 + $0x120] sm:$0xff]
    %v2551 = vld [vmem:[#allocation22 + $0x128] sm:$0xff]
    %v2552 = vld [vmem:[#allocation22 + $0x130] sm:$0xff]
    %v2553 = vld [vmem:[#allocation22 + $0x138] sm:$0xff]
    %v2554 = vld [vmem:[#allocation22 + $0x140] sm:$0xff]
    %v2555 = vld [vmem:[#allocation22 + $0x148] sm:$0xff]
    %v2556 = vld [vmem:[#allocation22 + $0x150] sm:$0xff]
    %v2557 = vld [vmem:[#allocation22 + $0x158] sm:$0xff]
    %v2558 = vld [vmem:[#allocation22 + $0x160] sm:$0xff]
    %v2559 = vld [vmem:[#allocation22 + $0x168] sm:$0xff]
    %v2560 = vld [vmem:[#allocation22 + $0x170] sm:$0xff]
    %v2561 = vld [vmem:[#allocation22 + $0x178] sm:$0xff]
    %v2562 = vld [vmem:[#allocation22 + $0x180] sm:$0xff]
    %v2563 = vld [vmem:[#allocation22 + $0x188] sm:$0xff]
    %v2564 = vld [vmem:[#allocation22 + $0x190] sm:$0xff]
    %v2565 = vld [vmem:[#allocation22 + $0x198] sm:$0xff]
    %v2566 = vld [vmem:[#allocation22 + $0x1a0] sm:$0xff]
    %v2567 = vld [vmem:[#allocation22 + $0x1a8] sm:$0xff]
    %v2568 = vld [vmem:[#allocation22 + $0x1b0] sm:$0xff]
    %v2569 = vld [vmem:[#allocation22 + $0x1b8] sm:$0xff]
    %v2570 = vld [vmem:[#allocation22 + $0x1c0] sm:$0xff]
    %v2571 = vld [vmem:[#allocation22 + $0x1c8] sm:$0xff]
    %v2572 = vld [vmem:[#allocation22 + $0x1d0] sm:$0xff]
    %v2573 = vld [vmem:[#allocation22 + $0x1d8] sm:$0xff]
    %v2574 = vld [vmem:[#allocation22 + $0x1e0] sm:$0xff]
    %v2575 = vld [vmem:[#allocation22 + $0x1e8] sm:$0xff]
    %v2576 = vld [vmem:[#allocation22 + $0x1f0] sm:$0xff]
    %v2577 = vld [vmem:[#allocation22 + $0x1f8] sm:$0xff]
    %v2578 = vld [vmem:[#allocation22 + $0x200] sm:$0xff]
    %v2579 = vld [vmem:[#allocation22 + $0x208] sm:$0xff]
    %v2580 = vld [vmem:[#allocation22 + $0x210] sm:$0xff]
    %v2581 = vld [vmem:[#allocation22 + $0x218] sm:$0xff]
    %v2582 = vld [vmem:[#allocation22 + $0x220] sm:$0xff]
    %v2583 = vld [vmem:[#allocation22 + $0x228] sm:$0xff]
    %v2584 = vld [vmem:[#allocation22 + $0x230] sm:$0xff]
    %v2585 = vld [vmem:[#allocation22 + $0x238] sm:$0xff]
    %v2586 = vld [vmem:[#allocation22 + $0x240] sm:$0xff]
    %v2587 = vld [vmem:[#allocation22 + $0x248] sm:$0xff]
    %v2588 = vld [vmem:[#allocation22 + $0x250] sm:$0xff]
    %v2589 = vld [vmem:[#allocation22 + $0x258] sm:$0xff]
    %v2590 = vld [vmem:[#allocation22 + $0x260] sm:$0xff]
    %v2591 = vld [vmem:[#allocation22 + $0x268] sm:$0xff]
    %v2592 = vld [vmem:[#allocation22 + $0x270] sm:$0xff]
    %v2593 = vld [vmem:[#allocation22 + $0x278] sm:$0xff]
    %v2594 = vld [vmem:[#allocation22 + $0x280] sm:$0xff]
    %v2595 = vld [vmem:[#allocation22 + $0x288] sm:$0xff]
    %v2596 = vld [vmem:[#allocation22 + $0x290] sm:$0xff]
    %v2597 = vld [vmem:[#allocation22 + $0x298] sm:$0xff]
    %v2598 = vld [vmem:[#allocation22 + $0x2a0] sm:$0xff]
    %v2599 = vld [vmem:[#allocation22 + $0x2a8] sm:$0xff]
    %v2600 = vld [vmem:[#allocation22 + $0x2b0] sm:$0xff]
    %v2601 = vld [vmem:[#allocation22 + $0x2b8] sm:$0xff]
    %v2602 = vld [vmem:[#allocation22 + $0x2c0] sm:$0xff]
    %v2603 = vld [vmem:[#allocation22 + $0x2c8] sm:$0xff]
    %v2604 = vld [vmem:[#allocation22 + $0x2d0] sm:$0xff]
    %v2605 = vld [vmem:[#allocation22 + $0x2d8] sm:$0xff]
    %v2606 = vld [vmem:[#allocation22 + $0x2e0] sm:$0xff]
    %v2607 = vld [vmem:[#allocation22 + $0x2e8] sm:$0xff]
    %v2608 = vld [vmem:[#allocation22 + $0x2f0] sm:$0xff]
    %v2609 = vld [vmem:[#allocation22 + $0x2f8] sm:$0xff]
    %v2610 = vld [vmem:[#allocation22 + $0x300] sm:$0xff]
    %v2611 = vld [vmem:[#allocation22 + $0x308] sm:$0xff]
    %v2612 = vld [vmem:[#allocation22 + $0x310] sm:$0xff]
    %v2613 = vld [vmem:[#allocation22 + $0x318] sm:$0xff]
    %v2614 = vld [vmem:[#allocation22 + $0x320] sm:$0xff]
    %v2615 = vld [vmem:[#allocation22 + $0x328] sm:$0xff]
    %v2616 = vld [vmem:[#allocation22 + $0x330] sm:$0xff]
    %v2617 = vld [vmem:[#allocation22 + $0x338] sm:$0xff]
    %v2618 = vld [vmem:[#allocation22 + $0x340] sm:$0xff]
    %v2619 = vld [vmem:[#allocation22 + $0x348] sm:$0xff]
    %v2620 = vld [vmem:[#allocation22 + $0x350] sm:$0xff]
    %v2621 = vld [vmem:[#allocation22 + $0x358] sm:$0xff]
    %v2622 = vld [vmem:[#allocation22 + $0x360] sm:$0xff]
    %v2623 = vld [vmem:[#allocation22 + $0x368] sm:$0xff]
    %v2624 = vld [vmem:[#allocation22 + $0x370] sm:$0xff]
    %v2625 = vld [vmem:[#allocation22 + $0x378] sm:$0xff]
    %v2626 = vld [vmem:[#allocation22 + $0x380] sm:$0xff]
    %v2627 = vld [vmem:[#allocation22 + $0x388] sm:$0xff]
    %v2628 = vld [vmem:[#allocation22 + $0x390] sm:$0xff]
    %v2629 = vld [vmem:[#allocation22 + $0x398] sm:$0xff]
    %v2630 = vld [vmem:[#allocation22 + $0x3a0] sm:$0xff]
    %v2631 = vld [vmem:[#allocation22 + $0x3a8] sm:$0xff]
    %v2632 = vld [vmem:[#allocation22 + $0x3b0] sm:$0xff]
    %v2633 = vld [vmem:[#allocation22 + $0x3b8] sm:$0xff]
    %v2634 = vld [vmem:[#allocation22 + $0x3c0] sm:$0xff]
    %v2635 = vld [vmem:[#allocation22 + $0x3c8] sm:$0xff]
    %v2636 = vld [vmem:[#allocation22 + $0x3d0] sm:$0xff]
    %v2637 = vld [vmem:[#allocation22 + $0x3d8] sm:$0xff]
    %v2638 = vld [vmem:[#allocation22 + $0x3e0] sm:$0xff]
    %v2639 = vld [vmem:[#allocation22 + $0x3e8] sm:$0xff]
    %v2640 = vld [vmem:[#allocation22 + $0x3f0] sm:$0xff]
    %v2641 = vld [vmem:[#allocation22 + $0x3f8] sm:$0xff]
    %v2642 = vld [vmem:[#allocation22 + $0x400] sm:$0xff]
    %v2643 = vld [vmem:[#allocation22 + $0x408] sm:$0xff]
    %v2644 = vld [vmem:[#allocation22 + $0x410] sm:$0xff]
    %v2645 = vld [vmem:[#allocation22 + $0x418] sm:$0xff]
    %v2646 = vld [vmem:[#allocation22 + $0x420] sm:$0xff]
    %v2647 = vld [vmem:[#allocation22 + $0x428] sm:$0xff]
    %v2648 = vld [vmem:[#allocation22 + $0x430] sm:$0xff]
    %v2649 = vld [vmem:[#allocation22 + $0x438] sm:$0xff]
    %v2650 = vld [vmem:[#allocation22 + $0x440] sm:$0xff]
    %v2651 = vld [vmem:[#allocation22 + $0x448] sm:$0xff]
    %v2652 = vld [vmem:[#allocation22 + $0x450] sm:$0xff]
    %v2653 = vld [vmem:[#allocation22 + $0x458] sm:$0xff]
    %v2654 = vld [vmem:[#allocation22 + $0x460] sm:$0xff]
    %v2655 = vld [vmem:[#allocation22 + $0x468] sm:$0xff]
    %v2656 = vld [vmem:[#allocation22 + $0x470] sm:$0xff]
    %v2657 = vld [vmem:[#allocation22 + $0x478] sm:$0xff]
    %v2658 = vld [vmem:[#allocation22 + $0x480] sm:$0xff]
    %v2659 = vld [vmem:[#allocation22 + $0x488] sm:$0xff]
    %v2660 = vld [vmem:[#allocation22 + $0x490] sm:$0xff]
    %v2661 = vld [vmem:[#allocation22 + $0x498] sm:$0xff]
    %v2662 = vld [vmem:[#allocation22 + $0x4a0] sm:$0xff]
    %v2663 = vld [vmem:[#allocation22 + $0x4a8] sm:$0xff]
    %v2664 = vld [vmem:[#allocation22 + $0x4b0] sm:$0xff]
    %v2665 = vld [vmem:[#allocation22 + $0x4b8] sm:$0xff]
    %v2666 = vld [vmem:[#allocation22 + $0x4c0] sm:$0xff]
    %v2667 = vld [vmem:[#allocation22 + $0x4c8] sm:$0xff]
    %v2668 = vld [vmem:[#allocation22 + $0x4d0] sm:$0xff]
    %v2669 = vld [vmem:[#allocation22 + $0x4d8] sm:$0xff]
    %v2670 = vld [vmem:[#allocation22 + $0x4e0] sm:$0xff]
    %v2671 = vld [vmem:[#allocation22 + $0x4e8] sm:$0xff]
    %v2672 = vld [vmem:[#allocation22 + $0x4f0] sm:$0xff]
    %v2673 = vld [vmem:[#allocation22 + $0x4f8] sm:$0xff]
    %v2674 = vld [vmem:[#allocation22 + $0x500] sm:$0xff]
    %v2675 = vld [vmem:[#allocation22 + $0x508] sm:$0xff]
    %v2676 = vld [vmem:[#allocation22 + $0x510] sm:$0xff]
    %v2677 = vld [vmem:[#allocation22 + $0x518] sm:$0xff]
    %v2678 = vld [vmem:[#allocation22 + $0x520] sm:$0xff]
    %v2679 = vld [vmem:[#allocation22 + $0x528] sm:$0xff]
    %v2680 = vld [vmem:[#allocation22 + $0x530] sm:$0xff]
    %v2681 = vld [vmem:[#allocation22 + $0x538] sm:$0xff]
    %v2682 = vld [vmem:[#allocation22 + $0x540] sm:$0xff]
    %v2683 = vld [vmem:[#allocation22 + $0x548] sm:$0xff]
    %v2684 = vld [vmem:[#allocation22 + $0x550] sm:$0xff]
    %v2685 = vld [vmem:[#allocation22 + $0x558] sm:$0xff]
    %v2686 = vld [vmem:[#allocation22 + $0x560] sm:$0xff]
    %v2687 = vld [vmem:[#allocation22 + $0x568] sm:$0xff]
    %v2688 = vld [vmem:[#allocation22 + $0x570] sm:$0xff]
    %v2689 = vld [vmem:[#allocation22 + $0x578] sm:$0xff]
    %v2690 = vld [vmem:[#allocation22 + $0x580] sm:$0xff]
    %v2691 = vld [vmem:[#allocation22 + $0x588] sm:$0xff]
    %v2692 = vld [vmem:[#allocation22 + $0x590] sm:$0xff]
    %v2693 = vld [vmem:[#allocation22 + $0x598] sm:$0xff]
    %v2694 = vld [vmem:[#allocation22 + $0x5a0] sm:$0xff]
    %v2695 = vld [vmem:[#allocation22 + $0x5a8] sm:$0xff]
    %v2696 = vld [vmem:[#allocation22 + $0x5b0] sm:$0xff]
    %v2697 = vld [vmem:[#allocation22 + $0x5b8] sm:$0xff]
    %v2698 = vld [vmem:[#allocation22 + $0x5c0] sm:$0xff]
    %v2699 = vld [vmem:[#allocation22 + $0x5c8] sm:$0xff]
    %v2700 = vld [vmem:[#allocation22 + $0x5d0] sm:$0xff]
    %v2701 = vld [vmem:[#allocation22 + $0x5d8] sm:$0xff]
    %v2702 = vld [vmem:[#allocation22 + $0x5e0] sm:$0xff]
    %v2703 = vld [vmem:[#allocation22 + $0x5e8] sm:$0xff]
    %v2704 = vld [vmem:[#allocation22 + $0x5f0] sm:$0xff]
    %v2705 = vld [vmem:[#allocation22 + $0x5f8] sm:$0xff]
    %v2706 = vld [vmem:[#allocation22 + $0x600] sm:$0xff]
    %v2707 = vld [vmem:[#allocation22 + $0x608] sm:$0xff]
    %v2708 = vld [vmem:[#allocation22 + $0x610] sm:$0xff]
    %v2709 = vld [vmem:[#allocation22 + $0x618] sm:$0xff]
    %v2710 = vld [vmem:[#allocation22 + $0x620] sm:$0xff]
    %v2711 = vld [vmem:[#allocation22 + $0x628] sm:$0xff]
    %v2712 = vld [vmem:[#allocation22 + $0x630] sm:$0xff]
    %v2713 = vld [vmem:[#allocation22 + $0x638] sm:$0xff]
    %v2714 = vld [vmem:[#allocation22 + $0x640] sm:$0xff]
    %v2715 = vld [vmem:[#allocation22 + $0x648] sm:$0xff]
    %v2716 = vld [vmem:[#allocation22 + $0x650] sm:$0xff]
    %v2717 = vld [vmem:[#allocation22 + $0x658] sm:$0xff]
    %v2718 = vld [vmem:[#allocation22 + $0x660] sm:$0xff]
    %v2719 = vld [vmem:[#allocation22 + $0x668] sm:$0xff]
    %v2720 = vld [vmem:[#allocation22 + $0x670] sm:$0xff]
    %v2721 = vld [vmem:[#allocation22 + $0x678] sm:$0xff]
    %v2722 = vld [vmem:[#allocation22 + $0x680] sm:$0xff]
    %v2723 = vld [vmem:[#allocation22 + $0x688] sm:$0xff]
    %v2724 = vld [vmem:[#allocation22 + $0x690] sm:$0xff]
    %v2725 = vld [vmem:[#allocation22 + $0x698] sm:$0xff]
    %v2726 = vld [vmem:[#allocation22 + $0x6a0] sm:$0xff]
    %v2727 = vld [vmem:[#allocation22 + $0x6a8] sm:$0xff]
    %v2728 = vld [vmem:[#allocation22 + $0x6b0] sm:$0xff]
    %v2729 = vld [vmem:[#allocation22 + $0x6b8] sm:$0xff]
    %v2730 = vld [vmem:[#allocation22 + $0x6c0] sm:$0xff]
    %v2731 = vld [vmem:[#allocation22 + $0x6c8] sm:$0xff]
    %v2732 = vld [vmem:[#allocation22 + $0x6d0] sm:$0xff]
    %v2733 = vld [vmem:[#allocation22 + $0x6d8] sm:$0xff]
    %v2734 = vld [vmem:[#allocation22 + $0x6e0] sm:$0xff]
    %v2735 = vld [vmem:[#allocation22 + $0x6e8] sm:$0xff]
    %v2736 = vld [vmem:[#allocation22 + $0x6f0] sm:$0xff]
    %v2737 = vld [vmem:[#allocation22 + $0x6f8] sm:$0xff]
    %v2738 = vld [vmem:[#allocation22 + $0x700] sm:$0xff]
    %v2739 = vld [vmem:[#allocation22 + $0x708] sm:$0xff]
    %v2740 = vld [vmem:[#allocation22 + $0x710] sm:$0xff]
    %v2741 = vld [vmem:[#allocation22 + $0x718] sm:$0xff]
    %v2742 = vld [vmem:[#allocation22 + $0x720] sm:$0xff]
    %v2743 = vld [vmem:[#allocation22 + $0x728] sm:$0xff]
    %v2744 = vld [vmem:[#allocation22 + $0x730] sm:$0xff]
    %v2745 = vld [vmem:[#allocation22 + $0x738] sm:$0xff]
    %v2746 = vld [vmem:[#allocation22 + $0x740] sm:$0xff]
    %v2747 = vld [vmem:[#allocation22 + $0x748] sm:$0xff]
    %v2748 = vld [vmem:[#allocation22 + $0x750] sm:$0xff]
    %v2749 = vld [vmem:[#allocation22 + $0x758] sm:$0xff]
    %v2750 = vld [vmem:[#allocation22 + $0x760] sm:$0xff]
    %v2751 = vld [vmem:[#allocation22 + $0x768] sm:$0xff]
    %v2752 = vld [vmem:[#allocation22 + $0x770] sm:$0xff]
    %v2753 = vld [vmem:[#allocation22 + $0x778] sm:$0xff]
    %v2754 = vld [vmem:[#allocation22 + $0x780] sm:$0xff]
    %v2755 = vld [vmem:[#allocation22 + $0x788] sm:$0xff]
    %v2756 = vld [vmem:[#allocation22 + $0x790] sm:$0xff]
    %v2757 = vld [vmem:[#allocation22 + $0x798] sm:$0xff]
    %v2758 = vld [vmem:[#allocation22 + $0x7a0] sm:$0xff]
    %v2759 = vld [vmem:[#allocation22 + $0x7a8] sm:$0xff]
    %v2760 = vld [vmem:[#allocation22 + $0x7b0] sm:$0xff]
    %v2761 = vld [vmem:[#allocation22 + $0x7b8] sm:$0xff]
    %v2762 = vld [vmem:[#allocation22 + $0x7c0] sm:$0xff]
    %v2763 = vld [vmem:[#allocation22 + $0x7c8] sm:$0xff]
    %v2764 = vld [vmem:[#allocation22 + $0x7d0] sm:$0xff]
    %v2765 = vld [vmem:[#allocation22 + $0x7d8] sm:$0xff]
    %v2766 = vld [vmem:[#allocation22 + $0x7e0] sm:$0xff]
    %v2767 = vld [vmem:[#allocation22 + $0x7e8] sm:$0xff]
    %v2768 = vld [vmem:[#allocation22 + $0x7f0] sm:$0xff]
    %v2769 = vld [vmem:[#allocation22 + $0x7f8] sm:$0xff]
    %v2770 = vld [vmem:[#allocation22 + $0x800] sm:$0xff]
    %v2771 = vld [vmem:[#allocation22 + $0x808] sm:$0xff]
    %v2772 = vld [vmem:[#allocation22 + $0x810] sm:$0xff]
    %v2773 = vld [vmem:[#allocation22 + $0x818] sm:$0xff]
    %v2774 = vld [vmem:[#allocation22 + $0x820] sm:$0xff]
    %v2775 = vld [vmem:[#allocation22 + $0x828] sm:$0xff]
    %v2776 = vld [vmem:[#allocation22 + $0x830] sm:$0xff]
    %v2777 = vld [vmem:[#allocation22 + $0x838] sm:$0xff]
    %v2778 = vld [vmem:[#allocation22 + $0x840] sm:$0xff]
    %v2779 = vld [vmem:[#allocation22 + $0x848] sm:$0xff]
    %v2780 = vld [vmem:[#allocation22 + $0x850] sm:$0xff]
    %v2781 = vld [vmem:[#allocation22 + $0x858] sm:$0xff]
    %v2782 = vld [vmem:[#allocation22 + $0x860] sm:$0xff]
    %v2783 = vld [vmem:[#allocation22 + $0x868] sm:$0xff]
    %v2784 = vld [vmem:[#allocation22 + $0x870] sm:$0xff]
    %v2785 = vld [vmem:[#allocation22 + $0x878] sm:$0xff]
    %v2786 = vld [vmem:[#allocation22 + $0x880] sm:$0xff]
    %v2787 = vld [vmem:[#allocation22 + $0x888] sm:$0xff]
    %v2788 = vld [vmem:[#allocation22 + $0x890] sm:$0xff]
    %v2789 = vld [vmem:[#allocation22 + $0x898] sm:$0xff]
    %v2790 = vld [vmem:[#allocation22 + $0x8a0] sm:$0xff]
    %v2791 = vld [vmem:[#allocation22 + $0x8a8] sm:$0xff]
    %v2792 = vld [vmem:[#allocation22 + $0x8b0] sm:$0xff]
    %v2793 = vld [vmem:[#allocation22 + $0x8b8] sm:$0xff]
    %v2794 = vld [vmem:[#allocation22 + $0x8c0] sm:$0xff]
    %v2795 = vld [vmem:[#allocation22 + $0x8c8] sm:$0xff]
    %v2796 = vld [vmem:[#allocation22 + $0x8d0] sm:$0xff]
    %v2797 = vld [vmem:[#allocation22 + $0x8d8] sm:$0xff]
    %v2798 = vld [vmem:[#allocation22 + $0x8e0] sm:$0xff]
    %v2799 = vld [vmem:[#allocation22 + $0x8e8] sm:$0xff]
    %v2800 = vld [vmem:[#allocation22 + $0x8f0] sm:$0xff]
    %v2801 = vld [vmem:[#allocation22 + $0x8f8] sm:$0xff]
    %v2802 = vld [vmem:[#allocation22 + $0x900] sm:$0xff]
    %v2803 = vld [vmem:[#allocation22 + $0x908] sm:$0xff]
    %v2804 = vld [vmem:[#allocation22 + $0x910] sm:$0xff]
    %v2805 = vld [vmem:[#allocation22 + $0x918] sm:$0xff]
    %v2806 = vld [vmem:[#allocation22 + $0x920] sm:$0xff]
    %v2807 = vld [vmem:[#allocation22 + $0x928] sm:$0xff]
    %v2808 = vld [vmem:[#allocation22 + $0x930] sm:$0xff]
    %v2809 = vld [vmem:[#allocation22 + $0x938] sm:$0xff]
    %v2810 = vld [vmem:[#allocation22 + $0x940] sm:$0xff]
    %v2811 = vld [vmem:[#allocation22 + $0x948] sm:$0xff]
    %v2812 = vld [vmem:[#allocation22 + $0x950] sm:$0xff]
    %v2813 = vld [vmem:[#allocation22 + $0x958] sm:$0xff]
    %v2814 = vld [vmem:[#allocation22 + $0x960] sm:$0xff]
    %v2815 = vld [vmem:[#allocation22 + $0x968] sm:$0xff]
    %v2816 = vld [vmem:[#allocation22 + $0x970] sm:$0xff]
    %v2817 = vld [vmem:[#allocation22 + $0x978] sm:$0xff]
    %v2818 = vld [vmem:[#allocation22 + $0x980] sm:$0xff]
    %v2819 = vld [vmem:[#allocation22 + $0x988] sm:$0xff]
    %v2820 = vld [vmem:[#allocation22 + $0x990] sm:$0xff]
    %v2821 = vld [vmem:[#allocation22 + $0x998] sm:$0xff]
    %v2822 = vld [vmem:[#allocation22 + $0x9a0] sm:$0xff]
    %v2823 = vld [vmem:[#allocation22 + $0x9a8] sm:$0xff]
    %v2824 = vld [vmem:[#allocation22 + $0x9b0] sm:$0xff]
    %v2825 = vld [vmem:[#allocation22 + $0x9b8] sm:$0xff]
    %v2826 = vld [vmem:[#allocation22 + $0x9c0] sm:$0xff]
    %v2827 = vld [vmem:[#allocation22 + $0x9c8] sm:$0xff]
    %v2828 = vld [vmem:[#allocation22 + $0x9d0] sm:$0xff]
    %v2829 = vld [vmem:[#allocation22 + $0x9d8] sm:$0xff]
    %v2830 = vld [vmem:[#allocation22 + $0x9e0] sm:$0xff]
    %v2831 = vld [vmem:[#allocation22 + $0x9e8] sm:$0xff]
    %v2832 = vld [vmem:[#allocation22 + $0x9f0] sm:$0xff]
    %v2833 = vld [vmem:[#allocation22 + $0x9f8] sm:$0xff]
    %v2834 = vld [vmem:[#allocation22 + $0xa00] sm:$0xff]
    %v2835 = vld [vmem:[#allocation22 + $0xa08] sm:$0xff]
    %v2836 = vld [vmem:[#allocation22 + $0xa10] sm:$0xff]
    %v2837 = vld [vmem:[#allocation22 + $0xa18] sm:$0xff]
    %v2838 = vld [vmem:[#allocation22 + $0xa20] sm:$0xff]
    %v2839 = vld [vmem:[#allocation22 + $0xa28] sm:$0xff]
    %v2840 = vld [vmem:[#allocation22 + $0xa30] sm:$0xff]
    %v2841 = vld [vmem:[#allocation22 + $0xa38] sm:$0xff]
    %v2842 = vld [vmem:[#allocation22 + $0xa40] sm:$0xff]
    %v2843 = vld [vmem:[#allocation22 + $0xa48] sm:$0xff]
    %v2844 = vld [vmem:[#allocation22 + $0xa50] sm:$0xff]
    %v2845 = vld [vmem:[#allocation22 + $0xa58] sm:$0xff]
    %v2846 = vld [vmem:[#allocation22 + $0xa60] sm:$0xff]
    %v2847 = vld [vmem:[#allocation22 + $0xa68] sm:$0xff]
    %v2848 = vld [vmem:[#allocation22 + $0xa70] sm:$0xff]
    %v2849 = vld [vmem:[#allocation22 + $0xa78] sm:$0xff]
    %v2850 = vld [vmem:[#allocation22 + $0xa80] sm:$0xff]
    %v2851 = vld [vmem:[#allocation22 + $0xa88] sm:$0xff]
    %v2852 = vld [vmem:[#allocation22 + $0xa90] sm:$0xff]
    %v2853 = vld [vmem:[#allocation22 + $0xa98] sm:$0xff]
    %v2854 = vld [vmem:[#allocation22 + $0xaa0] sm:$0xff]
    %v2855 = vld [vmem:[#allocation22 + $0xaa8] sm:$0xff]
    %v2856 = vld [vmem:[#allocation22 + $0xab0] sm:$0xff]
    %v2857 = vld [vmem:[#allocation22 + $0xab8] sm:$0xff]
    %v2858 = vld [vmem:[#allocation22 + $0xac0] sm:$0xff]
    %v2859 = vld [vmem:[#allocation22 + $0xac8] sm:$0xff]
    %v2860 = vld [vmem:[#allocation22 + $0xad0] sm:$0xff]
    %v2861 = vld [vmem:[#allocation22 + $0xad8] sm:$0xff]
    %v2862 = vld [vmem:[#allocation22 + $0xae0] sm:$0xff]
    %v2863 = vld [vmem:[#allocation22 + $0xae8] sm:$0xff]
    %v2864 = vld [vmem:[#allocation22 + $0xaf0] sm:$0xff]
    %v2865 = vld [vmem:[#allocation22 + $0xaf8] sm:$0xff]
    %v2866 = vld [vmem:[#allocation22 + $0xb00] sm:$0xff]
    %v2867 = vld [vmem:[#allocation22 + $0xb08] sm:$0xff]
    %v2868 = vld [vmem:[#allocation22 + $0xb10] sm:$0xff]
    %v2869 = vld [vmem:[#allocation22 + $0xb18] sm:$0xff]
    %v2870 = vld [vmem:[#allocation22 + $0xb20] sm:$0xff]
    %v2871 = vld [vmem:[#allocation22 + $0xb28] sm:$0xff]
    %v2872 = vld [vmem:[#allocation22 + $0xb30] sm:$0xff]
    %v2873 = vld [vmem:[#allocation22 + $0xb38] sm:$0xff]
    %v2874 = vld [vmem:[#allocation22 + $0xb40] sm:$0xff]
    %v2875 = vld [vmem:[#allocation22 + $0xb48] sm:$0xff]
    %v2876 = vld [vmem:[#allocation22 + $0xb50] sm:$0xff]
    %v2877 = vld [vmem:[#allocation22 + $0xb58] sm:$0xff]
    %v2878 = vld [vmem:[#allocation22 + $0xb60] sm:$0xff]
    %v2879 = vld [vmem:[#allocation22 + $0xb68] sm:$0xff]
    %v2880 = vld [vmem:[#allocation22 + $0xb70] sm:$0xff]
    %v2881 = vld [vmem:[#allocation22 + $0xb78] sm:$0xff]
    %v2882 = vld [vmem:[#allocation22 + $0xb80] sm:$0xff]
    %v2883 = vld [vmem:[#allocation22 + $0xb88] sm:$0xff]
    %v2884 = vld [vmem:[#allocation22 + $0xb90] sm:$0xff]
    %v2885 = vld [vmem:[#allocation22 + $0xb98] sm:$0xff]
    %v2886 = vld [vmem:[#allocation22 + $0xba0] sm:$0xff]
    %v2887 = vld [vmem:[#allocation22 + $0xba8] sm:$0xff]
    %v2888 = vld [vmem:[#allocation22 + $0xbb0] sm:$0xff]
    %v2889 = vld [vmem:[#allocation22 + $0xbb8] sm:$0xff]
    %v2890 = vld [vmem:[#allocation22 + $0xbc0] sm:$0xff]
    %v2891 = vld [vmem:[#allocation22 + $0xbc8] sm:$0xff]
    %v2892 = vld [vmem:[#allocation22 + $0xbd0] sm:$0xff]
    %v2893 = vld [vmem:[#allocation22 + $0xbd8] sm:$0xff]
    %v2894 = vld [vmem:[#allocation22 + $0xbe0] sm:$0xff]
    %v2895 = vld [vmem:[#allocation22 + $0xbe8] sm:$0xff]
    %v2896 = vld [vmem:[#allocation22 + $0xbf0] sm:$0xff]
    %v2897 = vld [vmem:[#allocation22 + $0xbf8] sm:$0xff]
    %v2898 = vld [vmem:[#allocation22 + $0xc00] sm:$0xff]
    %v2899 = vld [vmem:[#allocation22 + $0xc08] sm:$0xff]
    %v2900 = vld [vmem:[#allocation22 + $0xc10] sm:$0xff]
    %v2901 = vld [vmem:[#allocation22 + $0xc18] sm:$0xff]
    %v2902 = vld [vmem:[#allocation22 + $0xc20] sm:$0xff]
    %v2903 = vld [vmem:[#allocation22 + $0xc28] sm:$0xff]
    %v2904 = vld [vmem:[#allocation22 + $0xc30] sm:$0xff]
    %v2905 = vld [vmem:[#allocation22 + $0xc38] sm:$0xff]
    %v2906 = vld [vmem:[#allocation22 + $0xc40] sm:$0xff]
    %v2907 = vld [vmem:[#allocation22 + $0xc48] sm:$0xff]
    %v2908 = vld [vmem:[#allocation22 + $0xc50] sm:$0xff]
    %v2909 = vld [vmem:[#allocation22 + $0xc58] sm:$0xff]
    %v2910 = vld [vmem:[#allocation22 + $0xc60] sm:$0xff]
    %v2911 = vld [vmem:[#allocation22 + $0xc68] sm:$0xff]
    %v2912 = vld [vmem:[#allocation22 + $0xc70] sm:$0xff]
    %v2913 = vld [vmem:[#allocation22 + $0xc78] sm:$0xff]
    %v2914 = vld [vmem:[#allocation22 + $0xc80] sm:$0xff]
    %v2915 = vld [vmem:[#allocation22 + $0xc88] sm:$0xff]
    %v2916 = vld [vmem:[#allocation22 + $0xc90] sm:$0xff]
    %v2917 = vld [vmem:[#allocation22 + $0xc98] sm:$0xff]
    %v2918 = vld [vmem:[#allocation22 + $0xca0] sm:$0xff]
    %v2919 = vld [vmem:[#allocation22 + $0xca8] sm:$0xff]
    %v2920 = vld [vmem:[#allocation22 + $0xcb0] sm:$0xff]
    %v2921 = vld [vmem:[#allocation22 + $0xcb8] sm:$0xff]
    %v2922 = vld [vmem:[#allocation22 + $0xcc0] sm:$0xff]
    %v2923 = vld [vmem:[#allocation22 + $0xcc8] sm:$0xff]
    %v2924 = vld [vmem:[#allocation22 + $0xcd0] sm:$0xff]
    %v2925 = vld [vmem:[#allocation22 + $0xcd8] sm:$0xff]
    %v2926 = vld [vmem:[#allocation22 + $0xce0] sm:$0xff]
    %v2927 = vld [vmem:[#allocation22 + $0xce8] sm:$0xff]
    %v2928 = vld [vmem:[#allocation22 + $0xcf0] sm:$0xff]
    %v2929 = vld [vmem:[#allocation22 + $0xcf8] sm:$0xff]
    %v2930 = vld [vmem:[#allocation22 + $0xd00] sm:$0xff]
    %v2931 = vld [vmem:[#allocation22 + $0xd08] sm:$0xff]
    %v2932 = vld [vmem:[#allocation22 + $0xd10] sm:$0xff]
    %v2933 = vld [vmem:[#allocation22 + $0xd18] sm:$0xff]
    %v2934 = vld [vmem:[#allocation22 + $0xd20] sm:$0xff]
    %v2935 = vld [vmem:[#allocation22 + $0xd28] sm:$0xff]
    %v2936 = vld [vmem:[#allocation22 + $0xd30] sm:$0xff]
    %v2937 = vld [vmem:[#allocation22 + $0xd38] sm:$0xff]
    %v2938 = vld [vmem:[#allocation22 + $0xd40] sm:$0xff]
    %v2939 = vld [vmem:[#allocation22 + $0xd48] sm:$0xff]
    %v2940 = vld [vmem:[#allocation22 + $0xd50] sm:$0xff]
    %v2941 = vld [vmem:[#allocation22 + $0xd58] sm:$0xff]
    %v2942 = vld [vmem:[#allocation22 + $0xd60] sm:$0xff]
    %v2943 = vld [vmem:[#allocation22 + $0xd68] sm:$0xff]
    %v2944 = vld [vmem:[#allocation22 + $0xd70] sm:$0xff]
    %v2945 = vld [vmem:[#allocation22 + $0xd78] sm:$0xff]
    %v2946 = vld [vmem:[#allocation22 + $0xd80] sm:$0xff]
    %v2947 = vld [vmem:[#allocation22 + $0xd88] sm:$0xff]
    %v2948 = vld [vmem:[#allocation22 + $0xd90] sm:$0xff]
    %v2949 = vld [vmem:[#allocation22 + $0xd98] sm:$0xff]
    %v2950 = vld [vmem:[#allocation22 + $0xda0] sm:$0xff]
    %v2951 = vld [vmem:[#allocation22 + $0xda8] sm:$0xff]
    %v2952 = vld [vmem:[#allocation22 + $0xdb0] sm:$0xff]
    %v2953 = vld [vmem:[#allocation22 + $0xdb8] sm:$0xff]
    %v2954 = vld [vmem:[#allocation22 + $0xdc0] sm:$0xff]
    %v2955 = vld [vmem:[#allocation22 + $0xdc8] sm:$0xff]
    %v2956 = vld [vmem:[#allocation22 + $0xdd0] sm:$0xff]
    %v2957 = vld [vmem:[#allocation22 + $0xdd8] sm:$0xff]
    %v2958 = vld [vmem:[#allocation22 + $0xde0] sm:$0xff]
    %v2959 = vld [vmem:[#allocation22 + $0xde8] sm:$0xff]
    %v2960 = vld [vmem:[#allocation22 + $0xdf0] sm:$0xff]
    %v2961 = vld [vmem:[#allocation22 + $0xdf8] sm:$0xff]
    %v2962 = vld [vmem:[#allocation22 + $0xe00] sm:$0xff]
    %v2963 = vld [vmem:[#allocation22 + $0xe08] sm:$0xff]
    %v2964 = vld [vmem:[#allocation22 + $0xe10] sm:$0xff]
    %v2965 = vld [vmem:[#allocation22 + $0xe18] sm:$0xff]
    %v2966 = vld [vmem:[#allocation22 + $0xe20] sm:$0xff]
    %v2967 = vld [vmem:[#allocation22 + $0xe28] sm:$0xff]
    %v2968 = vld [vmem:[#allocation22 + $0xe30] sm:$0xff]
    %v2969 = vld [vmem:[#allocation22 + $0xe38] sm:$0xff]
    %v2970 = vld [vmem:[#allocation22 + $0xe40] sm:$0xff]
    %v2971 = vld [vmem:[#allocation22 + $0xe48] sm:$0xff]
    %v2972 = vld [vmem:[#allocation22 + $0xe50] sm:$0xff]
    %v2973 = vld [vmem:[#allocation22 + $0xe58] sm:$0xff]
    %v2974 = vld [vmem:[#allocation22 + $0xe60] sm:$0xff]
    %v2975 = vld [vmem:[#allocation22 + $0xe68] sm:$0xff]
    %v2976 = vld [vmem:[#allocation22 + $0xe70] sm:$0xff]
    %v2977 = vld [vmem:[#allocation22 + $0xe78] sm:$0xff]
    %v2978 = vld [vmem:[#allocation22 + $0xe80] sm:$0xff]
    %v2979 = vld [vmem:[#allocation22 + $0xe88] sm:$0xff]
    %v2980 = vld [vmem:[#allocation22 + $0xe90] sm:$0xff]
    %v2981 = vld [vmem:[#allocation22 + $0xe98] sm:$0xff]
    %v2982 = vld [vmem:[#allocation22 + $0xea0] sm:$0xff]
    %v2983 = vld [vmem:[#allocation22 + $0xea8] sm:$0xff]
    %v2984 = vld [vmem:[#allocation22 + $0xeb0] sm:$0xff]
    %v2985 = vld [vmem:[#allocation22 + $0xeb8] sm:$0xff]
    %v2986 = vld [vmem:[#allocation22 + $0xec0] sm:$0xff]
    %v2987 = vld [vmem:[#allocation22 + $0xec8] sm:$0xff]
    %v2988 = vld [vmem:[#allocation22 + $0xed0] sm:$0xff]
    %v2989 = vld [vmem:[#allocation22 + $0xed8] sm:$0xff]
    %v2990 = vld [vmem:[#allocation22 + $0xee0] sm:$0xff]
    %v2991 = vld [vmem:[#allocation22 + $0xee8] sm:$0xff]
    %v2992 = vld [vmem:[#allocation22 + $0xef0] sm:$0xff]
    %v2993 = vld [vmem:[#allocation22 + $0xef8] sm:$0xff]
    %v2994 = vld [vmem:[#allocation22 + $0xf00] sm:$0xff]
    %v2995 = vld [vmem:[#allocation22 + $0xf08] sm:$0xff]
    %v2996 = vld [vmem:[#allocation22 + $0xf10] sm:$0xff]
    %v2997 = vld [vmem:[#allocation22 + $0xf18] sm:$0xff]
    %v2998 = vld [vmem:[#allocation22 + $0xf20] sm:$0xff]
    %v2999 = vld [vmem:[#allocation22 + $0xf28] sm:$0xff]
    %v3000 = vld [vmem:[#allocation22 + $0xf30] sm:$0xff]
    %v3001 = vld [vmem:[#allocation22 + $0xf38] sm:$0xff]
    %v3002 = vld [vmem:[#allocation22 + $0xf40] sm:$0xff]
    %v3003 = vld [vmem:[#allocation22 + $0xf48] sm:$0xff]
    %v3004 = vld [vmem:[#allocation22 + $0xf50] sm:$0xff]
    %v3005 = vld [vmem:[#allocation22 + $0xf58] sm:$0xff]
    %v3006 = vld [vmem:[#allocation22 + $0xf60] sm:$0xff]
    %v3007 = vld [vmem:[#allocation22 + $0xf68] sm:$0xff]
    %v3008 = vld [vmem:[#allocation22 + $0xf70] sm:$0xff]
    %v3009 = vld [vmem:[#allocation22 + $0xf78] sm:$0xff]
    %v3010 = vld [vmem:[#allocation22 + $0xf80] sm:$0xff]
    %v3011 = vld [vmem:[#allocation22 + $0xf88] sm:$0xff]
    %v3012 = vld [vmem:[#allocation22 + $0xf90] sm:$0xff]
    %v3013 = vld [vmem:[#allocation22 + $0xf98] sm:$0xff]
    %v3014 = vld [vmem:[#allocation22 + $0xfa0] sm:$0xff]
    %v3015 = vld [vmem:[#allocation22 + $0xfa8] sm:$0xff]
    %v3016 = vld [vmem:[#allocation22 + $0xfb0] sm:$0xff]
    %v3017 = vld [vmem:[#allocation22 + $0xfb8] sm:$0xff]
    %v3018 = vld [vmem:[#allocation22 + $0xfc0] sm:$0xff]
    %v3019 = vld [vmem:[#allocation22 + $0xfc8] sm:$0xff]
    %v3020 = vld [vmem:[#allocation22 + $0xfd0] sm:$0xff]
    %v3021 = vld [vmem:[#allocation22 + $0xfd8] sm:$0xff]
    %v3022 = vld [vmem:[#allocation22 + $0xfe0] sm:$0xff]
    %v3023 = vld [vmem:[#allocation22 + $0xfe8] sm:$0xff]
    %v3024 = vld [vmem:[#allocation22 + $0xff0] sm:$0xff]
    %v3025 = vld [vmem:[#allocation22 + $0xff8] sm:$0xff]
    %v3026 = vld [vmem:[#allocation24] sm:$0xf]
    %v3028 = vlaneseq
    %v3029 = vshrl.u32 %v3028, 7
    %v3030 = vsub.s32 0, %v3029
    %v3031 = vrot.slane %v3026, %v3030
    %v3032 = vlaneseq
    %v3033 = vshrl.u32 %v3032, 7
    %v3034 = vsub.s32 1, %v3033
    %v3035 = vrot.slane %v3026, %v3034
    %v3036 = vlaneseq
    %v3037 = vshrl.u32 %v3036, 7
    %v3038 = vsub.s32 2, %v3037
    %v3039 = vrot.slane %v3026, %v3038
    %v3040 = vlaneseq
    %v3041 = vshrl.u32 %v3040, 7
    %v3042 = vsub.s32 3, %v3041
    %v3043 = vrot.slane %v3026, %v3042
    %3048 = vmatprep.subr.mxu0 %v2575
    %3049 = vmatpush1.msra.mxu0 %v2574
    %3050 = vmatprep.subr.mxu0 %v2571
    %3051 = vmatpush1.msra.mxu0 %v2570
    %3052 = vmatprep.subr.mxu0 %v2567
    %3053 = vmatpush1.msra.mxu0 %v2566
    %3054 = vmatprep.subr.mxu0 %v2563
    %3055 = vmatpush1.msra.mxu0 %v2562
    %3056 = vmatprep.subr.mxu0 %v2559
    %3057 = vmatpush1.msra.mxu0 %v2558
    %3058 = vmatprep.subr.mxu0 %v2555
    %3059 = vmatpush1.msra.mxu0 %v2554
    %3060 = vmatprep.subr.mxu0 %v2551
    %3061 = vmatpush1.msra.mxu0 %v2550
    %3062 = vmatprep.subr.mxu0 %v2547
    %3063 = vmatpush1.msra.mxu0 %v2546
    %3064 = vmatprep.subr.mxu0 %v2543
    %3065 = vmatpush1.msra.mxu0 %v2542
    %3066 = vmatprep.subr.mxu0 %v2539
    %3067 = vmatpush1.msra.mxu0 %v2538
    %3068 = vmatprep.subr.mxu0 %v2535
    %3069 = vmatpush1.msra.mxu0 %v2534
    %3070 = vmatprep.subr.mxu0 %v2531
    %3071 = vmatpush1.msra.mxu0 %v2530
    %3072 = vmatprep.subr.mxu0 %v2527
    %3073 = vmatpush1.msra.mxu0 %v2526
    %3074 = vmatprep.subr.mxu0 %v2523
    %3075 = vmatpush1.msra.mxu0 %v2522
    %3076 = vmatprep.subr.mxu0 %v2519
    %3077 = vmatpush1.msra.mxu0 %v2518
    %3078 = vmatprep.subr.mxu0 %v2515
    %3079 = vmatpush1.msra.mxu0 %v2514
    %3080 = vmatprep.subr.mxu0 %v2639
    %3081 = vmatpush2.msra.mxu0 %v2638
    %3082 = vmatprep.subr.mxu0 %v2635
    %3083 = vmatpush2.msra.mxu0 %v2634
    %3084 = vmatprep.subr.mxu0 %v2631
    %3085 = vmatpush2.msra.mxu0 %v2630
    %3086 = vmatprep.subr.mxu0 %v2627
    %3087 = vmatpush2.msra.mxu0 %v2626
    %3088 = vmatprep.subr.mxu0 %v2623
    %3089 = vmatpush2.msra.mxu0 %v2622
    %3090 = vmatprep.subr.mxu0 %v2619
    %3091 = vmatpush2.msra.mxu0 %v2618
    %3092 = vmatprep.subr.mxu0 %v2615
    %3093 = vmatpush2.msra.mxu0 %v2614
    %3094 = vmatprep.subr.mxu0 %v2611
    %3095 = vmatpush2.msra.mxu0 %v2610
    %3096 = vmatprep.subr.mxu0 %v2607
    %3097 = vmatpush2.msra.mxu0 %v2606
    %3098 = vmatprep.subr.mxu0 %v2603
    %3099 = vmatpush2.msra.mxu0 %v2602
    %3100 = vmatprep.subr.mxu0 %v2599
    %3101 = vmatpush2.msra.mxu0 %v2598
    %3102 = vmatprep.subr.mxu0 %v2595
    %3103 = vmatpush2.msra.mxu0 %v2594
    %3104 = vmatprep.subr.mxu0 %v2591
    %3105 = vmatpush2.msra.mxu0 %v2590
    %3106 = vmatprep.subr.mxu0 %v2587
    %3107 = vmatpush2.msra.mxu0 %v2586
    %3108 = vmatprep.subr.mxu0 %v2583
    %3109 = vmatpush2.msra.mxu0 %v2582
    %3110 = vmatprep.subr.mxu0 %v2579
    %3111 = vmatpush2.msra.mxu0 %v2578
    %3112 = vmatprep.mubr.f32.mxu0 %v2507
    %3113 = vmatmul.mubr.f32.gmra.mxu0 %v2506
    %v3114 = vpop.f32.mrf.mxu0
    %v3115 = vadd.f32 %v3031, %v3114
    %v3116 = vpop.f32.mrf.mxu0
    %v3117 = vadd.f32 %v3035, %v3116
    %3118 = vdwg.mxu0
    %3119 = vmatprep.subr.mxu0 %v2703
    %3120 = vmatpush1.msra.mxu0 %v2702
    %3121 = vmatprep.subr.mxu0 %v2699
    %3122 = vmatpush1.msra.mxu0 %v2698
    %3123 = vmatprep.subr.mxu0 %v2695
    %3124 = vmatpush1.msra.mxu0 %v2694
    %3125 = vmatprep.subr.mxu0 %v2691
    %3126 = vmatpush1.msra.mxu0 %v2690
    %3127 = vmatprep.subr.mxu0 %v2687
    %3128 = vmatpush1.msra.mxu0 %v2686
    %3129 = vmatprep.subr.mxu0 %v2683
    %3130 = vmatpush1.msra.mxu0 %v2682
    %3131 = vmatprep.subr.mxu0 %v2679
    %3132 = vmatpush1.msra.mxu0 %v2678
    %3133 = vmatprep.subr.mxu0 %v2675
    %3134 = vmatpush1.msra.mxu0 %v2674
    %3135 = vmatprep.subr.mxu0 %v2671
    %3136 = vmatpush1.msra.mxu0 %v2670
    %3137 = vmatprep.subr.mxu0 %v2667
    %3138 = vmatpush1.msra.mxu0 %v2666
    %3139 = vmatprep.subr.mxu0 %v2663
    %3140 = vmatpush1.msra.mxu0 %v2662
    %3141 = vmatprep.subr.mxu0 %v2659
    %3142 = vmatpush1.msra.mxu0 %v2658
    %3143 = vmatprep.subr.mxu0 %v2655
    %3144 = vmatpush1.msra.mxu0 %v2654
    %3145 = vmatprep.subr.mxu0 %v2651
    %3146 = vmatpush1.msra.mxu0 %v2650
    %3147 = vmatprep.subr.mxu0 %v2647
    %3148 = vmatpush1.msra.mxu0 %v2646
    %3149 = vmatprep.subr.mxu0 %v2643
    %3150 = vmatpush1.msra.mxu0 %v2642
    %3151 = vmatprep.subr.mxu0 %v2767
    %3152 = vmatpush2.msra.mxu0 %v2766
    %3153 = vmatprep.subr.mxu0 %v2763
    %3154 = vmatpush2.msra.mxu0 %v2762
    %3155 = vmatprep.subr.mxu0 %v2759
    %3156 = vmatpush2.msra.mxu0 %v2758
    %3157 = vmatprep.subr.mxu0 %v2755
    %3158 = vmatpush2.msra.mxu0 %v2754
    %3159 = vmatprep.subr.mxu0 %v2751
    %3160 = vmatpush2.msra.mxu0 %v2750
    %3161 = vmatprep.subr.mxu0 %v2747
    %3162 = vmatpush2.msra.mxu0 %v2746
    %3163 = vmatprep.subr.mxu0 %v2743
    %3164 = vmatpush2.msra.mxu0 %v2742
    %3165 = vmatprep.subr.mxu0 %v2739
    %3166 = vmatpush2.msra.mxu0 %v2738
    %3167 = vmatprep.subr.mxu0 %v2735
    %3168 = vmatpush2.msra.mxu0 %v2734
    %3169 = vmatprep.subr.mxu0 %v2731
    %3170 = vmatpush2.msra.mxu0 %v2730
    %3171 = vmatprep.subr.mxu0 %v2727
    %3172 = vmatpush2.msra.mxu0 %v2726
    %3173 = vmatprep.subr.mxu0 %v2723
    %3174 = vmatpush2.msra.mxu0 %v2722
    %3175 = vmatprep.subr.mxu0 %v2719
    %3176 = vmatpush2.msra.mxu0 %v2718
    %3177 = vmatprep.subr.mxu0 %v2715
    %3178 = vmatpush2.msra.mxu0 %v2714
    %3179 = vmatprep.subr.mxu0 %v2711
    %3180 = vmatpush2.msra.mxu0 %v2710
    %3181 = vmatprep.subr.mxu0 %v2707
    %3182 = vmatpush2.msra.mxu0 %v2706
    %3183 = vmatprep.mubr.f32.mxu0 %v2509
    %3184 = vmatmul.mubr.f32.gmra.mxu0 %v2508
    %v3185 = vpop.f32.mrf.mxu0
    %v3186 = vadd.f32 %v3115, %v3185
    %v3187 = vpop.f32.mrf.mxu0
    %v3188 = vadd.f32 %v3117, %v3187
    %3189 = vdwg.mxu0
    %3190 = vmatprep.subr.mxu0 %v2831
    %3191 = vmatpush1.msra.mxu0 %v2830
    %3192 = vmatprep.subr.mxu0 %v2827
    %3193 = vmatpush1.msra.mxu0 %v2826
    %3194 = vmatprep.subr.mxu0 %v2823
    %3195 = vmatpush1.msra.mxu0 %v2822
    %3196 = vmatprep.subr.mxu0 %v2819
    %3197 = vmatpush1.msra.mxu0 %v2818
    %3198 = vmatprep.subr.mxu0 %v2815
    %3199 = vmatpush1.msra.mxu0 %v2814
    %3200 = vmatprep.subr.mxu0 %v2811
    %3201 = vmatpush1.msra.mxu0 %v2810
    %3202 = vmatprep.subr.mxu0 %v2807
    %3203 = vmatpush1.msra.mxu0 %v2806
    %3204 = vmatprep.subr.mxu0 %v2803
    %3205 = vmatpush1.msra.mxu0 %v2802
    %3206 = vmatprep.subr.mxu0 %v2799
    %3207 = vmatpush1.msra.mxu0 %v2798
    %3208 = vmatprep.subr.mxu0 %v2795
    %3209 = vmatpush1.msra.mxu0 %v2794
    %3210 = vmatprep.subr.mxu0 %v2791
    %3211 = vmatpush1.msra.mxu0 %v2790
    %3212 = vmatprep.subr.mxu0 %v2787
    %3213 = vmatpush1.msra.mxu0 %v2786
    %3214 = vmatprep.subr.mxu0 %v2783
    %3215 = vmatpush1.msra.mxu0 %v2782
    %3216 = vmatprep.subr.mxu0 %v2779
    %3217 = vmatpush1.msra.mxu0 %v2778
    %3218 = vmatprep.subr.mxu0 %v2775
    %3219 = vmatpush1.msra.mxu0 %v2774
    %3220 = vmatprep.subr.mxu0 %v2771
    %3221 = vmatpush1.msra.mxu0 %v2770
    %3222 = vmatprep.subr.mxu0 %v2895
    %3223 = vmatpush2.msra.mxu0 %v2894
    %3224 = vmatprep.subr.mxu0 %v2891
    %3225 = vmatpush2.msra.mxu0 %v2890
    %3226 = vmatprep.subr.mxu0 %v2887
    %3227 = vmatpush2.msra.mxu0 %v2886
    %3228 = vmatprep.subr.mxu0 %v2883
    %3229 = vmatpush2.msra.mxu0 %v2882
    %3230 = vmatprep.subr.mxu0 %v2879
    %3231 = vmatpush2.msra.mxu0 %v2878
    %3232 = vmatprep.subr.mxu0 %v2875
    %3233 = vmatpush2.msra.mxu0 %v2874
    %3234 = vmatprep.subr.mxu0 %v2871
    %3235 = vmatpush2.msra.mxu0 %v2870
    %3236 = vmatprep.subr.mxu0 %v2867
    %3237 = vmatpush2.msra.mxu0 %v2866
    %3238 = vmatprep.subr.mxu0 %v2863
    %3239 = vmatpush2.msra.mxu0 %v2862
    %3240 = vmatprep.subr.mxu0 %v2859
    %3241 = vmatpush2.msra.mxu0 %v2858
    %3242 = vmatprep.subr.mxu0 %v2855
    %3243 = vmatpush2.msra.mxu0 %v2854
    %3244 = vmatprep.subr.mxu0 %v2851
    %3245 = vmatpush2.msra.mxu0 %v2850
    %3246 = vmatprep.subr.mxu0 %v2847
    %3247 = vmatpush2.msra.mxu0 %v2846
    %3248 = vmatprep.subr.mxu0 %v2843
    %3249 = vmatpush2.msra.mxu0 %v2842
    %3250 = vmatprep.subr.mxu0 %v2839
    %3251 = vmatpush2.msra.mxu0 %v2838
    %3252 = vmatprep.subr.mxu0 %v2835
    %3253 = vmatpush2.msra.mxu0 %v2834
    %3254 = vmatprep.mubr.f32.mxu0 %v2511
    %3255 = vmatmul.mubr.f32.gmra.mxu0 %v2510
    %v3256 = vpop.f32.mrf.mxu0
    %v3257 = vadd.f32 %v3186, %v3256
    %v3258 = vpop.f32.mrf.mxu0
    %v3259 = vadd.f32 %v3188, %v3258
    %3260 = vdwg.mxu0
    %3261 = vmatprep.subr.mxu0 %v2959
    %3262 = vmatpush1.msra.mxu0 %v2958
    %3263 = vmatprep.subr.mxu0 %v2955
    %3264 = vmatpush1.msra.mxu0 %v2954
    %3265 = vmatprep.subr.mxu0 %v2951
    %3266 = vmatpush1.msra.mxu0 %v2950
    %3267 = vmatprep.subr.mxu0 %v2947
    %3268 = vmatpush1.msra.mxu0 %v2946
    %3269 = vmatprep.subr.mxu0 %v2943
    %3270 = vmatpush1.msra.mxu0 %v2942
    %3271 = vmatprep.subr.mxu0 %v2939
    %3272 = vmatpush1.msra.mxu0 %v2938
    %3273 = vmatprep.subr.mxu0 %v2935
    %3274 = vmatpush1.msra.mxu0 %v2934
    %3275 = vmatprep.subr.mxu0 %v2931
    %3276 = vmatpush1.msra.mxu0 %v2930
    %3277 = vmatprep.subr.mxu0 %v2927
    %3278 = vmatpush1.msra.mxu0 %v2926
    %3279 = vmatprep.subr.mxu0 %v2923
    %3280 = vmatpush1.msra.mxu0 %v2922
    %3281 = vmatprep.subr.mxu0 %v2919
    %3282 = vmatpush1.msra.mxu0 %v2918
    %3283 = vmatprep.subr.mxu0 %v2915
    %3284 = vmatpush1.msra.mxu0 %v2914
    %3285 = vmatprep.subr.mxu0 %v2911
    %3286 = vmatpush1.msra.mxu0 %v2910
    %3287 = vmatprep.subr.mxu0 %v2907
    %3288 = vmatpush1.msra.mxu0 %v2906
    %3289 = vmatprep.subr.mxu0 %v2903
    %3290 = vmatpush1.msra.mxu0 %v2902
    %3291 = vmatprep.subr.mxu0 %v2899
    %3292 = vmatpush1.msra.mxu0 %v2898
    %3293 = vmatprep.subr.mxu0 %v3023
    %3294 = vmatpush2.msra.mxu0 %v3022
    %3295 = vmatprep.subr.mxu0 %v3019
    %3296 = vmatpush2.msra.mxu0 %v3018
    %3297 = vmatprep.subr.mxu0 %v3015
    %3298 = vmatpush2.msra.mxu0 %v3014
    %3299 = vmatprep.subr.mxu0 %v3011
    %3300 = vmatpush2.msra.mxu0 %v3010
    %3301 = vmatprep.subr.mxu0 %v3007
    %3302 = vmatpush2.msra.mxu0 %v3006
    %3303 = vmatprep.subr.mxu0 %v3003
    %3304 = vmatpush2.msra.mxu0 %v3002
    %3305 = vmatprep.subr.mxu0 %v2999
    %3306 = vmatpush2.msra.mxu0 %v2998
    %3307 = vmatprep.subr.mxu0 %v2995
    %3308 = vmatpush2.msra.mxu0 %v2994
    %3309 = vmatprep.subr.mxu0 %v2991
    %3310 = vmatpush2.msra.mxu0 %v2990
    %3311 = vmatprep.subr.mxu0 %v2987
    %3312 = vmatpush2.msra.mxu0 %v2986
    %3313 = vmatprep.subr.mxu0 %v2983
    %3314 = vmatpush2.msra.mxu0 %v2982
    %3315 = vmatprep.subr.mxu0 %v2979
    %3316 = vmatpush2.msra.mxu0 %v2978
    %3317 = vmatprep.subr.mxu0 %v2975
    %3318 = vmatpush2.msra.mxu0 %v2974
    %3319 = vmatprep.subr.mxu0 %v2971
    %3320 = vmatpush2.msra.mxu0 %v2970
    %3321 = vmatprep.subr.mxu0 %v2967
    %3322 = vmatpush2.msra.mxu0 %v2966
    %3323 = vmatprep.subr.mxu0 %v2963
    %3324 = vmatpush2.msra.mxu0 %v2962
    %3325 = vmatprep.mubr.f32.mxu0 %v2513
    %3326 = vmatmul.mubr.f32.gmra.mxu0 %v2512
    %v3327 = vpop.f32.mrf.mxu0
    %v3328 = vadd.f32 %v3257, %v3327
    %v3329 = vpop.f32.mrf.mxu0
    %v3330 = vadd.f32 %v3259, %v3329
    %3331 = vdwg.mxu0
    %3332 = vmatprep.subr.mxu0 %v2577
    %3333 = vmatpush1.msra.mxu0 %v2576
    %3334 = vmatprep.subr.mxu0 %v2573
    %3335 = vmatpush1.msra.mxu0 %v2572
    %3336 = vmatprep.subr.mxu0 %v2569
    %3337 = vmatpush1.msra.mxu0 %v2568
    %3338 = vmatprep.subr.mxu0 %v2565
    %3339 = vmatpush1.msra.mxu0 %v2564
    %3340 = vmatprep.subr.mxu0 %v2561
    %3341 = vmatpush1.msra.mxu0 %v2560
    %3342 = vmatprep.subr.mxu0 %v2557
    %3343 = vmatpush1.msra.mxu0 %v2556
    %3344 = vmatprep.subr.mxu0 %v2553
    %3345 = vmatpush1.msra.mxu0 %v2552
    %3346 = vmatprep.subr.mxu0 %v2549
    %3347 = vmatpush1.msra.mxu0 %v2548
    %3348 = vmatprep.subr.mxu0 %v2545
    %3349 = vmatpush1.msra.mxu0 %v2544
    %3350 = vmatprep.subr.mxu0 %v2541
    %3351 = vmatpush1.msra.mxu0 %v2540
    %3352 = vmatprep.subr.mxu0 %v2537
    %3353 = vmatpush1.msra.mxu0 %v2536
    %3354 = vmatprep.subr.mxu0 %v2533
    %3355 = vmatpush1.msra.mxu0 %v2532
    %3356 = vmatprep.subr.mxu0 %v2529
    %3357 = vmatpush1.msra.mxu0 %v2528
    %3358 = vmatprep.subr.mxu0 %v2525
    %3359 = vmatpush1.msra.mxu0 %v2524
    %3360 = vmatprep.subr.mxu0 %v2521
    %3361 = vmatpush1.msra.mxu0 %v2520
    %3362 = vmatprep.subr.mxu0 %v2517
    %3363 = vmatpush1.msra.mxu0 %v2516
    %3364 = vmatprep.subr.mxu0 %v2641
    %3365 = vmatpush2.msra.mxu0 %v2640
    %3366 = vmatprep.subr.mxu0 %v2637
    %3367 = vmatpush2.msra.mxu0 %v2636
    %3368 = vmatprep.subr.mxu0 %v2633
    %3369 = vmatpush2.msra.mxu0 %v2632
    %3370 = vmatprep.subr.mxu0 %v2629
    %3371 = vmatpush2.msra.mxu0 %v2628
    %3372 = vmatprep.subr.mxu0 %v2625
    %3373 = vmatpush2.msra.mxu0 %v2624
    %3374 = vmatprep.subr.mxu0 %v2621
    %3375 = vmatpush2.msra.mxu0 %v2620
    %3376 = vmatprep.subr.mxu0 %v2617
    %3377 = vmatpush2.msra.mxu0 %v2616
    %3378 = vmatprep.subr.mxu0 %v2613
    %3379 = vmatpush2.msra.mxu0 %v2612
    %3380 = vmatprep.subr.mxu0 %v2609
    %3381 = vmatpush2.msra.mxu0 %v2608
    %3382 = vmatprep.subr.mxu0 %v2605
    %3383 = vmatpush2.msra.mxu0 %v2604
    %3384 = vmatprep.subr.mxu0 %v2601
    %3385 = vmatpush2.msra.mxu0 %v2600
    %3386 = vmatprep.subr.mxu0 %v2597
    %3387 = vmatpush2.msra.mxu0 %v2596
    %3388 = vmatprep.subr.mxu0 %v2593
    %3389 = vmatpush2.msra.mxu0 %v2592
    %3390 = vmatprep.subr.mxu0 %v2589
    %3391 = vmatpush2.msra.mxu0 %v2588
    %3392 = vmatprep.subr.mxu0 %v2585
    %3393 = vmatpush2.msra.mxu0 %v2584
    %3394 = vmatprep.subr.mxu0 %v2581
    %3395 = vmatpush2.msra.mxu0 %v2580
    %3396 = vmatprep.mubr.f32.mxu0 %v2507
    %3397 = vmatmul.mubr.f32.gmra.mxu0 %v2506
    %v3398 = vpop.f32.mrf.mxu0
    %v3399 = vadd.f32 %v3039, %v3398
    %v3400 = vpop.f32.mrf.mxu0
    %v3401 = vadd.f32 %v3043, %v3400
    %3402 = vdwg.mxu0
    %3403 = vmatprep.subr.mxu0 %v2705
    %3404 = vmatpush1.msra.mxu0 %v2704
    %3405 = vmatprep.subr.mxu0 %v2701
    %3406 = vmatpush1.msra.mxu0 %v2700
    %3407 = vmatprep.subr.mxu0 %v2697
    %3408 = vmatpush1.msra.mxu0 %v2696
    %3409 = vmatprep.subr.mxu0 %v2693
    %3410 = vmatpush1.msra.mxu0 %v2692
    %3411 = vmatprep.subr.mxu0 %v2689
    %3412 = vmatpush1.msra.mxu0 %v2688
    %3413 = vmatprep.subr.mxu0 %v2685
    %3414 = vmatpush1.msra.mxu0 %v2684
    %3415 = vmatprep.subr.mxu0 %v2681
    %3416 = vmatpush1.msra.mxu0 %v2680
    %3417 = vmatprep.subr.mxu0 %v2677
    %3418 = vmatpush1.msra.mxu0 %v2676
    %3419 = vmatprep.subr.mxu0 %v2673
    %3420 = vmatpush1.msra.mxu0 %v2672
    %3421 = vmatprep.subr.mxu0 %v2669
    %3422 = vmatpush1.msra.mxu0 %v2668
    %3423 = vmatprep.subr.mxu0 %v2665
    %3424 = vmatpush1.msra.mxu0 %v2664
    %3425 = vmatprep.subr.mxu0 %v2661
    %3426 = vmatpush1.msra.mxu0 %v2660
    %3427 = vmatprep.subr.mxu0 %v2657
    %3428 = vmatpush1.msra.mxu0 %v2656
    %3429 = vmatprep.subr.mxu0 %v2653
    %3430 = vmatpush1.msra.mxu0 %v2652
    %3431 = vmatprep.subr.mxu0 %v2649
    %3432 = vmatpush1.msra.mxu0 %v2648
    %3433 = vmatprep.subr.mxu0 %v2645
    %3434 = vmatpush1.msra.mxu0 %v2644
    %3435 = vmatprep.subr.mxu0 %v2769
    %3436 = vmatpush2.msra.mxu0 %v2768
    %3437 = vmatprep.subr.mxu0 %v2765
    %3438 = vmatpush2.msra.mxu0 %v2764
    %3439 = vmatprep.subr.mxu0 %v2761
    %3440 = vmatpush2.msra.mxu0 %v2760
    %3441 = vmatprep.subr.mxu0 %v2757
    %3442 = vmatpush2.msra.mxu0 %v2756
    %3443 = vmatprep.subr.mxu0 %v2753
    %3444 = vmatpush2.msra.mxu0 %v2752
    %3445 = vmatprep.subr.mxu0 %v2749
    %3446 = vmatpush2.msra.mxu0 %v2748
    %3447 = vmatprep.subr.mxu0 %v2745
    %3448 = vmatpush2.msra.mxu0 %v2744
    %3449 = vmatprep.subr.mxu0 %v2741
    %3450 = vmatpush2.msra.mxu0 %v2740
    %3451 = vmatprep.subr.mxu0 %v2737
    %3452 = vmatpush2.msra.mxu0 %v2736
    %3453 = vmatprep.subr.mxu0 %v2733
    %3454 = vmatpush2.msra.mxu0 %v2732
    %3455 = vmatprep.subr.mxu0 %v2729
    %3456 = vmatpush2.msra.mxu0 %v2728
    %3457 = vmatprep.subr.mxu0 %v2725
    %3458 = vmatpush2.msra.mxu0 %v2724
    %3459 = vmatprep.subr.mxu0 %v2721
    %3460 = vmatpush2.msra.mxu0 %v2720
    %3461 = vmatprep.subr.mxu0 %v2717
    %3462 = vmatpush2.msra.mxu0 %v2716
    %3463 = vmatprep.subr.mxu0 %v2713
    %3464 = vmatpush2.msra.mxu0 %v2712
    %3465 = vmatprep.subr.mxu0 %v2709
    %3466 = vmatpush2.msra.mxu0 %v2708
    %3467 = vmatprep.mubr.f32.mxu0 %v2509
    %3468 = vmatmul.mubr.f32.gmra.mxu0 %v2508
    %v3469 = vpop.f32.mrf.mxu0
    %v3470 = vadd.f32 %v3399, %v3469
    %v3471 = vpop.f32.mrf.mxu0
    %v3472 = vadd.f32 %v3401, %v3471
    %3473 = vdwg.mxu0
    %3474 = vmatprep.subr.mxu0 %v2833
    %3475 = vmatpush1.msra.mxu0 %v2832
    %3476 = vmatprep.subr.mxu0 %v2829
    %3477 = vmatpush1.msra.mxu0 %v2828
    %3478 = vmatprep.subr.mxu0 %v2825
    %3479 = vmatpush1.msra.mxu0 %v2824
    %3480 = vmatprep.subr.mxu0 %v2821
    %3481 = vmatpush1.msra.mxu0 %v2820
    %3482 = vmatprep.subr.mxu0 %v2817
    %3483 = vmatpush1.msra.mxu0 %v2816
    %3484 = vmatprep.subr.mxu0 %v2813
    %3485 = vmatpush1.msra.mxu0 %v2812
    %3486 = vmatprep.subr.mxu0 %v2809
    %3487 = vmatpush1.msra.mxu0 %v2808
    %3488 = vmatprep.subr.mxu0 %v2805
    %3489 = vmatpush1.msra.mxu0 %v2804
    %3490 = vmatprep.subr.mxu0 %v2801
    %3491 = vmatpush1.msra.mxu0 %v2800
    %3492 = vmatprep.subr.mxu0 %v2797
    %3493 = vmatpush1.msra.mxu0 %v2796
    %3494 = vmatprep.subr.mxu0 %v2793
    %3495 = vmatpush1.msra.mxu0 %v2792
    %3496 = vmatprep.subr.mxu0 %v2789
    %3497 = vmatpush1.msra.mxu0 %v2788
    %3498 = vmatprep.subr.mxu0 %v2785
    %3499 = vmatpush1.msra.mxu0 %v2784
    %3500 = vmatprep.subr.mxu0 %v2781
    %3501 = vmatpush1.msra.mxu0 %v2780
    %3502 = vmatprep.subr.mxu0 %v2777
    %3503 = vmatpush1.msra.mxu0 %v2776
    %3504 = vmatprep.subr.mxu0 %v2773
    %3505 = vmatpush1.msra.mxu0 %v2772
    %3506 = vmatprep.subr.mxu0 %v2897
    %3507 = vmatpush2.msra.mxu0 %v2896
    %3508 = vmatprep.subr.mxu0 %v2893
    %3509 = vmatpush2.msra.mxu0 %v2892
    %3510 = vmatprep.subr.mxu0 %v2889
    %3511 = vmatpush2.msra.mxu0 %v2888
    %3512 = vmatprep.subr.mxu0 %v2885
    %3513 = vmatpush2.msra.mxu0 %v2884
    %3514 = vmatprep.subr.mxu0 %v2881
    %3515 = vmatpush2.msra.mxu0 %v2880
    %3516 = vmatprep.subr.mxu0 %v2877
    %3517 = vmatpush2.msra.mxu0 %v2876
    %3518 = vmatprep.subr.mxu0 %v2873
    %3519 = vmatpush2.msra.mxu0 %v2872
    %3520 = vmatprep.subr.mxu0 %v2869
    %3521 = vmatpush2.msra.mxu0 %v2868
    %3522 = vmatprep.subr.mxu0 %v2865
    %3523 = vmatpush2.msra.mxu0 %v2864
    %3524 = vmatprep.subr.mxu0 %v2861
    %3525 = vmatpush2.msra.mxu0 %v2860
    %3526 = vmatprep.subr.mxu0 %v2857
    %3527 = vmatpush2.msra.mxu0 %v2856
    %3528 = vmatprep.subr.mxu0 %v2853
    %3529 = vmatpush2.msra.mxu0 %v2852
    %3530 = vmatprep.subr.mxu0 %v2849
    %3531 = vmatpush2.msra.mxu0 %v2848
    %3532 = vmatprep.subr.mxu0 %v2845
    %3533 = vmatpush2.msra.mxu0 %v2844
    %3534 = vmatprep.subr.mxu0 %v2841
    %3535 = vmatpush2.msra.mxu0 %v2840
    %3536 = vmatprep.subr.mxu0 %v2837
    %3537 = vmatpush2.msra.mxu0 %v2836
    %3538 = vmatprep.mubr.f32.mxu0 %v2511
    %3539 = vmatmul.mubr.f32.gmra.mxu0 %v2510
    %v3540 = vpop.f32.mrf.mxu0
    %v3541 = vadd.f32 %v3470, %v3540
    %v3542 = vpop.f32.mrf.mxu0
    %v3543 = vadd.f32 %v3472, %v3542
    %3544 = vdwg.mxu0
    %3545 = vmatprep.subr.mxu0 %v2961
    %3546 = vmatpush1.msra.mxu0 %v2960
    %3547 = vmatprep.subr.mxu0 %v2957
    %3548 = vmatpush1.msra.mxu0 %v2956
    %3549 = vmatprep.subr.mxu0 %v2953
    %3550 = vmatpush1.msra.mxu0 %v2952
    %3551 = vmatprep.subr.mxu0 %v2949
    %3552 = vmatpush1.msra.mxu0 %v2948
    %3553 = vmatprep.subr.mxu0 %v2945
    %3554 = vmatpush1.msra.mxu0 %v2944
    %3555 = vmatprep.subr.mxu0 %v2941
    %3556 = vmatpush1.msra.mxu0 %v2940
    %3557 = vmatprep.subr.mxu0 %v2937
    %3558 = vmatpush1.msra.mxu0 %v2936
    %3559 = vmatprep.subr.mxu0 %v2933
    %3560 = vmatpush1.msra.mxu0 %v2932
    %3561 = vmatprep.subr.mxu0 %v2929
    %3562 = vmatpush1.msra.mxu0 %v2928
    %3563 = vmatprep.subr.mxu0 %v2925
    %3564 = vmatpush1.msra.mxu0 %v2924
    %3565 = vmatprep.subr.mxu0 %v2921
    %3566 = vmatpush1.msra.mxu0 %v2920
    %3567 = vmatprep.subr.mxu0 %v2917
    %3568 = vmatpush1.msra.mxu0 %v2916
    %3569 = vmatprep.subr.mxu0 %v2913
    %3570 = vmatpush1.msra.mxu0 %v2912
    %3571 = vmatprep.subr.mxu0 %v2909
    %3572 = vmatpush1.msra.mxu0 %v2908
    %3573 = vmatprep.subr.mxu0 %v2905
    %3574 = vmatpush1.msra.mxu0 %v2904
    %3575 = vmatprep.subr.mxu0 %v2901
    %3576 = vmatpush1.msra.mxu0 %v2900
    %3577 = vmatprep.subr.mxu0 %v3025
    %3578 = vmatpush2.msra.mxu0 %v3024
    %3579 = vmatprep.subr.mxu0 %v3021
    %3580 = vmatpush2.msra.mxu0 %v3020
    %3581 = vmatprep.subr.mxu0 %v3017
    %3582 = vmatpush2.msra.mxu0 %v3016
    %3583 = vmatprep.subr.mxu0 %v3013
    %3584 = vmatpush2.msra.mxu0 %v3012
    %3585 = vmatprep.subr.mxu0 %v3009
    %3586 = vmatpush2.msra.mxu0 %v3008
    %3587 = vmatprep.subr.mxu0 %v3005
    %3588 = vmatpush2.msra.mxu0 %v3004
    %3589 = vmatprep.subr.mxu0 %v3001
    %3590 = vmatpush2.msra.mxu0 %v3000
    %3591 = vmatprep.subr.mxu0 %v2997
    %3592 = vmatpush2.msra.mxu0 %v2996
    %3593 = vmatprep.subr.mxu0 %v2993
    %3594 = vmatpush2.msra.mxu0 %v2992
    %3595 = vmatprep.subr.mxu0 %v2989
    %3596 = vmatpush2.msra.mxu0 %v2988
    %3597 = vmatprep.subr.mxu0 %v2985
    %3598 = vmatpush2.msra.mxu0 %v2984
    %3599 = vmatprep.subr.mxu0 %v2981
    %3600 = vmatpush2.msra.mxu0 %v2980
    %3601 = vmatprep.subr.mxu0 %v2977
    %3602 = vmatpush2.msra.mxu0 %v2976
    %3603 = vmatprep.subr.mxu0 %v2973
    %3604 = vmatpush2.msra.mxu0 %v2972
    %3605 = vmatprep.subr.mxu0 %v2969
    %3606 = vmatpush2.msra.mxu0 %v2968
    %3607 = vmatprep.subr.mxu0 %v2965
    %3608 = vmatpush2.msra.mxu0 %v2964
    %3609 = vmatprep.mubr.f32.mxu0 %v2513
    %3610 = vmatmul.mubr.f32.gmra.mxu0 %v2512
    %v3611 = vpop.f32.mrf.mxu0
    %v3612 = vadd.f32 %v3541, %v3611
    %v3613 = vpop.f32.mrf.mxu0
    %v3614 = vadd.f32 %v3543, %v3613
    %3615 = vdwg.mxu0
    %v3616 = vld [vmem:[#allocation25] ss:$2 sm:$0xf]
    %v3618 = vlaneseq
    %v3619 = vshrl.u32 %v3618, 7
    %v3620 = vsub.s32 0, %v3619
    %v3621 = vrot.slane %v3616, %v3620
    %v3622 = vlaneseq
    %v3623 = vshrl.u32 %v3622, 7
    %v3624 = vsub.s32 1, %v3623
    %v3625 = vrot.slane %v3616, %v3624
    %v3626 = vlaneseq
    %v3627 = vshrl.u32 %v3626, 7
    %v3628 = vsub.s32 2, %v3627
    %v3629 = vrot.slane %v3616, %v3628
    %v3630 = vlaneseq
    %v3631 = vshrl.u32 %v3630, 7
    %v3632 = vsub.s32 3, %v3631
    %v3633 = vrot.slane %v3616, %v3632
    %v3638 = vmul.f32 %v3328, %v3621
    %v3639 = vmul.f32 %v3330, %v3625
    %v3640 = vmul.f32 %v3612, %v3629
    %v3641 = vmul.f32 %v3614, %v3633
    %s3642 = scalar_lea.vmem [#allocation25], 1
    %v3643 = vld [vmem:[%s3642] ss:$2 sm:$0xf]
    %v3645 = vlaneseq
    %v3646 = vshrl.u32 %v3645, 7
    %v3647 = vsub.s32 0, %v3646
    %v3648 = vrot.slane %v3643, %v3647
    %v3649 = vlaneseq
    %v3650 = vshrl.u32 %v3649, 7
    %v3651 = vsub.s32 1, %v3650
    %v3652 = vrot.slane %v3643, %v3651
    %v3653 = vlaneseq
    %v3654 = vshrl.u32 %v3653, 7
    %v3655 = vsub.s32 2, %v3654
    %v3656 = vrot.slane %v3643, %v3655
    %v3657 = vlaneseq
    %v3658 = vshrl.u32 %v3657, 7
    %v3659 = vsub.s32 3, %v3658
    %v3660 = vrot.slane %v3643, %v3659
    %v3665 = vadd.f32 %v3638, %v3648
    %v3666 = vadd.f32 %v3639, %v3652
    %v3667 = vadd.f32 %v3640, %v3656
    %v3668 = vadd.f32 %v3641, %v3660
    %v3669 = vmax.f32 %v3665, 0.0
    %v3670 = vmax.f32 %v3666, 0.0
    %v3671 = vmax.f32 %v3667, 0.0
    %v3672 = vmax.f32 %v3668, 0.0
    %v3673 = vld [vmem:[#allocation27] sm:$0xff]
    %v3674 = vld [vmem:[#allocation27 + $0x8] sm:$0xff]
    %v3675 = vld [vmem:[#allocation27 + $0x10] sm:$0xff]
    %v3676 = vld [vmem:[#allocation27 + $0x18] sm:$0xff]
    %v3677 = vld [vmem:[#allocation27 + $0x20] sm:$0xff]
    %v3678 = vld [vmem:[#allocation27 + $0x28] sm:$0xff]
    %v3679 = vld [vmem:[#allocation27 + $0x30] sm:$0xff]
    %v3680 = vld [vmem:[#allocation27 + $0x38] sm:$0xff]
    %v3681 = vld [vmem:[#allocation27 + $0x40] sm:$0xff]
    %v3682 = vld [vmem:[#allocation27 + $0x48] sm:$0xff]
    %v3683 = vld [vmem:[#allocation27 + $0x50] sm:$0xff]
    %v3684 = vld [vmem:[#allocation27 + $0x58] sm:$0xff]
    %v3685 = vld [vmem:[#allocation27 + $0x60] sm:$0xff]
    %v3686 = vld [vmem:[#allocation27 + $0x68] sm:$0xff]
    %v3687 = vld [vmem:[#allocation27 + $0x70] sm:$0xff]
    %v3688 = vld [vmem:[#allocation27 + $0x78] sm:$0xff]
    %v3689 = vld [vmem:[#allocation27 + $0x80] sm:$0xff]
    %v3690 = vld [vmem:[#allocation27 + $0x88] sm:$0xff]
    %v3691 = vld [vmem:[#allocation27 + $0x90] sm:$0xff]
    %v3692 = vld [vmem:[#allocation27 + $0x98] sm:$0xff]
    %v3693 = vld [vmem:[#allocation27 + $0xa0] sm:$0xff]
    %v3694 = vld [vmem:[#allocation27 + $0xa8] sm:$0xff]
    %v3695 = vld [vmem:[#allocation27 + $0xb0] sm:$0xff]
    %v3696 = vld [vmem:[#allocation27 + $0xb8] sm:$0xff]
    %v3697 = vld [vmem:[#allocation27 + $0xc0] sm:$0xff]
    %v3698 = vld [vmem:[#allocation27 + $0xc8] sm:$0xff]
    %v3699 = vld [vmem:[#allocation27 + $0xd0] sm:$0xff]
    %v3700 = vld [vmem:[#allocation27 + $0xd8] sm:$0xff]
    %v3701 = vld [vmem:[#allocation27 + $0xe0] sm:$0xff]
    %v3702 = vld [vmem:[#allocation27 + $0xe8] sm:$0xff]
    %v3703 = vld [vmem:[#allocation27 + $0xf0] sm:$0xff]
    %v3704 = vld [vmem:[#allocation27 + $0xf8] sm:$0xff]
    %v3705 = vld [vmem:[#allocation27 + $0x100] sm:$0xff]
    %v3706 = vld [vmem:[#allocation27 + $0x108] sm:$0xff]
    %v3707 = vld [vmem:[#allocation27 + $0x110] sm:$0xff]
    %v3708 = vld [vmem:[#allocation27 + $0x118] sm:$0xff]
    %v3709 = vld [vmem:[#allocation27 + $0x120] sm:$0xff]
    %v3710 = vld [vmem:[#allocation27 + $0x128] sm:$0xff]
    %v3711 = vld [vmem:[#allocation27 + $0x130] sm:$0xff]
    %v3712 = vld [vmem:[#allocation27 + $0x138] sm:$0xff]
    %v3713 = vld [vmem:[#allocation27 + $0x140] sm:$0xff]
    %v3714 = vld [vmem:[#allocation27 + $0x148] sm:$0xff]
    %v3715 = vld [vmem:[#allocation27 + $0x150] sm:$0xff]
    %v3716 = vld [vmem:[#allocation27 + $0x158] sm:$0xff]
    %v3717 = vld [vmem:[#allocation27 + $0x160] sm:$0xff]
    %v3718 = vld [vmem:[#allocation27 + $0x168] sm:$0xff]
    %v3719 = vld [vmem:[#allocation27 + $0x170] sm:$0xff]
    %v3720 = vld [vmem:[#allocation27 + $0x178] sm:$0xff]
    %v3721 = vld [vmem:[#allocation27 + $0x180] sm:$0xff]
    %v3722 = vld [vmem:[#allocation27 + $0x188] sm:$0xff]
    %v3723 = vld [vmem:[#allocation27 + $0x190] sm:$0xff]
    %v3724 = vld [vmem:[#allocation27 + $0x198] sm:$0xff]
    %v3725 = vld [vmem:[#allocation27 + $0x1a0] sm:$0xff]
    %v3726 = vld [vmem:[#allocation27 + $0x1a8] sm:$0xff]
    %v3727 = vld [vmem:[#allocation27 + $0x1b0] sm:$0xff]
    %v3728 = vld [vmem:[#allocation27 + $0x1b8] sm:$0xff]
    %v3729 = vld [vmem:[#allocation27 + $0x1c0] sm:$0xff]
    %v3730 = vld [vmem:[#allocation27 + $0x1c8] sm:$0xff]
    %v3731 = vld [vmem:[#allocation27 + $0x1d0] sm:$0xff]
    %v3732 = vld [vmem:[#allocation27 + $0x1d8] sm:$0xff]
    %v3733 = vld [vmem:[#allocation27 + $0x1e0] sm:$0xff]
    %v3734 = vld [vmem:[#allocation27 + $0x1e8] sm:$0xff]
    %v3735 = vld [vmem:[#allocation27 + $0x1f0] sm:$0xff]
    %v3736 = vld [vmem:[#allocation27 + $0x1f8] sm:$0xff]
    %v3737 = vld [vmem:[#allocation28] sm:$0x1]
    %v3739 = vlaneseq
    %v3740 = vshrl.u32 %v3739, 7
    %v3741 = vsub.s32 0, %v3740
    %v3742 = vrot.slane %v3737, %v3741
    %3744 = vmatprep.subr.mxu0 0.0
    %3745 = vmatpush1.msra.mxu0 %v3688
    %3746 = vmatprep.subr.mxu0 0.0
    %3747 = vmatpush1.msra.mxu0 %v3687
    %3748 = vmatprep.subr.mxu0 0.0
    %3749 = vmatpush1.msra.mxu0 %v3686
    %3750 = vmatprep.subr.mxu0 0.0
    %3751 = vmatpush1.msra.mxu0 %v3685
    %3752 = vmatprep.subr.mxu0 0.0
    %3753 = vmatpush1.msra.mxu0 %v3684
    %3754 = vmatprep.subr.mxu0 0.0
    %3755 = vmatpush1.msra.mxu0 %v3683
    %3756 = vmatprep.subr.mxu0 0.0
    %3757 = vmatpush1.msra.mxu0 %v3682
    %3758 = vmatprep.subr.mxu0 0.0
    %3759 = vmatpush1.msra.mxu0 %v3681
    %3760 = vmatprep.subr.mxu0 0.0
    %3761 = vmatpush1.msra.mxu0 %v3680
    %3762 = vmatprep.subr.mxu0 0.0
    %3763 = vmatpush1.msra.mxu0 %v3679
    %3764 = vmatprep.subr.mxu0 0.0
    %3765 = vmatpush1.msra.mxu0 %v3678
    %3766 = vmatprep.subr.mxu0 0.0
    %3767 = vmatpush1.msra.mxu0 %v3677
    %3768 = vmatprep.subr.mxu0 0.0
    %3769 = vmatpush1.msra.mxu0 %v3676
    %3770 = vmatprep.subr.mxu0 0.0
    %3771 = vmatpush1.msra.mxu0 %v3675
    %3772 = vmatprep.subr.mxu0 0.0
    %3773 = vmatpush1.msra.mxu0 %v3674
    %3774 = vmatprep.subr.mxu0 0.0
    %3775 = vmatpush1.msra.mxu0 %v3673
    %3776 = vmatprep.subr.mxu0 0.0
    %3777 = vmatpush2.msra.mxu0 %v3704
    %3778 = vmatprep.subr.mxu0 0.0
    %3779 = vmatpush2.msra.mxu0 %v3703
    %3780 = vmatprep.subr.mxu0 0.0
    %3781 = vmatpush2.msra.mxu0 %v3702
    %3782 = vmatprep.subr.mxu0 0.0
    %3783 = vmatpush2.msra.mxu0 %v3701
    %3784 = vmatprep.subr.mxu0 0.0
    %3785 = vmatpush2.msra.mxu0 %v3700
    %3786 = vmatprep.subr.mxu0 0.0
    %3787 = vmatpush2.msra.mxu0 %v3699
    %3788 = vmatprep.subr.mxu0 0.0
    %3789 = vmatpush2.msra.mxu0 %v3698
    %3790 = vmatprep.subr.mxu0 0.0
    %3791 = vmatpush2.msra.mxu0 %v3697
    %3792 = vmatprep.subr.mxu0 0.0
    %3793 = vmatpush2.msra.mxu0 %v3696
    %3794 = vmatprep.subr.mxu0 0.0
    %3795 = vmatpush2.msra.mxu0 %v3695
    %3796 = vmatprep.subr.mxu0 0.0
    %3797 = vmatpush2.msra.mxu0 %v3694
    %3798 = vmatprep.subr.mxu0 0.0
    %3799 = vmatpush2.msra.mxu0 %v3693
    %3800 = vmatprep.subr.mxu0 0.0
    %3801 = vmatpush2.msra.mxu0 %v3692
    %3802 = vmatprep.subr.mxu0 0.0
    %3803 = vmatpush2.msra.mxu0 %v3691
    %3804 = vmatprep.subr.mxu0 0.0
    %3805 = vmatpush2.msra.mxu0 %v3690
    %3806 = vmatprep.subr.mxu0 0.0
    %3807 = vmatpush2.msra.mxu0 %v3689
    %3808 = vmatprep.mubr.f32.mxu0 %v3670
    %3809 = vmatmul.mubr.f32.gmra.mxu0 %v3669
    %v3810 = vpop.f32.mrf.mxu0
    %v3811 = vadd.f32 %v3742, %v3810
    %v3812 = vpop.f32.mrf.mxu0
    %3813 = vdwg.mxu0
    %3814 = vmatprep.subr.mxu0 0.0
    %3815 = vmatpush1.msra.mxu0 %v3720
    %3816 = vmatprep.subr.mxu0 0.0
    %3817 = vmatpush1.msra.mxu0 %v3719
    %3818 = vmatprep.subr.mxu0 0.0
    %3819 = vmatpush1.msra.mxu0 %v3718
    %3820 = vmatprep.subr.mxu0 0.0
    %3821 = vmatpush1.msra.mxu0 %v3717
    %3822 = vmatprep.subr.mxu0 0.0
    %3823 = vmatpush1.msra.mxu0 %v3716
    %3824 = vmatprep.subr.mxu0 0.0
    %3825 = vmatpush1.msra.mxu0 %v3715
    %3826 = vmatprep.subr.mxu0 0.0
    %3827 = vmatpush1.msra.mxu0 %v3714
    %3828 = vmatprep.subr.mxu0 0.0
    %3829 = vmatpush1.msra.mxu0 %v3713
    %3830 = vmatprep.subr.mxu0 0.0
    %3831 = vmatpush1.msra.mxu0 %v3712
    %3832 = vmatprep.subr.mxu0 0.0
    %3833 = vmatpush1.msra.mxu0 %v3711
    %3834 = vmatprep.subr.mxu0 0.0
    %3835 = vmatpush1.msra.mxu0 %v3710
    %3836 = vmatprep.subr.mxu0 0.0
    %3837 = vmatpush1.msra.mxu0 %v3709
    %3838 = vmatprep.subr.mxu0 0.0
    %3839 = vmatpush1.msra.mxu0 %v3708
    %3840 = vmatprep.subr.mxu0 0.0
    %3841 = vmatpush1.msra.mxu0 %v3707
    %3842 = vmatprep.subr.mxu0 0.0
    %3843 = vmatpush1.msra.mxu0 %v3706
    %3844 = vmatprep.subr.mxu0 0.0
    %3845 = vmatpush1.msra.mxu0 %v3705
    %3846 = vmatprep.subr.mxu0 0.0
    %3847 = vmatpush2.msra.mxu0 %v3736
    %3848 = vmatprep.subr.mxu0 0.0
    %3849 = vmatpush2.msra.mxu0 %v3735
    %3850 = vmatprep.subr.mxu0 0.0
    %3851 = vmatpush2.msra.mxu0 %v3734
    %3852 = vmatprep.subr.mxu0 0.0
    %3853 = vmatpush2.msra.mxu0 %v3733
    %3854 = vmatprep.subr.mxu0 0.0
    %3855 = vmatpush2.msra.mxu0 %v3732
    %3856 = vmatprep.subr.mxu0 0.0
    %3857 = vmatpush2.msra.mxu0 %v3731
    %3858 = vmatprep.subr.mxu0 0.0
    %3859 = vmatpush2.msra.mxu0 %v3730
    %3860 = vmatprep.subr.mxu0 0.0
    %3861 = vmatpush2.msra.mxu0 %v3729
    %3862 = vmatprep.subr.mxu0 0.0
    %3863 = vmatpush2.msra.mxu0 %v3728
    %3864 = vmatprep.subr.mxu0 0.0
    %3865 = vmatpush2.msra.mxu0 %v3727
    %3866 = vmatprep.subr.mxu0 0.0
    %3867 = vmatpush2.msra.mxu0 %v3726
    %3868 = vmatprep.subr.mxu0 0.0
    %3869 = vmatpush2.msra.mxu0 %v3725
    %3870 = vmatprep.subr.mxu0 0.0
    %3871 = vmatpush2.msra.mxu0 %v3724
    %3872 = vmatprep.subr.mxu0 0.0
    %3873 = vmatpush2.msra.mxu0 %v3723
    %3874 = vmatprep.subr.mxu0 0.0
    %3875 = vmatpush2.msra.mxu0 %v3722
    %3876 = vmatprep.subr.mxu0 0.0
    %3877 = vmatpush2.msra.mxu0 %v3721
    %3878 = vmatprep.mubr.f32.mxu0 %v3672
    %3879 = vmatmul.mubr.f32.gmra.mxu0 %v3671
    %v3880 = vpop.f32.mrf.mxu0
    %v3881 = vadd.f32 %v3811, %v3880
    %v3882 = vpop.f32.mrf.mxu0
    %3883 = vdwg.mxu0
    %3884 = vst [vmem:[#allocation30] sm:$0x3] %v3881
    // Predicated region
    $region142: #{tpu_custom_call.1} parent=1 // pred_check
      _
    $region143: #{tpu_custom_call.1} parent=1 // pred_check_branch
      %3886 = sbr.rel (0) target = $region145
    $region144: #{tpu_custom_call.1} parent=1 // pred_region
      %s3888 = ssub.s32 32, 32
      %3889 = vsyncadd [#allocation4], %s3888
      %s3891 = sshll.u32 [#allocation30], 4
      %s3892 = int_to_ptr.vmem [resolvable:$true] %s3891
      %3894 = dma.vmem_to_hbm [thread:$0]  %s3892, 32, %s18, [#allocation4]
    $region145: #{tpu_custom_call.1} parent=1 // pred_fallthru
      _
    // Predicated region
    $region146: #{tpu_custom_call.1} parent=1 // pred_check
      _
    $region147: #{tpu_custom_call.1} parent=1 // pred_check_branch
      %3896 = sbr.rel (0) target = $region149
    $region148: #{tpu_custom_call.1} parent=1 // pred_region
      %3897 = dma.done [#allocation4], 32
    $region149: #{tpu_custom_call.1} parent=1 // pred_fallthru
      _
    %3898 = vsyncpa [#allocation3], 1
    %3899 = vsyncpa [#allocation7], 1
    %3900 = vsyncpa [#allocation11], 1
    %3901 = vsyncpa [#allocation14], 1
    %3902 = vsyncpa [#allocation17], 1
    %3903 = vsyncpa [#allocation20], 1
    %3904 = vsyncpa [#allocation23], 1
    %3905 = vsyncpa [#allocation26], 1
    %3906 = vsyncpa [#allocation29], 1
    %3907 = vsyncpa [#allocation4], 1
    %3908 = vsyncpa [#allocation5], 1

</llo_original>
